<compile_context>
chip_gen: v7x
topology: tpu7x:2x2x1
jax: 0.10.0
libtpu: 0.0.40
codegen_flags: <defaults>
</compile_context>

<pallas_src>
import math

import jax
import jax.numpy as jnp
from jax import lax
from jax.experimental import pallas as pl
from jax.experimental.pallas import tpu as pltpu

# ---- model config (small, consistent with the module) ----
B, L, C_IN = 2, 16, 4          # batch, seq_len, enc_in
D_MODEL, N_HEADS = 32, 4
D_FF, E_LAYERS = 64, 2
NUM_CLASS = 4
D_HEAD = D_MODEL // N_HEADS
LN_EPS = 1e-5

EMB_IN = 3 * C_IN + L          # 28 augmented features: conv taps + one-hot pos
LS_ROWS = 168                  # per-layer slab rows: 32+32+64+32 weights + 8 vecs
HS_ROWS = 168                  # head slab rows (see init_params)


# ---------------- in-kernel helpers ----------------
def _gelu_exact(x):
    # matches F.gelu(approximate='none')
    return 0.5 * x * (1.0 + lax.erf(x * (1.0 / math.sqrt(2.0))))


def _layer_norm(x, g, b):
    mu = jnp.mean(x, axis=-1, keepdims=True)
    var = jnp.mean((x - mu) ** 2, axis=-1, keepdims=True)
    return (x - mu) * lax.rsqrt(var + LN_EPS) * g + b


# ---------------- single fused kernel ----------------
# Per-layer slab (ls_ref[e], shape (168, 96)):
#   rows   0: 32 lanes 0:96  Wqkv        rows 160 lanes 0:96  bqkv
#   rows  32: 64 lanes 0:64  W1 (ffn in) row  161 lanes 0:32  bo
#   rows  64:128 lanes 0:32  W2 (ffn out) row 162 lanes 0:64  b1
#   rows 128:160 lanes 0:32  Wo          row  163 lanes 0:32  b2
#                                        rows 164..167        g1, be1, g2, be2
# Head slab (hs_ref, shape (168, 64)):
#   rows   0: 32 lanes 0:32  W_emb (conv taps + PE rows)
#   rows  32: 64 lanes 0:64  W1s  (position-dependent projection weight)
#   rows  64: 96 lanes 0:64  Msel (block-diagonal position selector)
#   rows  96:160 lanes 0:4   Csel (column compaction, c%N == n)
#   rows 160:162 lanes 0:32  RselT (per-batch row-sum selector)
#   row 162/163  lanes 0:32  final-norm gamma / beta
#   row 164      lanes 0:4   projection bias
def fused_kernel(x_ref, ls_ref, hs_ref, o_ref):
    f32 = jnp.float32
    scale = 1.0 / math.sqrt(D_HEAD)

    # ---- embedding: conv1d(k=3, circular) + positional emb as ONE matmul ----
    h = jnp.dot(x_ref[...], hs_ref[0:32, 0:D_MODEL],
                preferred_element_type=f32)                       # (B*L, D)

    # ---- encoder layers (unrolled; weights sliced from the per-layer slab) ----
    for e in range(E_LAYERS):
        qkv = jnp.dot(h, ls_ref[e, 0:32, 0:96],
                      preferred_element_type=f32) + ls_ref[e, 160:161, 0:96]
        q3 = qkv[:, 0:D_MODEL].reshape(B, L, D_MODEL)
        k3 = qkv[:, D_MODEL:2 * D_MODEL].reshape(B, L, D_MODEL)
        v3 = qkv[:, 2 * D_MODEL:3 * D_MODEL].reshape(B, L, D_MODEL)

        # TODO(synk): head-batched dot_general restructure skipped (see header).
        heads = []
        for hh in range(N_HEADS):
            lo, hi = hh * D_HEAD, (hh + 1) * D_HEAD
            qh, kh, vh = q3[..., lo:hi], k3[..., lo:hi], v3[..., lo:hi]
            s = jnp.einsum('bid,bjd->bij', qh, kh,
                           preferred_element_type=f32) * scale
            s = s - jnp.max(s, axis=-1, keepdims=True)
            p = jnp.exp(s)
            p = p * pl.reciprocal(jnp.sum(p, axis=-1, keepdims=True),
                                  approx=True)                    # softmax
            heads.append(jnp.einsum('bij,bjd->bid', p, vh,
                                    preferred_element_type=f32))
        attn = jnp.concatenate(heads, axis=-1).reshape(B * L, D_MODEL)
        attn = (jnp.dot(attn, ls_ref[e, 128:160, 0:32],
                        preferred_element_type=f32) + ls_ref[e, 161:162, 0:32])

        x1 = _layer_norm(h + attn,
                         ls_ref[e, 164:165, 0:32], ls_ref[e, 165:166, 0:32])
        ffn = _gelu_exact(jnp.dot(x1, ls_ref[e, 32:64, 0:64],
                                  preferred_element_type=f32)
                          + ls_ref[e, 162:163, 0:64])
        y = (jnp.dot(ffn, ls_ref[e, 64:128, 0:32],
                     preferred_element_type=f32) + ls_ref[e, 163:164, 0:32])
        h = _layer_norm(x1 + y,
                        ls_ref[e, 166:167, 0:32], ls_ref[e, 167:168, 0:32])

    # ---- final encoder norm + GELU ----
    a = _gelu_exact(_layer_norm(h, hs_ref[162:163, 0:32],
                                hs_ref[163:164, 0:32]))           # (B*L, D)

    # ---- classification head: position-selective projection, 3 matmuls ----
    # G[b*L+l', l*N+n] = sum_d a[b*L+l', d] * Wp[l*D+d, n]
    g = jnp.dot(a, hs_ref[32:64, 0:64], preferred_element_type=f32)    # (B*L, L*N)
    g = g * hs_ref[64:96, 0:64]                                        # keep l' == l
    t = jnp.dot(g, hs_ref[96:160, 0:NUM_CLASS],
                preferred_element_type=f32)                            # (B*L, N)
    out = (jnp.dot(hs_ref[160:162, 0:32], t,                           # sum over l per b
                   preferred_element_type=f32) + hs_ref[164:165, 0:NUM_CLASS])
    o_ref[...] = out


# ---------------- full forward (one gridless pallas_call) ----------------
@jax.jit
def forward(params, x_enc):
    # Host-side (XLA) prep: circular pad, fuse the 3 conv taps along features,
    # append a one-hot(position) block so the PE rides in the embedding matmul.
    x_pad = jnp.concatenate([x_enc[:, -1:, :], x_enc, x_enc[:, :1, :]], axis=1)
    taps = jnp.concatenate([x_pad[:, k:k + L, :] for k in range(3)], axis=-1)
    onehot = jnp.broadcast_to(jnp.eye(L, dtype=jnp.float32), (B, L, L))
    x_aug = jnp.concatenate([taps, onehot], axis=-1).reshape(B * L, EMB_IN)
    x_aug = jnp.pad(x_aug, ((0, 0), (0, D_MODEL - EMB_IN)))       # (B*L, 32)

    vmem = pl.BlockSpec(memory_space=pltpu.MemorySpace.VMEM)
    return pl.pallas_call(
        fused_kernel,
        out_shape=jax.ShapeDtypeStruct((B, NUM_CLASS), jnp.float32),
        in_specs=[vmem, vmem, vmem],
        out_specs=vmem,
    )(x_aug, params["layer_slab"], params["head_slab"])


# ---------------- parameters (deterministic, synthetic, pre-packed) ----------------
def init_params(key):
    ks = iter(jax.random.split(key, 32))
    nrm = lambda shape, s=0.1: s * jax.random.normal(next(ks), shape, jnp.float32)

    # Embedding weight: rows 0:12 = fused conv taps (tap-major, W[:, c, k].T),
    # rows 12:28 = sinusoidal PE (picked up by the one-hot position block).
    conv_w = nrm((3 * C_IN, D_MODEL), 0.3)
    pos = jnp.arange(L, dtype=jnp.float32)[:, None]
    div = jnp.exp(jnp.arange(0, D_MODEL, 2, dtype=jnp.float32)
                  * (-math.log(10000.0) / D_MODEL))
    pe = jnp.zeros((L, D_MODEL), jnp.float32)
    pe = pe.at[:, 0::2].set(jnp.sin(pos * div))
    pe = pe.at[:, 1::2].set(jnp.cos(pos * div))
    w_emb = jnp.zeros((D_MODEL, D_MODEL), jnp.float32)
    w_emb = w_emb.at[0:3 * C_IN, :].set(conv_w)
    w_emb = w_emb.at[3 * C_IN:3 * C_IN + L, :].set(pe)

    # ---- per-layer slab (all weights pre-transposed to (in, out)) ----
    layers = []
    for _ in range(E_LAYERS):
        wqkv = nrm((D_MODEL, 3 * D_MODEL))          # [Wq | Wk | Wv] fused
        w1 = nrm((D_MODEL, D_FF))                   # conv1 (k=1) == Linear
        w2 = nrm((D_FF, D_MODEL))                   # conv2 (k=1) == Linear
        wo = nrm((D_MODEL, D_MODEL))
        bqkv = nrm((3 * D_MODEL,), 0.02)
        bo = nrm((D_MODEL,), 0.02)
        b1 = nrm((D_FF,), 0.02)
        b2 = nrm((D_MODEL,), 0.02)
        g1 = jnp.ones((D_MODEL,), jnp.float32)
        be1 = jnp.zeros((D_MODEL,), jnp.float32)
        g2 = jnp.ones((D_MODEL,), jnp.float32)
        be2 = jnp.zeros((D_MODEL,), jnp.float32)

        slab = jnp.zeros((LS_ROWS, 96), jnp.float32)
        slab = slab.at[0:32, 0:96].set(wqkv)
        slab = slab.at[32:64, 0:64].set(w1)
        slab = slab.at[64:128, 0:32].set(w2)
        slab = slab.at[128:160, 0:32].set(wo)
        slab = slab.at[160, 0:96].set(bqkv)
        slab = slab.at[161, 0:32].set(bo)
        slab = slab.at[162, 0:64].set(b1)
        slab = slab.at[163, 0:32].set(b2)
        slab = slab.at[164, 0:32].set(g1)
        slab = slab.at[165, 0:32].set(be1)
        slab = slab.at[166, 0:32].set(g2)
        slab = slab.at[167, 0:32].set(be2)
        layers.append(slab)
    layer_slab = jnp.stack(layers, axis=0)          # (E, 168, 96)

    # ---- head slab: projection (as (L, D, N) -> (D, L*N)), selectors, norms ----
    wp3 = nrm((L, D_MODEL, NUM_CLASS), 0.05)        # wp3[l,d,n] == Wproj[n, l*D+d]
    w1s = jnp.transpose(wp3, (1, 0, 2)).reshape(D_MODEL, L * NUM_CLASS)
    proj_b = nrm((NUM_CLASS,), 0.02)
    norm_g = jnp.ones((D_MODEL,), jnp.float32)
    norm_b = jnp.zeros((D_MODEL,), jnp.float32)

    r = jnp.arange(B * L)
    c = jnp.arange(L * NUM_CLASS)
    msel = ((r[:, None] % L) == (c[None, :] // NUM_CLASS)).astype(jnp.float32)
    csel = ((c[:, None] % NUM_CLASS)
            == jnp.arange(NUM_CLASS)[None, :]).astype(jnp.float32)
    rselT = (jnp.arange(B)[:, None] == (r[None, :] // L)).astype(jnp.float32)

    hs = jnp.zeros((HS_ROWS, 64), jnp.float32)
    hs = hs.at[0:32, 0:32].set(w_emb)
    hs = hs.at[32:64, 0:64].set(w1s)
    hs = hs.at[64:96, 0:64].set(msel)
    hs = hs.at[96:160, 0:NUM_CLASS].set(csel)
    hs = hs.at[160:162, 0:32].set(rselT)
    hs = hs.at[162, 0:32].set(norm_g)
    hs = hs.at[163, 0:32].set(norm_b)
    hs = hs.at[164, 0:NUM_CLASS].set(proj_b)

    return {"layer_slab": layer_slab, "head_slab": hs}


if __name__ == "__main__":
    key = jax.random.PRNGKey(0)
    pkey, xkey = jax.random.split(key)
    params = init_params(pkey)
    x_enc = jax.random.normal(xkey, (B, L, C_IN), jnp.float32)

    out = forward(params, x_enc)
    out = jax.block_until_ready(out)
    assert out.shape == (B, NUM_CLASS), out.shape
    assert bool(jnp.all(jnp.isfinite(out)))
    print("KERNEL_OK")
</pallas_src>

<mosaic_0001>
module attributes {stable_mosaic.version = 11 : i64} {
  func.func @fused_kernel(%arg0: memref<32x32xf32, #tpu.memory_space<vmem>>, %arg1: memref<2x168x96xf32, #tpu.memory_space<vmem>>, %arg2: memref<168x64xf32, #tpu.memory_space<vmem>>, %arg3: memref<2x4xf32, #tpu.memory_space<vmem>>) attributes {dimension_semantics = [], scalar_prefetch = 0 : i64, scratch_operands = 0 : i64, tpu.core_type = #tpu.core_type<tc>} {
    %c0 = arith.constant 0 : index
    %c0_0 = arith.constant 0 : index
    %0 = vector.load %arg0[%c0, %c0_0] : memref<32x32xf32, #tpu.memory_space<vmem>>, vector<32x32xf32>
    %c0_1 = arith.constant 0 : index
    %c0_2 = arith.constant 0 : index
    %1 = vector.load %arg2[%c0_1, %c0_2] : memref<168x64xf32, #tpu.memory_space<vmem>>, vector<32x32xf32>
    %cst = arith.constant dense<0.000000e+00> : vector<32x32xf32>
    %2 = tpu.matmul %0, %1, %cst {dimension_numbers = #tpu.dot_dimension_numbers<[1], [0], [0], [1], [0, 0, 1, 1], [], []>} : vector<32x32xf32>, vector<32x32xf32>, vector<32x32xf32> -> vector<32x32xf32>
    %c0_3 = arith.constant 0 : index
    %c0_4 = arith.constant 0 : index
    %c0_5 = arith.constant 0 : index
    %3 = vector.load %arg1[%c0_3, %c0_4, %c0_5] : memref<2x168x96xf32, #tpu.memory_space<vmem>>, vector<1x32x96xf32>
    %4 = vector.shape_cast %3 : vector<1x32x96xf32> to vector<32x96xf32>
    %cst_6 = arith.constant dense<0.000000e+00> : vector<32x96xf32>
    %5 = tpu.matmul %2, %4, %cst_6 {dimension_numbers = #tpu.dot_dimension_numbers<[1], [0], [0], [1], [0, 0, 1, 1], [], []>} : vector<32x32xf32>, vector<32x96xf32>, vector<32x96xf32> -> vector<32x96xf32>
    %c0_7 = arith.constant 0 : index
    %c160 = arith.constant 160 : index
    %c0_8 = arith.constant 0 : index
    %6 = vector.load %arg1[%c0_7, %c160, %c0_8] : memref<2x168x96xf32, #tpu.memory_space<vmem>>, vector<1x1x96xf32>
    %7 = vector.shape_cast %6 : vector<1x1x96xf32> to vector<1x96xf32>
    %8 = vector.broadcast %7 : vector<1x96xf32> to vector<32x96xf32>
    %9 = arith.addf %5, %8 : vector<32x96xf32>
    %10 = vector.extract_strided_slice %9 {offsets = [0, 0], sizes = [32, 32], strides = [1, 1]} : vector<32x96xf32> to vector<32x32xf32>
    %11 = vector.shape_cast %10 : vector<32x32xf32> to vector<2x16x32xf32>
    %12 = vector.extract_strided_slice %9 {offsets = [0, 32], sizes = [32, 32], strides = [1, 1]} : vector<32x96xf32> to vector<32x32xf32>
    %13 = vector.shape_cast %12 : vector<32x32xf32> to vector<2x16x32xf32>
    %14 = vector.extract_strided_slice %9 {offsets = [0, 64], sizes = [32, 32], strides = [1, 1]} : vector<32x96xf32> to vector<32x32xf32>
    %15 = vector.shape_cast %14 : vector<32x32xf32> to vector<2x16x32xf32>
    %16 = vector.extract_strided_slice %11 {offsets = [0, 0, 0], sizes = [2, 16, 8], strides = [1, 1, 1]} : vector<2x16x32xf32> to vector<2x16x8xf32>
    %17 = vector.extract_strided_slice %13 {offsets = [0, 0, 0], sizes = [2, 16, 8], strides = [1, 1, 1]} : vector<2x16x32xf32> to vector<2x16x8xf32>
    %18 = vector.extract_strided_slice %15 {offsets = [0, 0, 0], sizes = [2, 16, 8], strides = [1, 1, 1]} : vector<2x16x32xf32> to vector<2x16x8xf32>
    "tpu.trace_start"() <{level = 10 : i32, message = "bid,bjd->bij"}> : () -> ()
    %cst_9 = arith.constant dense<0.000000e+00> : vector<2x16x16xf32>
    %19 = tpu.matmul %16, %17, %cst_9 {dimension_numbers = #tpu.dot_dimension_numbers<[2], [2], [1], [1], [0, 0, 0, 1, 1, 1], [0], [0]>} : vector<2x16x8xf32>, vector<2x16x8xf32>, vector<2x16x16xf32> -> vector<2x16x16xf32>
    "tpu.trace_stop"() : () -> ()
    %cst_10 = arith.constant 0.353553385 : f32
    %20 = vector.broadcast %cst_10 : f32 to vector<2x16x16xf32>
    %21 = arith.mulf %19, %20 : vector<2x16x16xf32>
    %cst_11 = arith.constant dense<0xFF800000> : vector<2x16xf32>
    %22 = vector.multi_reduction <maximumf>, %21, %cst_11 [2] : vector<2x16x16xf32> to vector<2x16xf32>
    %23 = vector.shape_cast %22 : vector<2x16xf32> to vector<2x16x1xf32>
    %24 = vector.broadcast %23 : vector<2x16x1xf32> to vector<2x16x16xf32>
    %25 = arith.subf %21, %24 : vector<2x16x16xf32>
    %26 = math.exp %25 : vector<2x16x16xf32>
    %cst_12 = arith.constant dense<0.000000e+00> : vector<2x16xf32>
    %27 = vector.multi_reduction <add>, %26, %cst_12 [2] : vector<2x16x16xf32> to vector<2x16xf32>
    %28 = vector.shape_cast %27 : vector<2x16xf32> to vector<2x16x1xf32>
    %29 = tpu.reciprocal %28 {approx = true} : vector<2x16x1xf32> -> vector<2x16x1xf32>
    %30 = vector.broadcast %29 : vector<2x16x1xf32> to vector<2x16x16xf32>
    %31 = arith.mulf %26, %30 : vector<2x16x16xf32>
    "tpu.trace_start"() <{level = 10 : i32, message = "bij,bjd->bid"}> : () -> ()
    %cst_13 = arith.constant dense<0.000000e+00> : vector<2x16x8xf32>
    %32 = tpu.matmul %31, %18, %cst_13 {dimension_numbers = #tpu.dot_dimension_numbers<[2], [1], [1], [2], [0, 0, 0, 1, 1, 2], [0], [0]>} : vector<2x16x16xf32>, vector<2x16x8xf32>, vector<2x16x8xf32> -> vector<2x16x8xf32>
    "tpu.trace_stop"() : () -> ()
    %33 = vector.extract_strided_slice %11 {offsets = [0, 0, 8], sizes = [2, 16, 8], strides = [1, 1, 1]} : vector<2x16x32xf32> to vector<2x16x8xf32>
    %34 = vector.extract_strided_slice %13 {offsets = [0, 0, 8], sizes = [2, 16, 8], strides = [1, 1, 1]} : vector<2x16x32xf32> to vector<2x16x8xf32>
    %35 = vector.extract_strided_slice %15 {offsets = [0, 0, 8], sizes = [2, 16, 8], strides = [1, 1, 1]} : vector<2x16x32xf32> to vector<2x16x8xf32>
    "tpu.trace_start"() <{level = 10 : i32, message = "bid,bjd->bij"}> : () -> ()
    %cst_14 = arith.constant dense<0.000000e+00> : vector<2x16x16xf32>
    %36 = tpu.matmul %33, %34, %cst_14 {dimension_numbers = #tpu.dot_dimension_numbers<[2], [2], [1], [1], [0, 0, 0, 1, 1, 1], [0], [0]>} : vector<2x16x8xf32>, vector<2x16x8xf32>, vector<2x16x16xf32> -> vector<2x16x16xf32>
    "tpu.trace_stop"() : () -> ()
    %cst_15 = arith.constant 0.353553385 : f32
    %37 = vector.broadcast %cst_15 : f32 to vector<2x16x16xf32>
    %38 = arith.mulf %36, %37 : vector<2x16x16xf32>
    %cst_16 = arith.constant dense<0xFF800000> : vector<2x16xf32>
    %39 = vector.multi_reduction <maximumf>, %38, %cst_16 [2] : vector<2x16x16xf32> to vector<2x16xf32>
    %40 = vector.shape_cast %39 : vector<2x16xf32> to vector<2x16x1xf32>
    %41 = vector.broadcast %40 : vector<2x16x1xf32> to vector<2x16x16xf32>
    %42 = arith.subf %38, %41 : vector<2x16x16xf32>
    %43 = math.exp %42 : vector<2x16x16xf32>
    %cst_17 = arith.constant dense<0.000000e+00> : vector<2x16xf32>
    %44 = vector.multi_reduction <add>, %43, %cst_17 [2] : vector<2x16x16xf32> to vector<2x16xf32>
    %45 = vector.shape_cast %44 : vector<2x16xf32> to vector<2x16x1xf32>
    %46 = tpu.reciprocal %45 {approx = true} : vector<2x16x1xf32> -> vector<2x16x1xf32>
    %47 = vector.broadcast %46 : vector<2x16x1xf32> to vector<2x16x16xf32>
    %48 = arith.mulf %43, %47 : vector<2x16x16xf32>
    "tpu.trace_start"() <{level = 10 : i32, message = "bij,bjd->bid"}> : () -> ()
    %cst_18 = arith.constant dense<0.000000e+00> : vector<2x16x8xf32>
    %49 = tpu.matmul %48, %35, %cst_18 {dimension_numbers = #tpu.dot_dimension_numbers<[2], [1], [1], [2], [0, 0, 0, 1, 1, 2], [0], [0]>} : vector<2x16x16xf32>, vector<2x16x8xf32>, vector<2x16x8xf32> -> vector<2x16x8xf32>
    "tpu.trace_stop"() : () -> ()
    %50 = vector.extract_strided_slice %11 {offsets = [0, 0, 16], sizes = [2, 16, 8], strides = [1, 1, 1]} : vector<2x16x32xf32> to vector<2x16x8xf32>
    %51 = vector.extract_strided_slice %13 {offsets = [0, 0, 16], sizes = [2, 16, 8], strides = [1, 1, 1]} : vector<2x16x32xf32> to vector<2x16x8xf32>
    %52 = vector.extract_strided_slice %15 {offsets = [0, 0, 16], sizes = [2, 16, 8], strides = [1, 1, 1]} : vector<2x16x32xf32> to vector<2x16x8xf32>
    "tpu.trace_start"() <{level = 10 : i32, message = "bid,bjd->bij"}> : () -> ()
    %cst_19 = arith.constant dense<0.000000e+00> : vector<2x16x16xf32>
    %53 = tpu.matmul %50, %51, %cst_19 {dimension_numbers = #tpu.dot_dimension_numbers<[2], [2], [1], [1], [0, 0, 0, 1, 1, 1], [0], [0]>} : vector<2x16x8xf32>, vector<2x16x8xf32>, vector<2x16x16xf32> -> vector<2x16x16xf32>
    "tpu.trace_stop"() : () -> ()
    %cst_20 = arith.constant 0.353553385 : f32
    %54 = vector.broadcast %cst_20 : f32 to vector<2x16x16xf32>
    %55 = arith.mulf %53, %54 : vector<2x16x16xf32>
    %cst_21 = arith.constant dense<0xFF800000> : vector<2x16xf32>
    %56 = vector.multi_reduction <maximumf>, %55, %cst_21 [2] : vector<2x16x16xf32> to vector<2x16xf32>
    %57 = vector.shape_cast %56 : vector<2x16xf32> to vector<2x16x1xf32>
    %58 = vector.broadcast %57 : vector<2x16x1xf32> to vector<2x16x16xf32>
    %59 = arith.subf %55, %58 : vector<2x16x16xf32>
    %60 = math.exp %59 : vector<2x16x16xf32>
    %cst_22 = arith.constant dense<0.000000e+00> : vector<2x16xf32>
    %61 = vector.multi_reduction <add>, %60, %cst_22 [2] : vector<2x16x16xf32> to vector<2x16xf32>
    %62 = vector.shape_cast %61 : vector<2x16xf32> to vector<2x16x1xf32>
    %63 = tpu.reciprocal %62 {approx = true} : vector<2x16x1xf32> -> vector<2x16x1xf32>
    %64 = vector.broadcast %63 : vector<2x16x1xf32> to vector<2x16x16xf32>
    %65 = arith.mulf %60, %64 : vector<2x16x16xf32>
    "tpu.trace_start"() <{level = 10 : i32, message = "bij,bjd->bid"}> : () -> ()
    %cst_23 = arith.constant dense<0.000000e+00> : vector<2x16x8xf32>
    %66 = tpu.matmul %65, %52, %cst_23 {dimension_numbers = #tpu.dot_dimension_numbers<[2], [1], [1], [2], [0, 0, 0, 1, 1, 2], [0], [0]>} : vector<2x16x16xf32>, vector<2x16x8xf32>, vector<2x16x8xf32> -> vector<2x16x8xf32>
    "tpu.trace_stop"() : () -> ()
    %67 = vector.extract_strided_slice %11 {offsets = [0, 0, 24], sizes = [2, 16, 8], strides = [1, 1, 1]} : vector<2x16x32xf32> to vector<2x16x8xf32>
    %68 = vector.extract_strided_slice %13 {offsets = [0, 0, 24], sizes = [2, 16, 8], strides = [1, 1, 1]} : vector<2x16x32xf32> to vector<2x16x8xf32>
    %69 = vector.extract_strided_slice %15 {offsets = [0, 0, 24], sizes = [2, 16, 8], strides = [1, 1, 1]} : vector<2x16x32xf32> to vector<2x16x8xf32>
    "tpu.trace_start"() <{level = 10 : i32, message = "bid,bjd->bij"}> : () -> ()
    %cst_24 = arith.constant dense<0.000000e+00> : vector<2x16x16xf32>
    %70 = tpu.matmul %67, %68, %cst_24 {dimension_numbers = #tpu.dot_dimension_numbers<[2], [2], [1], [1], [0, 0, 0, 1, 1, 1], [0], [0]>} : vector<2x16x8xf32>, vector<2x16x8xf32>, vector<2x16x16xf32> -> vector<2x16x16xf32>
    "tpu.trace_stop"() : () -> ()
    %cst_25 = arith.constant 0.353553385 : f32
    %71 = vector.broadcast %cst_25 : f32 to vector<2x16x16xf32>
    %72 = arith.mulf %70, %71 : vector<2x16x16xf32>
    %cst_26 = arith.constant dense<0xFF800000> : vector<2x16xf32>
    %73 = vector.multi_reduction <maximumf>, %72, %cst_26 [2] : vector<2x16x16xf32> to vector<2x16xf32>
    %74 = vector.shape_cast %73 : vector<2x16xf32> to vector<2x16x1xf32>
    %75 = vector.broadcast %74 : vector<2x16x1xf32> to vector<2x16x16xf32>
    %76 = arith.subf %72, %75 : vector<2x16x16xf32>
    %77 = math.exp %76 : vector<2x16x16xf32>
    %cst_27 = arith.constant dense<0.000000e+00> : vector<2x16xf32>
    %78 = vector.multi_reduction <add>, %77, %cst_27 [2] : vector<2x16x16xf32> to vector<2x16xf32>
    %79 = vector.shape_cast %78 : vector<2x16xf32> to vector<2x16x1xf32>
    %80 = tpu.reciprocal %79 {approx = true} : vector<2x16x1xf32> -> vector<2x16x1xf32>
    %81 = vector.broadcast %80 : vector<2x16x1xf32> to vector<2x16x16xf32>
    %82 = arith.mulf %77, %81 : vector<2x16x16xf32>
    "tpu.trace_start"() <{level = 10 : i32, message = "bij,bjd->bid"}> : () -> ()
    %cst_28 = arith.constant dense<0.000000e+00> : vector<2x16x8xf32>
    %83 = tpu.matmul %82, %69, %cst_28 {dimension_numbers = #tpu.dot_dimension_numbers<[2], [1], [1], [2], [0, 0, 0, 1, 1, 2], [0], [0]>} : vector<2x16x16xf32>, vector<2x16x8xf32>, vector<2x16x8xf32> -> vector<2x16x8xf32>
    "tpu.trace_stop"() : () -> ()
    %84 = tpu.concatenate %32, %49, %66, %83 in 2 : vector<2x16x8xf32>, vector<2x16x8xf32>, vector<2x16x8xf32>, vector<2x16x8xf32> -> vector<2x16x32xf32>
    %85 = vector.shape_cast %84 : vector<2x16x32xf32> to vector<32x32xf32>
    %c0_29 = arith.constant 0 : index
    %c128 = arith.constant 128 : index
    %c0_30 = arith.constant 0 : index
    %86 = vector.load %arg1[%c0_29, %c128, %c0_30] : memref<2x168x96xf32, #tpu.memory_space<vmem>>, vector<1x32x32xf32>
    %87 = vector.shape_cast %86 : vector<1x32x32xf32> to vector<32x32xf32>
    %cst_31 = arith.constant dense<0.000000e+00> : vector<32x32xf32>
    %88 = tpu.matmul %85, %87, %cst_31 {dimension_numbers = #tpu.dot_dimension_numbers<[1], [0], [0], [1], [0, 0, 1, 1], [], []>} : vector<32x32xf32>, vector<32x32xf32>, vector<32x32xf32> -> vector<32x32xf32>
    %c0_32 = arith.constant 0 : index
    %c161 = arith.constant 161 : index
    %c0_33 = arith.constant 0 : index
    %89 = vector.load %arg1[%c0_32, %c161, %c0_33] : memref<2x168x96xf32, #tpu.memory_space<vmem>>, vector<1x1x32xf32>
    %90 = vector.shape_cast %89 : vector<1x1x32xf32> to vector<1x32xf32>
    %91 = vector.broadcast %90 : vector<1x32xf32> to vector<32x32xf32>
    %92 = arith.addf %88, %91 : vector<32x32xf32>
    %93 = arith.addf %2, %92 : vector<32x32xf32>
    %c0_34 = arith.constant 0 : index
    %c164 = arith.constant 164 : index
    %c0_35 = arith.constant 0 : index
    %94 = vector.load %arg1[%c0_34, %c164, %c0_35] : memref<2x168x96xf32, #tpu.memory_space<vmem>>, vector<1x1x32xf32>
    %95 = vector.shape_cast %94 : vector<1x1x32xf32> to vector<1x32xf32>
    %c0_36 = arith.constant 0 : index
    %c165 = arith.constant 165 : index
    %c0_37 = arith.constant 0 : index
    %96 = vector.load %arg1[%c0_36, %c165, %c0_37] : memref<2x168x96xf32, #tpu.memory_space<vmem>>, vector<1x1x32xf32>
    %97 = vector.shape_cast %96 : vector<1x1x32xf32> to vector<1x32xf32>
    %cst_38 = arith.constant dense<0.000000e+00> : vector<32xf32>
    %98 = vector.multi_reduction <add>, %93, %cst_38 [1] : vector<32x32xf32> to vector<32xf32>
    %99 = vector.shape_cast %98 : vector<32xf32> to vector<32x1xf32>
    %cst_39 = arith.constant 3.200000e+01 : f32
    %100 = vector.broadcast %cst_39 : f32 to vector<32x1xf32>
    %101 = arith.divf %99, %100 : vector<32x1xf32>
    %102 = vector.broadcast %101 : vector<32x1xf32> to vector<32x32xf32>
    %103 = arith.subf %93, %102 : vector<32x32xf32>
    %104 = arith.mulf %103, %103 : vector<32x32xf32>
    %cst_40 = arith.constant dense<0.000000e+00> : vector<32xf32>
    %105 = vector.multi_reduction <add>, %104, %cst_40 [1] : vector<32x32xf32> to vector<32xf32>
    %106 = vector.shape_cast %105 : vector<32xf32> to vector<32x1xf32>
    %cst_41 = arith.constant 3.200000e+01 : f32
    %107 = vector.broadcast %cst_41 : f32 to vector<32x1xf32>
    %108 = arith.divf %106, %107 : vector<32x1xf32>
    %109 = vector.broadcast %101 : vector<32x1xf32> to vector<32x32xf32>
    %110 = arith.subf %93, %109 : vector<32x32xf32>
    %cst_42 = arith.constant 9.99999974E-6 : f32
    %111 = vector.broadcast %cst_42 : f32 to vector<32x1xf32>
    %112 = arith.addf %108, %111 : vector<32x1xf32>
    %113 = math.rsqrt %112 : vector<32x1xf32>
    %114 = vector.broadcast %113 : vector<32x1xf32> to vector<32x32xf32>
    %115 = arith.mulf %110, %114 : vector<32x32xf32>
    %116 = vector.broadcast %95 : vector<1x32xf32> to vector<32x32xf32>
    %117 = arith.mulf %115, %116 : vector<32x32xf32>
    %118 = vector.broadcast %97 : vector<1x32xf32> to vector<32x32xf32>
    %119 = arith.addf %117, %118 : vector<32x32xf32>
    %c0_43 = arith.constant 0 : index
    %c32 = arith.constant 32 : index
    %c0_44 = arith.constant 0 : index
    %120 = vector.load %arg1[%c0_43, %c32, %c0_44] : memref<2x168x96xf32, #tpu.memory_space<vmem>>, vector<1x32x64xf32>
    %121 = vector.shape_cast %120 : vector<1x32x64xf32> to vector<32x64xf32>
    %cst_45 = arith.constant dense<0.000000e+00> : vector<32x64xf32>
    %122 = tpu.matmul %119, %121, %cst_45 {dimension_numbers = #tpu.dot_dimension_numbers<[1], [0], [0], [1], [0, 0, 1, 1], [], []>} : vector<32x32xf32>, vector<32x64xf32>, vector<32x64xf32> -> vector<32x64xf32>
    %c0_46 = arith.constant 0 : index
    %c162 = arith.constant 162 : index
    %c0_47 = arith.constant 0 : index
    %123 = vector.load %arg1[%c0_46, %c162, %c0_47] : memref<2x168x96xf32, #tpu.memory_space<vmem>>, vector<1x1x64xf32>
    %124 = vector.shape_cast %123 : vector<1x1x64xf32> to vector<1x64xf32>
    %125 = vector.broadcast %124 : vector<1x64xf32> to vector<32x64xf32>
    %126 = arith.addf %122, %125 : vector<32x64xf32>
    %cst_48 = arith.constant 5.000000e-01 : f32
    %127 = vector.broadcast %cst_48 : f32 to vector<32x64xf32>
    %128 = arith.mulf %127, %126 : vector<32x64xf32>
    %cst_49 = arith.constant 0.707106769 : f32
    %129 = vector.broadcast %cst_49 : f32 to vector<32x64xf32>
    %130 = arith.mulf %126, %129 : vector<32x64xf32>
    %131 = math.erf %130 : vector<32x64xf32>
    %cst_50 = arith.constant 1.000000e+00 : f32
    %132 = vector.broadcast %cst_50 : f32 to vector<32x64xf32>
    %133 = arith.addf %132, %131 : vector<32x64xf32>
    %134 = arith.mulf %128, %133 : vector<32x64xf32>
    %c0_51 = arith.constant 0 : index
    %c64 = arith.constant 64 : index
    %c0_52 = arith.constant 0 : index
    %135 = vector.load %arg1[%c0_51, %c64, %c0_52] : memref<2x168x96xf32, #tpu.memory_space<vmem>>, vector<1x64x32xf32>
    %136 = vector.shape_cast %135 : vector<1x64x32xf32> to vector<64x32xf32>
    %cst_53 = arith.constant dense<0.000000e+00> : vector<32x32xf32>
    %137 = tpu.matmul %134, %136, %cst_53 {dimension_numbers = #tpu.dot_dimension_numbers<[1], [0], [0], [1], [0, 0, 1, 1], [], []>} : vector<32x64xf32>, vector<64x32xf32>, vector<32x32xf32> -> vector<32x32xf32>
    %c0_54 = arith.constant 0 : index
    %c163 = arith.constant 163 : index
    %c0_55 = arith.constant 0 : index
    %138 = vector.load %arg1[%c0_54, %c163, %c0_55] : memref<2x168x96xf32, #tpu.memory_space<vmem>>, vector<1x1x32xf32>
    %139 = vector.shape_cast %138 : vector<1x1x32xf32> to vector<1x32xf32>
    %140 = vector.broadcast %139 : vector<1x32xf32> to vector<32x32xf32>
    %141 = arith.addf %137, %140 : vector<32x32xf32>
    %142 = arith.addf %119, %141 : vector<32x32xf32>
    %c0_56 = arith.constant 0 : index
    %c166 = arith.constant 166 : index
    %c0_57 = arith.constant 0 : index
    %143 = vector.load %arg1[%c0_56, %c166, %c0_57] : memref<2x168x96xf32, #tpu.memory_space<vmem>>, vector<1x1x32xf32>
    %144 = vector.shape_cast %143 : vector<1x1x32xf32> to vector<1x32xf32>
    %c0_58 = arith.constant 0 : index
    %c167 = arith.constant 167 : index
    %c0_59 = arith.constant 0 : index
    %145 = vector.load %arg1[%c0_58, %c167, %c0_59] : memref<2x168x96xf32, #tpu.memory_space<vmem>>, vector<1x1x32xf32>
    %146 = vector.shape_cast %145 : vector<1x1x32xf32> to vector<1x32xf32>
    %cst_60 = arith.constant dense<0.000000e+00> : vector<32xf32>
    %147 = vector.multi_reduction <add>, %142, %cst_60 [1] : vector<32x32xf32> to vector<32xf32>
    %148 = vector.shape_cast %147 : vector<32xf32> to vector<32x1xf32>
    %cst_61 = arith.constant 3.200000e+01 : f32
    %149 = vector.broadcast %cst_61 : f32 to vector<32x1xf32>
    %150 = arith.divf %148, %149 : vector<32x1xf32>
    %151 = vector.broadcast %150 : vector<32x1xf32> to vector<32x32xf32>
    %152 = arith.subf %142, %151 : vector<32x32xf32>
    %153 = arith.mulf %152, %152 : vector<32x32xf32>
    %cst_62 = arith.constant dense<0.000000e+00> : vector<32xf32>
    %154 = vector.multi_reduction <add>, %153, %cst_62 [1] : vector<32x32xf32> to vector<32xf32>
    %155 = vector.shape_cast %154 : vector<32xf32> to vector<32x1xf32>
    %cst_63 = arith.constant 3.200000e+01 : f32
    %156 = vector.broadcast %cst_63 : f32 to vector<32x1xf32>
    %157 = arith.divf %155, %156 : vector<32x1xf32>
    %158 = vector.broadcast %150 : vector<32x1xf32> to vector<32x32xf32>
    %159 = arith.subf %142, %158 : vector<32x32xf32>
    %cst_64 = arith.constant 9.99999974E-6 : f32
    %160 = vector.broadcast %cst_64 : f32 to vector<32x1xf32>
    %161 = arith.addf %157, %160 : vector<32x1xf32>
    %162 = math.rsqrt %161 : vector<32x1xf32>
    %163 = vector.broadcast %162 : vector<32x1xf32> to vector<32x32xf32>
    %164 = arith.mulf %159, %163 : vector<32x32xf32>
    %165 = vector.broadcast %144 : vector<1x32xf32> to vector<32x32xf32>
    %166 = arith.mulf %164, %165 : vector<32x32xf32>
    %167 = vector.broadcast %146 : vector<1x32xf32> to vector<32x32xf32>
    %168 = arith.addf %166, %167 : vector<32x32xf32>
    %c1 = arith.constant 1 : index
    %c0_65 = arith.constant 0 : index
    %c0_66 = arith.constant 0 : index
    %169 = vector.load %arg1[%c1, %c0_65, %c0_66] : memref<2x168x96xf32, #tpu.memory_space<vmem>>, vector<1x32x96xf32>
    %170 = vector.shape_cast %169 : vector<1x32x96xf32> to vector<32x96xf32>
    %cst_67 = arith.constant dense<0.000000e+00> : vector<32x96xf32>
    %171 = tpu.matmul %168, %170, %cst_67 {dimension_numbers = #tpu.dot_dimension_numbers<[1], [0], [0], [1], [0, 0, 1, 1], [], []>} : vector<32x32xf32>, vector<32x96xf32>, vector<32x96xf32> -> vector<32x96xf32>
    %c1_68 = arith.constant 1 : index
    %c160_69 = arith.constant 160 : index
    %c0_70 = arith.constant 0 : index
    %172 = vector.load %arg1[%c1_68, %c160_69, %c0_70] : memref<2x168x96xf32, #tpu.memory_space<vmem>>, vector<1x1x96xf32>
    %173 = vector.shape_cast %172 : vector<1x1x96xf32> to vector<1x96xf32>
    %174 = vector.broadcast %173 : vector<1x96xf32> to vector<32x96xf32>
    %175 = arith.addf %171, %174 : vector<32x96xf32>
    %176 = vector.extract_strided_slice %175 {offsets = [0, 0], sizes = [32, 32], strides = [1, 1]} : vector<32x96xf32> to vector<32x32xf32>
    %177 = vector.shape_cast %176 : vector<32x32xf32> to vector<2x16x32xf32>
    %178 = vector.extract_strided_slice %175 {offsets = [0, 32], sizes = [32, 32], strides = [1, 1]} : vector<32x96xf32> to vector<32x32xf32>
    %179 = vector.shape_cast %178 : vector<32x32xf32> to vector<2x16x32xf32>
    %180 = vector.extract_strided_slice %175 {offsets = [0, 64], sizes = [32, 32], strides = [1, 1]} : vector<32x96xf32> to vector<32x32xf32>
    %181 = vector.shape_cast %180 : vector<32x32xf32> to vector<2x16x32xf32>
    %182 = vector.extract_strided_slice %177 {offsets = [0, 0, 0], sizes = [2, 16, 8], strides = [1, 1, 1]} : vector<2x16x32xf32> to vector<2x16x8xf32>
    %183 = vector.extract_strided_slice %179 {offsets = [0, 0, 0], sizes = [2, 16, 8], strides = [1, 1, 1]} : vector<2x16x32xf32> to vector<2x16x8xf32>
    %184 = vector.extract_strided_slice %181 {offsets = [0, 0, 0], sizes = [2, 16, 8], strides = [1, 1, 1]} : vector<2x16x32xf32> to vector<2x16x8xf32>
    "tpu.trace_start"() <{level = 10 : i32, message = "bid,bjd->bij"}> : () -> ()
    %cst_71 = arith.constant dense<0.000000e+00> : vector<2x16x16xf32>
    %185 = tpu.matmul %182, %183, %cst_71 {dimension_numbers = #tpu.dot_dimension_numbers<[2], [2], [1], [1], [0, 0, 0, 1, 1, 1], [0], [0]>} : vector<2x16x8xf32>, vector<2x16x8xf32>, vector<2x16x16xf32> -> vector<2x16x16xf32>
    "tpu.trace_stop"() : () -> ()
    %cst_72 = arith.constant 0.353553385 : f32
    %186 = vector.broadcast %cst_72 : f32 to vector<2x16x16xf32>
    %187 = arith.mulf %185, %186 : vector<2x16x16xf32>
    %cst_73 = arith.constant dense<0xFF800000> : vector<2x16xf32>
    %188 = vector.multi_reduction <maximumf>, %187, %cst_73 [2] : vector<2x16x16xf32> to vector<2x16xf32>
    %189 = vector.shape_cast %188 : vector<2x16xf32> to vector<2x16x1xf32>
    %190 = vector.broadcast %189 : vector<2x16x1xf32> to vector<2x16x16xf32>
    %191 = arith.subf %187, %190 : vector<2x16x16xf32>
    %192 = math.exp %191 : vector<2x16x16xf32>
    %cst_74 = arith.constant dense<0.000000e+00> : vector<2x16xf32>
    %193 = vector.multi_reduction <add>, %192, %cst_74 [2] : vector<2x16x16xf32> to vector<2x16xf32>
    %194 = vector.shape_cast %193 : vector<2x16xf32> to vector<2x16x1xf32>
    %195 = tpu.reciprocal %194 {approx = true} : vector<2x16x1xf32> -> vector<2x16x1xf32>
    %196 = vector.broadcast %195 : vector<2x16x1xf32> to vector<2x16x16xf32>
    %197 = arith.mulf %192, %196 : vector<2x16x16xf32>
    "tpu.trace_start"() <{level = 10 : i32, message = "bij,bjd->bid"}> : () -> ()
    %cst_75 = arith.constant dense<0.000000e+00> : vector<2x16x8xf32>
    %198 = tpu.matmul %197, %184, %cst_75 {dimension_numbers = #tpu.dot_dimension_numbers<[2], [1], [1], [2], [0, 0, 0, 1, 1, 2], [0], [0]>} : vector<2x16x16xf32>, vector<2x16x8xf32>, vector<2x16x8xf32> -> vector<2x16x8xf32>
    "tpu.trace_stop"() : () -> ()
    %199 = vector.extract_strided_slice %177 {offsets = [0, 0, 8], sizes = [2, 16, 8], strides = [1, 1, 1]} : vector<2x16x32xf32> to vector<2x16x8xf32>
    %200 = vector.extract_strided_slice %179 {offsets = [0, 0, 8], sizes = [2, 16, 8], strides = [1, 1, 1]} : vector<2x16x32xf32> to vector<2x16x8xf32>
    %201 = vector.extract_strided_slice %181 {offsets = [0, 0, 8], sizes = [2, 16, 8], strides = [1, 1, 1]} : vector<2x16x32xf32> to vector<2x16x8xf32>
    "tpu.trace_start"() <{level = 10 : i32, message = "bid,bjd->bij"}> : () -> ()
    %cst_76 = arith.constant dense<0.000000e+00> : vector<2x16x16xf32>
    %202 = tpu.matmul %199, %200, %cst_76 {dimension_numbers = #tpu.dot_dimension_numbers<[2], [2], [1], [1], [0, 0, 0, 1, 1, 1], [0], [0]>} : vector<2x16x8xf32>, vector<2x16x8xf32>, vector<2x16x16xf32> -> vector<2x16x16xf32>
    "tpu.trace_stop"() : () -> ()
    %cst_77 = arith.constant 0.353553385 : f32
    %203 = vector.broadcast %cst_77 : f32 to vector<2x16x16xf32>
    %204 = arith.mulf %202, %203 : vector<2x16x16xf32>
    %cst_78 = arith.constant dense<0xFF800000> : vector<2x16xf32>
    %205 = vector.multi_reduction <maximumf>, %204, %cst_78 [2] : vector<2x16x16xf32> to vector<2x16xf32>
    %206 = vector.shape_cast %205 : vector<2x16xf32> to vector<2x16x1xf32>
    %207 = vector.broadcast %206 : vector<2x16x1xf32> to vector<2x16x16xf32>
    %208 = arith.subf %204, %207 : vector<2x16x16xf32>
    %209 = math.exp %208 : vector<2x16x16xf32>
    %cst_79 = arith.constant dense<0.000000e+00> : vector<2x16xf32>
    %210 = vector.multi_reduction <add>, %209, %cst_79 [2] : vector<2x16x16xf32> to vector<2x16xf32>
    %211 = vector.shape_cast %210 : vector<2x16xf32> to vector<2x16x1xf32>
    %212 = tpu.reciprocal %211 {approx = true} : vector<2x16x1xf32> -> vector<2x16x1xf32>
    %213 = vector.broadcast %212 : vector<2x16x1xf32> to vector<2x16x16xf32>
    %214 = arith.mulf %209, %213 : vector<2x16x16xf32>
    "tpu.trace_start"() <{level = 10 : i32, message = "bij,bjd->bid"}> : () -> ()
    %cst_80 = arith.constant dense<0.000000e+00> : vector<2x16x8xf32>
    %215 = tpu.matmul %214, %201, %cst_80 {dimension_numbers = #tpu.dot_dimension_numbers<[2], [1], [1], [2], [0, 0, 0, 1, 1, 2], [0], [0]>} : vector<2x16x16xf32>, vector<2x16x8xf32>, vector<2x16x8xf32> -> vector<2x16x8xf32>
    "tpu.trace_stop"() : () -> ()
    %216 = vector.extract_strided_slice %177 {offsets = [0, 0, 16], sizes = [2, 16, 8], strides = [1, 1, 1]} : vector<2x16x32xf32> to vector<2x16x8xf32>
    %217 = vector.extract_strided_slice %179 {offsets = [0, 0, 16], sizes = [2, 16, 8], strides = [1, 1, 1]} : vector<2x16x32xf32> to vector<2x16x8xf32>
    %218 = vector.extract_strided_slice %181 {offsets = [0, 0, 16], sizes = [2, 16, 8], strides = [1, 1, 1]} : vector<2x16x32xf32> to vector<2x16x8xf32>
    "tpu.trace_start"() <{level = 10 : i32, message = "bid,bjd->bij"}> : () -> ()
    %cst_81 = arith.constant dense<0.000000e+00> : vector<2x16x16xf32>
    %219 = tpu.matmul %216, %217, %cst_81 {dimension_numbers = #tpu.dot_dimension_numbers<[2], [2], [1], [1], [0, 0, 0, 1, 1, 1], [0], [0]>} : vector<2x16x8xf32>, vector<2x16x8xf32>, vector<2x16x16xf32> -> vector<2x16x16xf32>
    "tpu.trace_stop"() : () -> ()
    %cst_82 = arith.constant 0.353553385 : f32
    %220 = vector.broadcast %cst_82 : f32 to vector<2x16x16xf32>
    %221 = arith.mulf %219, %220 : vector<2x16x16xf32>
    %cst_83 = arith.constant dense<0xFF800000> : vector<2x16xf32>
    %222 = vector.multi_reduction <maximumf>, %221, %cst_83 [2] : vector<2x16x16xf32> to vector<2x16xf32>
    %223 = vector.shape_cast %222 : vector<2x16xf32> to vector<2x16x1xf32>
    %224 = vector.broadcast %223 : vector<2x16x1xf32> to vector<2x16x16xf32>
    %225 = arith.subf %221, %224 : vector<2x16x16xf32>
    %226 = math.exp %225 : vector<2x16x16xf32>
    %cst_84 = arith.constant dense<0.000000e+00> : vector<2x16xf32>
    %227 = vector.multi_reduction <add>, %226, %cst_84 [2] : vector<2x16x16xf32> to vector<2x16xf32>
    %228 = vector.shape_cast %227 : vector<2x16xf32> to vector<2x16x1xf32>
    %229 = tpu.reciprocal %228 {approx = true} : vector<2x16x1xf32> -> vector<2x16x1xf32>
    %230 = vector.broadcast %229 : vector<2x16x1xf32> to vector<2x16x16xf32>
    %231 = arith.mulf %226, %230 : vector<2x16x16xf32>
    "tpu.trace_start"() <{level = 10 : i32, message = "bij,bjd->bid"}> : () -> ()
    %cst_85 = arith.constant dense<0.000000e+00> : vector<2x16x8xf32>
    %232 = tpu.matmul %231, %218, %cst_85 {dimension_numbers = #tpu.dot_dimension_numbers<[2], [1], [1], [2], [0, 0, 0, 1, 1, 2], [0], [0]>} : vector<2x16x16xf32>, vector<2x16x8xf32>, vector<2x16x8xf32> -> vector<2x16x8xf32>
    "tpu.trace_stop"() : () -> ()
    %233 = vector.extract_strided_slice %177 {offsets = [0, 0, 24], sizes = [2, 16, 8], strides = [1, 1, 1]} : vector<2x16x32xf32> to vector<2x16x8xf32>
    %234 = vector.extract_strided_slice %179 {offsets = [0, 0, 24], sizes = [2, 16, 8], strides = [1, 1, 1]} : vector<2x16x32xf32> to vector<2x16x8xf32>
    %235 = vector.extract_strided_slice %181 {offsets = [0, 0, 24], sizes = [2, 16, 8], strides = [1, 1, 1]} : vector<2x16x32xf32> to vector<2x16x8xf32>
    "tpu.trace_start"() <{level = 10 : i32, message = "bid,bjd->bij"}> : () -> ()
    %cst_86 = arith.constant dense<0.000000e+00> : vector<2x16x16xf32>
    %236 = tpu.matmul %233, %234, %cst_86 {dimension_numbers = #tpu.dot_dimension_numbers<[2], [2], [1], [1], [0, 0, 0, 1, 1, 1], [0], [0]>} : vector<2x16x8xf32>, vector<2x16x8xf32>, vector<2x16x16xf32> -> vector<2x16x16xf32>
    "tpu.trace_stop"() : () -> ()
    %cst_87 = arith.constant 0.353553385 : f32
    %237 = vector.broadcast %cst_87 : f32 to vector<2x16x16xf32>
    %238 = arith.mulf %236, %237 : vector<2x16x16xf32>
    %cst_88 = arith.constant dense<0xFF800000> : vector<2x16xf32>
    %239 = vector.multi_reduction <maximumf>, %238, %cst_88 [2] : vector<2x16x16xf32> to vector<2x16xf32>
    %240 = vector.shape_cast %239 : vector<2x16xf32> to vector<2x16x1xf32>
    %241 = vector.broadcast %240 : vector<2x16x1xf32> to vector<2x16x16xf32>
    %242 = arith.subf %238, %241 : vector<2x16x16xf32>
    %243 = math.exp %242 : vector<2x16x16xf32>
    %cst_89 = arith.constant dense<0.000000e+00> : vector<2x16xf32>
    %244 = vector.multi_reduction <add>, %243, %cst_89 [2] : vector<2x16x16xf32> to vector<2x16xf32>
    %245 = vector.shape_cast %244 : vector<2x16xf32> to vector<2x16x1xf32>
    %246 = tpu.reciprocal %245 {approx = true} : vector<2x16x1xf32> -> vector<2x16x1xf32>
    %247 = vector.broadcast %246 : vector<2x16x1xf32> to vector<2x16x16xf32>
    %248 = arith.mulf %243, %247 : vector<2x16x16xf32>
    "tpu.trace_start"() <{level = 10 : i32, message = "bij,bjd->bid"}> : () -> ()
    %cst_90 = arith.constant dense<0.000000e+00> : vector<2x16x8xf32>
    %249 = tpu.matmul %248, %235, %cst_90 {dimension_numbers = #tpu.dot_dimension_numbers<[2], [1], [1], [2], [0, 0, 0, 1, 1, 2], [0], [0]>} : vector<2x16x16xf32>, vector<2x16x8xf32>, vector<2x16x8xf32> -> vector<2x16x8xf32>
    "tpu.trace_stop"() : () -> ()
    %250 = tpu.concatenate %198, %215, %232, %249 in 2 : vector<2x16x8xf32>, vector<2x16x8xf32>, vector<2x16x8xf32>, vector<2x16x8xf32> -> vector<2x16x32xf32>
    %251 = vector.shape_cast %250 : vector<2x16x32xf32> to vector<32x32xf32>
    %c1_91 = arith.constant 1 : index
    %c128_92 = arith.constant 128 : index
    %c0_93 = arith.constant 0 : index
    %252 = vector.load %arg1[%c1_91, %c128_92, %c0_93] : memref<2x168x96xf32, #tpu.memory_space<vmem>>, vector<1x32x32xf32>
    %253 = vector.shape_cast %252 : vector<1x32x32xf32> to vector<32x32xf32>
    %cst_94 = arith.constant dense<0.000000e+00> : vector<32x32xf32>
    %254 = tpu.matmul %251, %253, %cst_94 {dimension_numbers = #tpu.dot_dimension_numbers<[1], [0], [0], [1], [0, 0, 1, 1], [], []>} : vector<32x32xf32>, vector<32x32xf32>, vector<32x32xf32> -> vector<32x32xf32>
    %c1_95 = arith.constant 1 : index
    %c161_96 = arith.constant 161 : index
    %c0_97 = arith.constant 0 : index
    %255 = vector.load %arg1[%c1_95, %c161_96, %c0_97] : memref<2x168x96xf32, #tpu.memory_space<vmem>>, vector<1x1x32xf32>
    %256 = vector.shape_cast %255 : vector<1x1x32xf32> to vector<1x32xf32>
    %257 = vector.broadcast %256 : vector<1x32xf32> to vector<32x32xf32>
    %258 = arith.addf %254, %257 : vector<32x32xf32>
    %259 = arith.addf %168, %258 : vector<32x32xf32>
    %c1_98 = arith.constant 1 : index
    %c164_99 = arith.constant 164 : index
    %c0_100 = arith.constant 0 : index
    %260 = vector.load %arg1[%c1_98, %c164_99, %c0_100] : memref<2x168x96xf32, #tpu.memory_space<vmem>>, vector<1x1x32xf32>
    %261 = vector.shape_cast %260 : vector<1x1x32xf32> to vector<1x32xf32>
    %c1_101 = arith.constant 1 : index
    %c165_102 = arith.constant 165 : index
    %c0_103 = arith.constant 0 : index
    %262 = vector.load %arg1[%c1_101, %c165_102, %c0_103] : memref<2x168x96xf32, #tpu.memory_space<vmem>>, vector<1x1x32xf32>
    %263 = vector.shape_cast %262 : vector<1x1x32xf32> to vector<1x32xf32>
    %cst_104 = arith.constant dense<0.000000e+00> : vector<32xf32>
    %264 = vector.multi_reduction <add>, %259, %cst_104 [1] : vector<32x32xf32> to vector<32xf32>
    %265 = vector.shape_cast %264 : vector<32xf32> to vector<32x1xf32>
    %cst_105 = arith.constant 3.200000e+01 : f32
    %266 = vector.broadcast %cst_105 : f32 to vector<32x1xf32>
    %267 = arith.divf %265, %266 : vector<32x1xf32>
    %268 = vector.broadcast %267 : vector<32x1xf32> to vector<32x32xf32>
    %269 = arith.subf %259, %268 : vector<32x32xf32>
    %270 = arith.mulf %269, %269 : vector<32x32xf32>
    %cst_106 = arith.constant dense<0.000000e+00> : vector<32xf32>
    %271 = vector.multi_reduction <add>, %270, %cst_106 [1] : vector<32x32xf32> to vector<32xf32>
    %272 = vector.shape_cast %271 : vector<32xf32> to vector<32x1xf32>
    %cst_107 = arith.constant 3.200000e+01 : f32
    %273 = vector.broadcast %cst_107 : f32 to vector<32x1xf32>
    %274 = arith.divf %272, %273 : vector<32x1xf32>
    %275 = vector.broadcast %267 : vector<32x1xf32> to vector<32x32xf32>
    %276 = arith.subf %259, %275 : vector<32x32xf32>
    %cst_108 = arith.constant 9.99999974E-6 : f32
    %277 = vector.broadcast %cst_108 : f32 to vector<32x1xf32>
    %278 = arith.addf %274, %277 : vector<32x1xf32>
    %279 = math.rsqrt %278 : vector<32x1xf32>
    %280 = vector.broadcast %279 : vector<32x1xf32> to vector<32x32xf32>
    %281 = arith.mulf %276, %280 : vector<32x32xf32>
    %282 = vector.broadcast %261 : vector<1x32xf32> to vector<32x32xf32>
    %283 = arith.mulf %281, %282 : vector<32x32xf32>
    %284 = vector.broadcast %263 : vector<1x32xf32> to vector<32x32xf32>
    %285 = arith.addf %283, %284 : vector<32x32xf32>
    %c1_109 = arith.constant 1 : index
    %c32_110 = arith.constant 32 : index
    %c0_111 = arith.constant 0 : index
    %286 = vector.load %arg1[%c1_109, %c32_110, %c0_111] : memref<2x168x96xf32, #tpu.memory_space<vmem>>, vector<1x32x64xf32>
    %287 = vector.shape_cast %286 : vector<1x32x64xf32> to vector<32x64xf32>
    %cst_112 = arith.constant dense<0.000000e+00> : vector<32x64xf32>
    %288 = tpu.matmul %285, %287, %cst_112 {dimension_numbers = #tpu.dot_dimension_numbers<[1], [0], [0], [1], [0, 0, 1, 1], [], []>} : vector<32x32xf32>, vector<32x64xf32>, vector<32x64xf32> -> vector<32x64xf32>
    %c1_113 = arith.constant 1 : index
    %c162_114 = arith.constant 162 : index
    %c0_115 = arith.constant 0 : index
    %289 = vector.load %arg1[%c1_113, %c162_114, %c0_115] : memref<2x168x96xf32, #tpu.memory_space<vmem>>, vector<1x1x64xf32>
    %290 = vector.shape_cast %289 : vector<1x1x64xf32> to vector<1x64xf32>
    %291 = vector.broadcast %290 : vector<1x64xf32> to vector<32x64xf32>
    %292 = arith.addf %288, %291 : vector<32x64xf32>
    %cst_116 = arith.constant 5.000000e-01 : f32
    %293 = vector.broadcast %cst_116 : f32 to vector<32x64xf32>
    %294 = arith.mulf %293, %292 : vector<32x64xf32>
    %cst_117 = arith.constant 0.707106769 : f32
    %295 = vector.broadcast %cst_117 : f32 to vector<32x64xf32>
    %296 = arith.mulf %292, %295 : vector<32x64xf32>
    %297 = math.erf %296 : vector<32x64xf32>
    %cst_118 = arith.constant 1.000000e+00 : f32
    %298 = vector.broadcast %cst_118 : f32 to vector<32x64xf32>
    %299 = arith.addf %298, %297 : vector<32x64xf32>
    %300 = arith.mulf %294, %299 : vector<32x64xf32>
    %c1_119 = arith.constant 1 : index
    %c64_120 = arith.constant 64 : index
    %c0_121 = arith.constant 0 : index
    %301 = vector.load %arg1[%c1_119, %c64_120, %c0_121] : memref<2x168x96xf32, #tpu.memory_space<vmem>>, vector<1x64x32xf32>
    %302 = vector.shape_cast %301 : vector<1x64x32xf32> to vector<64x32xf32>
    %cst_122 = arith.constant dense<0.000000e+00> : vector<32x32xf32>
    %303 = tpu.matmul %300, %302, %cst_122 {dimension_numbers = #tpu.dot_dimension_numbers<[1], [0], [0], [1], [0, 0, 1, 1], [], []>} : vector<32x64xf32>, vector<64x32xf32>, vector<32x32xf32> -> vector<32x32xf32>
    %c1_123 = arith.constant 1 : index
    %c163_124 = arith.constant 163 : index
    %c0_125 = arith.constant 0 : index
    %304 = vector.load %arg1[%c1_123, %c163_124, %c0_125] : memref<2x168x96xf32, #tpu.memory_space<vmem>>, vector<1x1x32xf32>
    %305 = vector.shape_cast %304 : vector<1x1x32xf32> to vector<1x32xf32>
    %306 = vector.broadcast %305 : vector<1x32xf32> to vector<32x32xf32>
    %307 = arith.addf %303, %306 : vector<32x32xf32>
    %308 = arith.addf %285, %307 : vector<32x32xf32>
    %c1_126 = arith.constant 1 : index
    %c166_127 = arith.constant 166 : index
    %c0_128 = arith.constant 0 : index
    %309 = vector.load %arg1[%c1_126, %c166_127, %c0_128] : memref<2x168x96xf32, #tpu.memory_space<vmem>>, vector<1x1x32xf32>
    %310 = vector.shape_cast %309 : vector<1x1x32xf32> to vector<1x32xf32>
    %c1_129 = arith.constant 1 : index
    %c167_130 = arith.constant 167 : index
    %c0_131 = arith.constant 0 : index
    %311 = vector.load %arg1[%c1_129, %c167_130, %c0_131] : memref<2x168x96xf32, #tpu.memory_space<vmem>>, vector<1x1x32xf32>
    %312 = vector.shape_cast %311 : vector<1x1x32xf32> to vector<1x32xf32>
    %cst_132 = arith.constant dense<0.000000e+00> : vector<32xf32>
    %313 = vector.multi_reduction <add>, %308, %cst_132 [1] : vector<32x32xf32> to vector<32xf32>
    %314 = vector.shape_cast %313 : vector<32xf32> to vector<32x1xf32>
    %cst_133 = arith.constant 3.200000e+01 : f32
    %315 = vector.broadcast %cst_133 : f32 to vector<32x1xf32>
    %316 = arith.divf %314, %315 : vector<32x1xf32>
    %317 = vector.broadcast %316 : vector<32x1xf32> to vector<32x32xf32>
    %318 = arith.subf %308, %317 : vector<32x32xf32>
    %319 = arith.mulf %318, %318 : vector<32x32xf32>
    %cst_134 = arith.constant dense<0.000000e+00> : vector<32xf32>
    %320 = vector.multi_reduction <add>, %319, %cst_134 [1] : vector<32x32xf32> to vector<32xf32>
    %321 = vector.shape_cast %320 : vector<32xf32> to vector<32x1xf32>
    %cst_135 = arith.constant 3.200000e+01 : f32
    %322 = vector.broadcast %cst_135 : f32 to vector<32x1xf32>
    %323 = arith.divf %321, %322 : vector<32x1xf32>
    %324 = vector.broadcast %316 : vector<32x1xf32> to vector<32x32xf32>
    %325 = arith.subf %308, %324 : vector<32x32xf32>
    %cst_136 = arith.constant 9.99999974E-6 : f32
    %326 = vector.broadcast %cst_136 : f32 to vector<32x1xf32>
    %327 = arith.addf %323, %326 : vector<32x1xf32>
    %328 = math.rsqrt %327 : vector<32x1xf32>
    %329 = vector.broadcast %328 : vector<32x1xf32> to vector<32x32xf32>
    %330 = arith.mulf %325, %329 : vector<32x32xf32>
    %331 = vector.broadcast %310 : vector<1x32xf32> to vector<32x32xf32>
    %332 = arith.mulf %330, %331 : vector<32x32xf32>
    %333 = vector.broadcast %312 : vector<1x32xf32> to vector<32x32xf32>
    %334 = arith.addf %332, %333 : vector<32x32xf32>
    %c162_137 = arith.constant 162 : index
    %c0_138 = arith.constant 0 : index
    %335 = vector.load %arg2[%c162_137, %c0_138] : memref<168x64xf32, #tpu.memory_space<vmem>>, vector<1x32xf32>
    %c163_139 = arith.constant 163 : index
    %c0_140 = arith.constant 0 : index
    %336 = vector.load %arg2[%c163_139, %c0_140] : memref<168x64xf32, #tpu.memory_space<vmem>>, vector<1x32xf32>
    %cst_141 = arith.constant dense<0.000000e+00> : vector<32xf32>
    %337 = vector.multi_reduction <add>, %334, %cst_141 [1] : vector<32x32xf32> to vector<32xf32>
    %338 = vector.shape_cast %337 : vector<32xf32> to vector<32x1xf32>
    %cst_142 = arith.constant 3.200000e+01 : f32
    %339 = vector.broadcast %cst_142 : f32 to vector<32x1xf32>
    %340 = arith.divf %338, %339 : vector<32x1xf32>
    %341 = vector.broadcast %340 : vector<32x1xf32> to vector<32x32xf32>
    %342 = arith.subf %334, %341 : vector<32x32xf32>
    %343 = arith.mulf %342, %342 : vector<32x32xf32>
    %cst_143 = arith.constant dense<0.000000e+00> : vector<32xf32>
    %344 = vector.multi_reduction <add>, %343, %cst_143 [1] : vector<32x32xf32> to vector<32xf32>
    %345 = vector.shape_cast %344 : vector<32xf32> to vector<32x1xf32>
    %cst_144 = arith.constant 3.200000e+01 : f32
    %346 = vector.broadcast %cst_144 : f32 to vector<32x1xf32>
    %347 = arith.divf %345, %346 : vector<32x1xf32>
    %348 = vector.broadcast %340 : vector<32x1xf32> to vector<32x32xf32>
    %349 = arith.subf %334, %348 : vector<32x32xf32>
    %cst_145 = arith.constant 9.99999974E-6 : f32
    %350 = vector.broadcast %cst_145 : f32 to vector<32x1xf32>
    %351 = arith.addf %347, %350 : vector<32x1xf32>
    %352 = math.rsqrt %351 : vector<32x1xf32>
    %353 = vector.broadcast %352 : vector<32x1xf32> to vector<32x32xf32>
    %354 = arith.mulf %349, %353 : vector<32x32xf32>
    %355 = vector.broadcast %335 : vector<1x32xf32> to vector<32x32xf32>
    %356 = arith.mulf %354, %355 : vector<32x32xf32>
    %357 = vector.broadcast %336 : vector<1x32xf32> to vector<32x32xf32>
    %358 = arith.addf %356, %357 : vector<32x32xf32>
    %cst_146 = arith.constant 5.000000e-01 : f32
    %359 = vector.broadcast %cst_146 : f32 to vector<32x32xf32>
    %360 = arith.mulf %359, %358 : vector<32x32xf32>
    %cst_147 = arith.constant 0.707106769 : f32
    %361 = vector.broadcast %cst_147 : f32 to vector<32x32xf32>
    %362 = arith.mulf %358, %361 : vector<32x32xf32>
    %363 = math.erf %362 : vector<32x32xf32>
    %cst_148 = arith.constant 1.000000e+00 : f32
    %364 = vector.broadcast %cst_148 : f32 to vector<32x32xf32>
    %365 = arith.addf %364, %363 : vector<32x32xf32>
    %366 = arith.mulf %360, %365 : vector<32x32xf32>
    %c32_149 = arith.constant 32 : index
    %c0_150 = arith.constant 0 : index
    %367 = vector.load %arg2[%c32_149, %c0_150] : memref<168x64xf32, #tpu.memory_space<vmem>>, vector<32x64xf32>
    %cst_151 = arith.constant dense<0.000000e+00> : vector<32x64xf32>
    %368 = tpu.matmul %366, %367, %cst_151 {dimension_numbers = #tpu.dot_dimension_numbers<[1], [0], [0], [1], [0, 0, 1, 1], [], []>} : vector<32x32xf32>, vector<32x64xf32>, vector<32x64xf32> -> vector<32x64xf32>
    %c64_152 = arith.constant 64 : index
    %c0_153 = arith.constant 0 : index
    %369 = vector.load %arg2[%c64_152, %c0_153] : memref<168x64xf32, #tpu.memory_space<vmem>>, vector<32x64xf32>
    %370 = arith.mulf %368, %369 : vector<32x64xf32>
    %c96 = arith.constant 96 : index
    %c0_154 = arith.constant 0 : index
    %371 = vector.load %arg2[%c96, %c0_154] : memref<168x64xf32, #tpu.memory_space<vmem>>, vector<64x4xf32>
    %cst_155 = arith.constant dense<0.000000e+00> : vector<32x4xf32>
    %372 = tpu.matmul %370, %371, %cst_155 {dimension_numbers = #tpu.dot_dimension_numbers<[1], [0], [0], [1], [0, 0, 1, 1], [], []>} : vector<32x64xf32>, vector<64x4xf32>, vector<32x4xf32> -> vector<32x4xf32>
    %c160_156 = arith.constant 160 : index
    %c0_157 = arith.constant 0 : index
    %373 = vector.load %arg2[%c160_156, %c0_157] : memref<168x64xf32, #tpu.memory_space<vmem>>, vector<2x32xf32>
    %cst_158 = arith.constant dense<0.000000e+00> : vector<2x4xf32>
    %374 = tpu.matmul %373, %372, %cst_158 {dimension_numbers = #tpu.dot_dimension_numbers<[1], [0], [0], [1], [0, 0, 1, 1], [], []>} : vector<2x32xf32>, vector<32x4xf32>, vector<2x4xf32> -> vector<2x4xf32>
    %c164_159 = arith.constant 164 : index
    %c0_160 = arith.constant 0 : index
    %375 = vector.load %arg2[%c164_159, %c0_160] : memref<168x64xf32, #tpu.memory_space<vmem>>, vector<1x4xf32>
    %376 = vector.broadcast %375 : vector<1x4xf32> to vector<2x4xf32>
    %377 = arith.addf %374, %376 : vector<2x4xf32>
    %c0_161 = arith.constant 0 : index
    %c0_162 = arith.constant 0 : index
    %378 = vector.load %arg3[%c0_161, %c0_162] : memref<2x4xf32, #tpu.memory_space<vmem>>, vector<2x4xf32>
    tpu.vector_store %arg3[%c0_161, %c0_162], %377 {strides = array<i32>} : memref<2x4xf32, #tpu.memory_space<vmem>>, vector<2x4xf32>,
    return
  }
}

</mosaic_0001>

<llo_original>
// kernel: forward.1
$region0: #{forward.1}
  #allocation0 [shape = 'u32[]', space=smem, size = 0x4, offset = 0x4, fixed_abs, tag = 'smem constant byte address 0x4 - core index']
  #allocation1 [shape = 'u32[144,128]{1,0:T(1,128)}', space=vmem, size = 0x12000, scoped, tag = 'internal scratch']
  %s0 = inlined_call_operand.vmem [shape: f32[32,32], index: 0, kind: input, shape index: {}]
  %s1 = inlined_call_operand.vmem [shape: f32[2,168,96], index: 1, kind: input, shape index: {}]
  %s2 = inlined_call_operand.vmem [shape: f32[168,64], index: 2, kind: input, shape index: {}]
  %s3 = inlined_call_operand.hbm [shape: f32[2,4], index: 3, kind: output, shape index: {}]
  %s4 = sld [smem:[#allocation0]]
  $region22: #{forward.1} parent=0
    _
  %s6 = ssub.s32 1, %s4
  %s7 = scalar_select 0, %s6, %s4
  $region1: #{forward.1} parent=0
    #allocation2 [shape = 'u8[1024]{0}', space=vmem, size = 0x400, scoped, tag = 'output window, operand 0, single buffered']
    #allocation3 [shape = 's32[1]{0}', space=sflag, size = 0x4, scoped, tag = 'scoped memory for forward.1']
    %8 = vsyncpa [#allocation3], 0
    // Predicated region
    $region2: #{forward.1} parent=1 // pred_check
      _
    $region3: #{forward.1} parent=1 // pred_check_branch
      %10 = sbr.rel (0) target = $region5
    $region4: #{forward.1} parent=1 // pred_region
      _
    $region5: #{forward.1} parent=1 // pred_fallthru
      _
    // Predicated region
    $region6: #{forward.1} parent=1 // pred_check
      _
    $region7: #{forward.1} parent=1 // pred_check_branch
      %12 = sbr.rel (0) target = $region9
    $region8: #{forward.1} parent=1 // pred_region
      _
    $region9: #{forward.1} parent=1 // pred_fallthru
      _
    // Predicated region
    $region10: #{forward.1} parent=1 // pred_check
      _
    $region11: #{forward.1} parent=1 // pred_check_branch
      %14 = sbr.rel (0) target = $region13
    $region12: #{forward.1} parent=1 // pred_region
      _
    $region13: #{forward.1} parent=1 // pred_fallthru
      _
    %v15 = vld [vmem:[%s0] sm:$0xff]
    %v16 = vld [vmem:[%s0 + $0x8] sm:$0xff]
    %v17 = vld [vmem:[%s0 + $0x10] sm:$0xff]
    %v18 = vld [vmem:[%s0 + $0x18] sm:$0xff]
    %v19 = vld [vmem:[%s2] sm:$0xff]
    %v20 = vld [vmem:[%s2 + $0x8] sm:$0xff]
    %v21 = vld [vmem:[%s2 + $0x10] sm:$0xff]
    %v22 = vld [vmem:[%s2 + $0x18] sm:$0xff]
    %vm23 = vcmask 261120
    %v25 = vsel %vm23, %v15, 0
    %v28 = vsel %vm23, %v16, 0
    %v31 = vsel %vm23, %v17, 0
    %v34 = vsel %vm23, %v18, 0
    %36 = vmatprep.subr.mxu0 0.0
    %37 = vmatpush1.msra.mxu0 %v19
    %38 = vmatprep.subr.mxu0 0.0
    %39 = vmatpush1.msra.mxu0 %v20
    %40 = vmatprep.subr.mxu0 0.0
    %41 = vmatpush1.msra.mxu0 %v21
    %42 = vmatprep.subr.mxu0 0.0
    %43 = vmatpush1.msra.mxu0 %v22
    %44 = vmatprep.subr.mxu0 0.0
    %45 = vmatpush1.msra.mxu0 0.0
    %46 = vmatprep.subr.mxu0 0.0
    %47 = vmatpush1.msra.mxu0 0.0
    %48 = vmatprep.subr.mxu0 0.0
    %49 = vmatpush1.msra.mxu0 0.0
    %50 = vmatprep.subr.mxu0 0.0
    %51 = vmatpush1.msra.mxu0 0.0
    %52 = vmatprep.subr.mxu0 0.0
    %53 = vmatpush1.msra.mxu0 0.0
    %54 = vmatprep.subr.mxu0 0.0
    %55 = vmatpush1.msra.mxu0 0.0
    %56 = vmatprep.subr.mxu0 0.0
    %57 = vmatpush1.msra.mxu0 0.0
    %58 = vmatprep.subr.mxu0 0.0
    %59 = vmatpush1.msra.mxu0 0.0
    %60 = vmatprep.subr.mxu0 0.0
    %61 = vmatpush1.msra.mxu0 0.0
    %62 = vmatprep.subr.mxu0 0.0
    %63 = vmatpush1.msra.mxu0 0.0
    %64 = vmatprep.subr.mxu0 0.0
    %65 = vmatpush1.msra.mxu0 0.0
    %66 = vmatprep.subr.mxu0 0.0
    %67 = vmatpush1.msra.mxu0 0.0
    %68 = vmatprep.subr.mxu0 0.0
    %69 = vmatpush1.msra.mxu0 0.0
    %70 = vmatprep.subr.mxu0 0.0
    %71 = vmatpush1.msra.mxu0 0.0
    %72 = vmatprep.subr.mxu0 0.0
    %73 = vmatpush1.msra.mxu0 0.0
    %74 = vmatprep.subr.mxu0 0.0
    %75 = vmatpush1.msra.mxu0 0.0
    %76 = vmatprep.subr.mxu0 0.0
    %77 = vmatpush1.msra.mxu0 0.0
    %78 = vmatprep.subr.mxu0 0.0
    %79 = vmatpush1.msra.mxu0 0.0
    %80 = vmatprep.subr.mxu0 0.0
    %81 = vmatpush1.msra.mxu0 0.0
    %82 = vmatprep.subr.mxu0 0.0
    %83 = vmatpush1.msra.mxu0 0.0
    %84 = vmatprep.subr.mxu0 0.0
    %85 = vmatpush1.msra.mxu0 0.0
    %86 = vmatprep.subr.mxu0 0.0
    %87 = vmatpush1.msra.mxu0 0.0
    %88 = vmatprep.subr.mxu0 0.0
    %89 = vmatpush1.msra.mxu0 0.0
    %90 = vmatprep.subr.mxu0 0.0
    %91 = vmatpush1.msra.mxu0 0.0
    %92 = vmatprep.subr.mxu0 0.0
    %93 = vmatpush1.msra.mxu0 0.0
    %94 = vmatprep.subr.mxu0 0.0
    %95 = vmatpush1.msra.mxu0 0.0
    %96 = vmatprep.subr.mxu0 0.0
    %97 = vmatpush1.msra.mxu0 0.0
    %98 = vmatprep.subr.mxu0 0.0
    %99 = vmatpush1.msra.mxu0 0.0
    %100 = vmatprep.mubr.f32.mxu0 0.0
    %101 = vmatmul.mubr.f32.gmra.mrb[0].mxu0 %v25
    %v102 = vpop.f32.mrb[0].mxu0
    %v103 = vadd.f32 0.0, %v102
    %v104 = vpop.f32.mrb[0].mxu0
    %105 = vmatprep.mubr.f32.mxu0 0.0
    %106 = vmatmul.mubr.f32.gmra.mrb[0].mxu0 %v28
    %v107 = vpop.f32.mrb[0].mxu0
    %v108 = vadd.f32 0.0, %v107
    %v109 = vpop.f32.mrb[0].mxu0
    %110 = vmatprep.mubr.f32.mxu0 0.0
    %111 = vmatmul.mubr.f32.gmra.mrb[0].mxu0 %v31
    %v112 = vpop.f32.mrb[0].mxu0
    %v113 = vadd.f32 0.0, %v112
    %v114 = vpop.f32.mrb[0].mxu0
    %115 = vmatprep.mubr.f32.mxu0 0.0
    %116 = vmatmul.mubr.f32.gmra.mrb[0].mxu0 %v34
    %v117 = vpop.f32.mrb[0].mxu0
    %v118 = vadd.f32 0.0, %v117
    %v119 = vpop.f32.mrb[0].mxu0
    %120 = vdwg.mxu0
    %v121 = vld [vmem:[%s1] sm:$0xff]
    %v122 = vld [vmem:[%s1 + $0x8] sm:$0xff]
    %v123 = vld [vmem:[%s1 + $0x10] sm:$0xff]
    %v124 = vld [vmem:[%s1 + $0x18] sm:$0xff]
    %v125 = vld [vmem:[%s1 + $0xa0] sm:$0x1]
    %v126 = vlaneseq
    %v127 = vshrl.u32 %v126, 7
    %v128 = vsub.s32 0, %v127
    %v129 = vrot.slane %v125, %v128
    %v131 = vsel %vm23, %v103, 0
    %v134 = vsel %vm23, %v108, 0
    %v137 = vsel %vm23, %v113, 0
    %v140 = vsel %vm23, %v118, 0
    %142 = vmatprep.subr.mxu0 0.0
    %143 = vmatpush1.msra.mxu0 %v121
    %144 = vmatprep.subr.mxu0 0.0
    %145 = vmatpush1.msra.mxu0 %v122
    %146 = vmatprep.subr.mxu0 0.0
    %147 = vmatpush1.msra.mxu0 %v123
    %148 = vmatprep.subr.mxu0 0.0
    %149 = vmatpush1.msra.mxu0 %v124
    %150 = vmatprep.subr.mxu0 0.0
    %151 = vmatpush1.msra.mxu0 0.0
    %152 = vmatprep.subr.mxu0 0.0
    %153 = vmatpush1.msra.mxu0 0.0
    %154 = vmatprep.subr.mxu0 0.0
    %155 = vmatpush1.msra.mxu0 0.0
    %156 = vmatprep.subr.mxu0 0.0
    %157 = vmatpush1.msra.mxu0 0.0
    %158 = vmatprep.subr.mxu0 0.0
    %159 = vmatpush1.msra.mxu0 0.0
    %160 = vmatprep.subr.mxu0 0.0
    %161 = vmatpush1.msra.mxu0 0.0
    %162 = vmatprep.subr.mxu0 0.0
    %163 = vmatpush1.msra.mxu0 0.0
    %164 = vmatprep.subr.mxu0 0.0
    %165 = vmatpush1.msra.mxu0 0.0
    %166 = vmatprep.subr.mxu0 0.0
    %167 = vmatpush1.msra.mxu0 0.0
    %168 = vmatprep.subr.mxu0 0.0
    %169 = vmatpush1.msra.mxu0 0.0
    %170 = vmatprep.subr.mxu0 0.0
    %171 = vmatpush1.msra.mxu0 0.0
    %172 = vmatprep.subr.mxu0 0.0
    %173 = vmatpush1.msra.mxu0 0.0
    %174 = vmatprep.subr.mxu0 0.0
    %175 = vmatpush1.msra.mxu0 0.0
    %176 = vmatprep.subr.mxu0 0.0
    %177 = vmatpush1.msra.mxu0 0.0
    %178 = vmatprep.subr.mxu0 0.0
    %179 = vmatpush1.msra.mxu0 0.0
    %180 = vmatprep.subr.mxu0 0.0
    %181 = vmatpush1.msra.mxu0 0.0
    %182 = vmatprep.subr.mxu0 0.0
    %183 = vmatpush1.msra.mxu0 0.0
    %184 = vmatprep.subr.mxu0 0.0
    %185 = vmatpush1.msra.mxu0 0.0
    %186 = vmatprep.subr.mxu0 0.0
    %187 = vmatpush1.msra.mxu0 0.0
    %188 = vmatprep.subr.mxu0 0.0
    %189 = vmatpush1.msra.mxu0 0.0
    %190 = vmatprep.subr.mxu0 0.0
    %191 = vmatpush1.msra.mxu0 0.0
    %192 = vmatprep.subr.mxu0 0.0
    %193 = vmatpush1.msra.mxu0 0.0
    %194 = vmatprep.subr.mxu0 0.0
    %195 = vmatpush1.msra.mxu0 0.0
    %196 = vmatprep.subr.mxu0 0.0
    %197 = vmatpush1.msra.mxu0 0.0
    %198 = vmatprep.subr.mxu0 0.0
    %199 = vmatpush1.msra.mxu0 0.0
    %200 = vmatprep.subr.mxu0 0.0
    %201 = vmatpush1.msra.mxu0 0.0
    %202 = vmatprep.subr.mxu0 0.0
    %203 = vmatpush1.msra.mxu0 0.0
    %204 = vmatprep.subr.mxu0 0.0
    %205 = vmatpush1.msra.mxu0 0.0
    %206 = vmatprep.mubr.f32.mxu0 0.0
    %207 = vmatmul.mubr.f32.gmra.mrb[0].mxu0 %v131
    %v208 = vpop.f32.mrb[0].mxu0
    %v209 = vadd.f32 %v129, %v208
    %v210 = vpop.f32.mrb[0].mxu0
    %211 = vmatprep.mubr.f32.mxu0 0.0
    %212 = vmatmul.mubr.f32.gmra.mrb[0].mxu0 %v134
    %v213 = vpop.f32.mrb[0].mxu0
    %v214 = vadd.f32 %v129, %v213
    %v215 = vpop.f32.mrb[0].mxu0
    %216 = vmatprep.mubr.f32.mxu0 0.0
    %217 = vmatmul.mubr.f32.gmra.mrb[0].mxu0 %v137
    %v218 = vpop.f32.mrb[0].mxu0
    %v219 = vadd.f32 %v129, %v218
    %v220 = vpop.f32.mrb[0].mxu0
    %221 = vmatprep.mubr.f32.mxu0 0.0
    %222 = vmatmul.mubr.f32.gmra.mrb[0].mxu0 %v140
    %v223 = vpop.f32.mrb[0].mxu0
    %v224 = vadd.f32 %v129, %v223
    %v225 = vpop.f32.mrb[0].mxu0
    %226 = vdwg.mxu0
    %229 = vrot.lane.b32.xlu0 %v209, 96
    %v230 = vpop.permute.xlu0 %229
    %231 = vrot.lane.b32.xlu0 %v214, 96
    %v232 = vpop.permute.xlu0 %231
    %vm233 = vcmask 64512
    %v234 = vsel %vm233, %v209, 0
    %v236 = vsel %vm233, %v214, 0
    %v238 = vsel %vm233, %v230, 0
    %v240 = vsel %vm233, %v232, 0
    %242 = vmatprep.subr.mxu0 0.0
    %243 = vmatpush1.xpose.msra.mxu0 %v238
    %244 = vmatprep.subr.mxu0 0.0
    %245 = vmatpush1.xpose.msra.mxu0 %v240
    %246 = vmatprep.subr.mxu0 0.0
    %247 = vmatpush1.xpose.msra.mxu0 0.0
    %248 = vmatprep.subr.mxu0 0.0
    %249 = vmatpush1.xpose.msra.mxu0 0.0
    %250 = vmatprep.subr.mxu0 0.0
    %251 = vmatpush1.xpose.msra.mxu0 0.0
    %252 = vmatprep.subr.mxu0 0.0
    %253 = vmatpush1.xpose.msra.mxu0 0.0
    %254 = vmatprep.subr.mxu0 0.0
    %255 = vmatpush1.xpose.msra.mxu0 0.0
    %256 = vmatprep.subr.mxu0 0.0
    %257 = vmatpush1.xpose.msra.mxu0 0.0
    %258 = vmatprep.subr.mxu0 0.0
    %259 = vmatpush1.xpose.msra.mxu0 0.0
    %260 = vmatprep.subr.mxu0 0.0
    %261 = vmatpush1.xpose.msra.mxu0 0.0
    %262 = vmatprep.subr.mxu0 0.0
    %263 = vmatpush1.xpose.msra.mxu0 0.0
    %264 = vmatprep.subr.mxu0 0.0
    %265 = vmatpush1.xpose.msra.mxu0 0.0
    %266 = vmatprep.subr.mxu0 0.0
    %267 = vmatpush1.xpose.msra.mxu0 0.0
    %268 = vmatprep.subr.mxu0 0.0
    %269 = vmatpush1.xpose.msra.mxu0 0.0
    %270 = vmatprep.subr.mxu0 0.0
    %271 = vmatpush1.xpose.msra.mxu0 0.0
    %272 = vmatprep.subr.mxu0 0.0
    %273 = vmatpush1.xpose.msra.mxu0 0.0
    %274 = vmatprep.subr.mxu0 0.0
    %275 = vmatpush1.xpose.msra.mxu0 0.0
    %276 = vmatprep.subr.mxu0 0.0
    %277 = vmatpush1.xpose.msra.mxu0 0.0
    %278 = vmatprep.subr.mxu0 0.0
    %279 = vmatpush1.xpose.msra.mxu0 0.0
    %280 = vmatprep.subr.mxu0 0.0
    %281 = vmatpush1.xpose.msra.mxu0 0.0
    %282 = vmatprep.subr.mxu0 0.0
    %283 = vmatpush1.xpose.msra.mxu0 0.0
    %284 = vmatprep.subr.mxu0 0.0
    %285 = vmatpush1.xpose.msra.mxu0 0.0
    %286 = vmatprep.subr.mxu0 0.0
    %287 = vmatpush1.xpose.msra.mxu0 0.0
    %288 = vmatprep.subr.mxu0 0.0
    %289 = vmatpush1.xpose.msra.mxu0 0.0
    %290 = vmatprep.subr.mxu0 0.0
    %291 = vmatpush1.xpose.msra.mxu0 0.0
    %292 = vmatprep.subr.mxu0 0.0
    %293 = vmatpush1.xpose.msra.mxu0 0.0
    %294 = vmatprep.subr.mxu0 0.0
    %295 = vmatpush1.xpose.msra.mxu0 0.0
    %296 = vmatprep.subr.mxu0 0.0
    %297 = vmatpush1.xpose.msra.mxu0 0.0
    %298 = vmatprep.subr.mxu0 0.0
    %299 = vmatpush1.xpose.msra.mxu0 0.0
    %300 = vmatprep.subr.mxu0 0.0
    %301 = vmatpush1.xpose.msra.mxu0 0.0
    %302 = vmatprep.subr.mxu0 0.0
    %303 = vmatpush1.xpose.msra.mxu0 0.0
    %304 = vmatprep.subr.mxu0 0.0
    %305 = vmatpush1.xpose.msra.mxu0 0.0
    %306 = vmatprep.mubr.f32.mxu0 0.0
    %307 = vmatmul.mubr.f32.gmra.mrb[0].mxu0 %v234
    %v308 = vpop.f32.mrb[0].mxu0
    %v309 = vadd.f32 0.0, %v308
    %v310 = vpop.f32.mrb[0].mxu0
    %311 = vmatprep.mubr.f32.mxu0 0.0
    %312 = vmatmul.mubr.f32.gmra.mrb[0].mxu0 %v236
    %v313 = vpop.f32.mrb[0].mxu0
    %v314 = vadd.f32 0.0, %v313
    %v315 = vpop.f32.mrb[0].mxu0
    %316 = vdwg.mxu0
    %319 = vrot.lane.b32.xlu0 %v219, 96
    %v320 = vpop.permute.xlu0 %319
    %321 = vrot.lane.b32.xlu0 %v224, 96
    %v322 = vpop.permute.xlu0 %321
    %v323 = vsel %vm233, %v219, 0
    %v325 = vsel %vm233, %v224, 0
    %v327 = vsel %vm233, %v320, 0
    %v329 = vsel %vm233, %v322, 0
    %331 = vmatprep.subr.mxu0 0.0
    %332 = vmatpush1.xpose.msra.mxu0 %v327
    %333 = vmatprep.subr.mxu0 0.0
    %334 = vmatpush1.xpose.msra.mxu0 %v329
    %335 = vmatprep.subr.mxu0 0.0
    %336 = vmatpush1.xpose.msra.mxu0 0.0
    %337 = vmatprep.subr.mxu0 0.0
    %338 = vmatpush1.xpose.msra.mxu0 0.0
    %339 = vmatprep.subr.mxu0 0.0
    %340 = vmatpush1.xpose.msra.mxu0 0.0
    %341 = vmatprep.subr.mxu0 0.0
    %342 = vmatpush1.xpose.msra.mxu0 0.0
    %343 = vmatprep.subr.mxu0 0.0
    %344 = vmatpush1.xpose.msra.mxu0 0.0
    %345 = vmatprep.subr.mxu0 0.0
    %346 = vmatpush1.xpose.msra.mxu0 0.0
    %347 = vmatprep.subr.mxu0 0.0
    %348 = vmatpush1.xpose.msra.mxu0 0.0
    %349 = vmatprep.subr.mxu0 0.0
    %350 = vmatpush1.xpose.msra.mxu0 0.0
    %351 = vmatprep.subr.mxu0 0.0
    %352 = vmatpush1.xpose.msra.mxu0 0.0
    %353 = vmatprep.subr.mxu0 0.0
    %354 = vmatpush1.xpose.msra.mxu0 0.0
    %355 = vmatprep.subr.mxu0 0.0
    %356 = vmatpush1.xpose.msra.mxu0 0.0
    %357 = vmatprep.subr.mxu0 0.0
    %358 = vmatpush1.xpose.msra.mxu0 0.0
    %359 = vmatprep.subr.mxu0 0.0
    %360 = vmatpush1.xpose.msra.mxu0 0.0
    %361 = vmatprep.subr.mxu0 0.0
    %362 = vmatpush1.xpose.msra.mxu0 0.0
    %363 = vmatprep.subr.mxu0 0.0
    %364 = vmatpush1.xpose.msra.mxu0 0.0
    %365 = vmatprep.subr.mxu0 0.0
    %366 = vmatpush1.xpose.msra.mxu0 0.0
    %367 = vmatprep.subr.mxu0 0.0
    %368 = vmatpush1.xpose.msra.mxu0 0.0
    %369 = vmatprep.subr.mxu0 0.0
    %370 = vmatpush1.xpose.msra.mxu0 0.0
    %371 = vmatprep.subr.mxu0 0.0
    %372 = vmatpush1.xpose.msra.mxu0 0.0
    %373 = vmatprep.subr.mxu0 0.0
    %374 = vmatpush1.xpose.msra.mxu0 0.0
    %375 = vmatprep.subr.mxu0 0.0
    %376 = vmatpush1.xpose.msra.mxu0 0.0
    %377 = vmatprep.subr.mxu0 0.0
    %378 = vmatpush1.xpose.msra.mxu0 0.0
    %379 = vmatprep.subr.mxu0 0.0
    %380 = vmatpush1.xpose.msra.mxu0 0.0
    %381 = vmatprep.subr.mxu0 0.0
    %382 = vmatpush1.xpose.msra.mxu0 0.0
    %383 = vmatprep.subr.mxu0 0.0
    %384 = vmatpush1.xpose.msra.mxu0 0.0
    %385 = vmatprep.subr.mxu0 0.0
    %386 = vmatpush1.xpose.msra.mxu0 0.0
    %387 = vmatprep.subr.mxu0 0.0
    %388 = vmatpush1.xpose.msra.mxu0 0.0
    %389 = vmatprep.subr.mxu0 0.0
    %390 = vmatpush1.xpose.msra.mxu0 0.0
    %391 = vmatprep.subr.mxu0 0.0
    %392 = vmatpush1.xpose.msra.mxu0 0.0
    %393 = vmatprep.subr.mxu0 0.0
    %394 = vmatpush1.xpose.msra.mxu0 0.0
    %395 = vmatprep.mubr.f32.mxu0 0.0
    %396 = vmatmul.mubr.f32.gmra.mrb[0].mxu0 %v323
    %v397 = vpop.f32.mrb[0].mxu0
    %v398 = vadd.f32 0.0, %v397
    %v399 = vpop.f32.mrb[0].mxu0
    %400 = vmatprep.mubr.f32.mxu0 0.0
    %401 = vmatmul.mubr.f32.gmra.mrb[0].mxu0 %v325
    %v402 = vpop.f32.mrb[0].mxu0
    %v403 = vadd.f32 0.0, %v402
    %v404 = vpop.f32.mrb[0].mxu0
    %405 = vdwg.mxu0
    %v406 = vmul.f32 %v309, 0.35355338
    %v407 = vmul.f32 %v314, 0.35355338
    %v408 = vmul.f32 %v398, 0.35355338
    %v409 = vmul.f32 %v403, 0.35355338
    %vm410 = vcmask 130048
    %v411 = vsel %vm410, %v406, -inf
    %412 = vmax.xlane.f32.xlu0 %v411
    %v413 = vpop.xlane.xlu0 %412
    %v414 = vsel %vm410, %v407, -inf
    %415 = vmax.xlane.f32.xlu0 %v414
    %v416 = vpop.xlane.xlu0 %415
    %v417 = vsel %vm410, %v408, -inf
    %418 = vmax.xlane.f32.xlu0 %v417
    %v419 = vpop.xlane.xlu0 %418
    %v420 = vsel %vm410, %v409, -inf
    %421 = vmax.xlane.f32.xlu0 %v420
    %v422 = vpop.xlane.xlu0 %421
    %v423 = vsub.f32 %v406, %v413
    %v424 = vsub.f32 %v407, %v416
    %v425 = vsub.f32 %v408, %v419
    %v426 = vsub.f32 %v409, %v422
    %v427 = vmul.f32 %v423, 1.442695
    %v428 = vpow.pop %v427
    %v429 = vmul.f32 %v424, 1.442695
    %v430 = vpow.pop %v429
    %v431 = vmul.f32 %v425, 1.442695
    %v432 = vpow.pop %v431
    %v433 = vmul.f32 %v426, 1.442695
    %v434 = vpow.pop %v433
    %v435 = vsel %vm410, %v428, 0.0
    %436 = vadd.xlane.f32.xlu0 %v435
    %v437 = vpop.xlane.xlu0 %436
    %v438 = vsel %vm410, %v430, 0.0
    %439 = vadd.xlane.f32.xlu0 %v438
    %v440 = vpop.xlane.xlu0 %439
    %v441 = vsel %vm410, %v432, 0.0
    %442 = vadd.xlane.f32.xlu0 %v441
    %v443 = vpop.xlane.xlu0 %442
    %v444 = vsel %vm410, %v434, 0.0
    %445 = vadd.xlane.f32.xlu0 %v444
    %v446 = vpop.xlane.xlu0 %445
    %v447 = vrcp.pop %v437
    %v448 = vrcp.pop %v440
    %v449 = vrcp.pop %v443
    %v450 = vrcp.pop %v446
    %v451 = vmul.f32 %v428, %v447
    %v452 = vmul.f32 %v430, %v448
    %v453 = vmul.f32 %v432, %v449
    %v454 = vmul.f32 %v434, %v450
    %455 = vrot.lane.b32.xlu0 %v209, 64
    %v456 = vpop.permute.xlu0 %455
    %457 = vrot.lane.b32.xlu0 %v214, 64
    %v458 = vpop.permute.xlu0 %457
    %v462 = vsel %vm410, %v451, 0
    %v465 = vsel %vm410, %v452, 0
    %467 = vmatprep.subr.mxu0 0.0
    %468 = vmatpush1.msra.mxu0 %v456
    %469 = vmatprep.subr.mxu0 0.0
    %470 = vmatpush1.msra.mxu0 %v458
    %471 = vmatprep.subr.mxu0 0.0
    %472 = vmatpush1.msra.mxu0 0.0
    %473 = vmatprep.subr.mxu0 0.0
    %474 = vmatpush1.msra.mxu0 0.0
    %475 = vmatprep.subr.mxu0 0.0
    %476 = vmatpush1.msra.mxu0 0.0
    %477 = vmatprep.subr.mxu0 0.0
    %478 = vmatpush1.msra.mxu0 0.0
    %479 = vmatprep.subr.mxu0 0.0
    %480 = vmatpush1.msra.mxu0 0.0
    %481 = vmatprep.subr.mxu0 0.0
    %482 = vmatpush1.msra.mxu0 0.0
    %483 = vmatprep.subr.mxu0 0.0
    %484 = vmatpush1.msra.mxu0 0.0
    %485 = vmatprep.subr.mxu0 0.0
    %486 = vmatpush1.msra.mxu0 0.0
    %487 = vmatprep.subr.mxu0 0.0
    %488 = vmatpush1.msra.mxu0 0.0
    %489 = vmatprep.subr.mxu0 0.0
    %490 = vmatpush1.msra.mxu0 0.0
    %491 = vmatprep.subr.mxu0 0.0
    %492 = vmatpush1.msra.mxu0 0.0
    %493 = vmatprep.subr.mxu0 0.0
    %494 = vmatpush1.msra.mxu0 0.0
    %495 = vmatprep.subr.mxu0 0.0
    %496 = vmatpush1.msra.mxu0 0.0
    %497 = vmatprep.subr.mxu0 0.0
    %498 = vmatpush1.msra.mxu0 0.0
    %499 = vmatprep.subr.mxu0 0.0
    %500 = vmatpush1.msra.mxu0 0.0
    %501 = vmatprep.subr.mxu0 0.0
    %502 = vmatpush1.msra.mxu0 0.0
    %503 = vmatprep.subr.mxu0 0.0
    %504 = vmatpush1.msra.mxu0 0.0
    %505 = vmatprep.subr.mxu0 0.0
    %506 = vmatpush1.msra.mxu0 0.0
    %507 = vmatprep.subr.mxu0 0.0
    %508 = vmatpush1.msra.mxu0 0.0
    %509 = vmatprep.subr.mxu0 0.0
    %510 = vmatpush1.msra.mxu0 0.0
    %511 = vmatprep.subr.mxu0 0.0
    %512 = vmatpush1.msra.mxu0 0.0
    %513 = vmatprep.subr.mxu0 0.0
    %514 = vmatpush1.msra.mxu0 0.0
    %515 = vmatprep.subr.mxu0 0.0
    %516 = vmatpush1.msra.mxu0 0.0
    %517 = vmatprep.subr.mxu0 0.0
    %518 = vmatpush1.msra.mxu0 0.0
    %519 = vmatprep.subr.mxu0 0.0
    %520 = vmatpush1.msra.mxu0 0.0
    %521 = vmatprep.subr.mxu0 0.0
    %522 = vmatpush1.msra.mxu0 0.0
    %523 = vmatprep.subr.mxu0 0.0
    %524 = vmatpush1.msra.mxu0 0.0
    %525 = vmatprep.subr.mxu0 0.0
    %526 = vmatpush1.msra.mxu0 0.0
    %527 = vmatprep.subr.mxu0 0.0
    %528 = vmatpush1.msra.mxu0 0.0
    %529 = vmatprep.subr.mxu0 0.0
    %530 = vmatpush1.msra.mxu0 0.0
    %531 = vmatprep.mubr.f32.mxu0 0.0
    %532 = vmatmul.mubr.f32.gmra.mrb[0].mxu0 %v462
    %v533 = vpop.f32.mrb[0].mxu0
    %v534 = vadd.f32 0.0, %v533
    %v535 = vpop.f32.mrb[0].mxu0
    %536 = vmatprep.mubr.f32.mxu0 0.0
    %537 = vmatmul.mubr.f32.gmra.mrb[0].mxu0 %v465
    %v538 = vpop.f32.mrb[0].mxu0
    %v539 = vadd.f32 0.0, %v538
    %v540 = vpop.f32.mrb[0].mxu0
    %541 = vdwg.mxu0
    %542 = vrot.lane.b32.xlu0 %v219, 64
    %v543 = vpop.permute.xlu0 %542
    %544 = vrot.lane.b32.xlu0 %v224, 64
    %v545 = vpop.permute.xlu0 %544
    %v549 = vsel %vm410, %v453, 0
    %v552 = vsel %vm410, %v454, 0
    %554 = vmatprep.subr.mxu0 0.0
    %555 = vmatpush1.msra.mxu0 %v543
    %556 = vmatprep.subr.mxu0 0.0
    %557 = vmatpush1.msra.mxu0 %v545
    %558 = vmatprep.subr.mxu0 0.0
    %559 = vmatpush1.msra.mxu0 0.0
    %560 = vmatprep.subr.mxu0 0.0
    %561 = vmatpush1.msra.mxu0 0.0
    %562 = vmatprep.subr.mxu0 0.0
    %563 = vmatpush1.msra.mxu0 0.0
    %564 = vmatprep.subr.mxu0 0.0
    %565 = vmatpush1.msra.mxu0 0.0
    %566 = vmatprep.subr.mxu0 0.0
    %567 = vmatpush1.msra.mxu0 0.0
    %568 = vmatprep.subr.mxu0 0.0
    %569 = vmatpush1.msra.mxu0 0.0
    %570 = vmatprep.subr.mxu0 0.0
    %571 = vmatpush1.msra.mxu0 0.0
    %572 = vmatprep.subr.mxu0 0.0
    %573 = vmatpush1.msra.mxu0 0.0
    %574 = vmatprep.subr.mxu0 0.0
    %575 = vmatpush1.msra.mxu0 0.0
    %576 = vmatprep.subr.mxu0 0.0
    %577 = vmatpush1.msra.mxu0 0.0
    %578 = vmatprep.subr.mxu0 0.0
    %579 = vmatpush1.msra.mxu0 0.0
    %580 = vmatprep.subr.mxu0 0.0
    %581 = vmatpush1.msra.mxu0 0.0
    %582 = vmatprep.subr.mxu0 0.0
    %583 = vmatpush1.msra.mxu0 0.0
    %584 = vmatprep.subr.mxu0 0.0
    %585 = vmatpush1.msra.mxu0 0.0
    %586 = vmatprep.subr.mxu0 0.0
    %587 = vmatpush1.msra.mxu0 0.0
    %588 = vmatprep.subr.mxu0 0.0
    %589 = vmatpush1.msra.mxu0 0.0
    %590 = vmatprep.subr.mxu0 0.0
    %591 = vmatpush1.msra.mxu0 0.0
    %592 = vmatprep.subr.mxu0 0.0
    %593 = vmatpush1.msra.mxu0 0.0
    %594 = vmatprep.subr.mxu0 0.0
    %595 = vmatpush1.msra.mxu0 0.0
    %596 = vmatprep.subr.mxu0 0.0
    %597 = vmatpush1.msra.mxu0 0.0
    %598 = vmatprep.subr.mxu0 0.0
    %599 = vmatpush1.msra.mxu0 0.0
    %600 = vmatprep.subr.mxu0 0.0
    %601 = vmatpush1.msra.mxu0 0.0
    %602 = vmatprep.subr.mxu0 0.0
    %603 = vmatpush1.msra.mxu0 0.0
    %604 = vmatprep.subr.mxu0 0.0
    %605 = vmatpush1.msra.mxu0 0.0
    %606 = vmatprep.subr.mxu0 0.0
    %607 = vmatpush1.msra.mxu0 0.0
    %608 = vmatprep.subr.mxu0 0.0
    %609 = vmatpush1.msra.mxu0 0.0
    %610 = vmatprep.subr.mxu0 0.0
    %611 = vmatpush1.msra.mxu0 0.0
    %612 = vmatprep.subr.mxu0 0.0
    %613 = vmatpush1.msra.mxu0 0.0
    %614 = vmatprep.subr.mxu0 0.0
    %615 = vmatpush1.msra.mxu0 0.0
    %616 = vmatprep.subr.mxu0 0.0
    %617 = vmatpush1.msra.mxu0 0.0
    %618 = vmatprep.mubr.f32.mxu0 0.0
    %619 = vmatmul.mubr.f32.gmra.mrb[0].mxu0 %v549
    %v620 = vpop.f32.mrb[0].mxu0
    %v621 = vadd.f32 0.0, %v620
    %v622 = vpop.f32.mrb[0].mxu0
    %623 = vmatprep.mubr.f32.mxu0 0.0
    %624 = vmatmul.mubr.f32.gmra.mrb[0].mxu0 %v552
    %v625 = vpop.f32.mrb[0].mxu0
    %v626 = vadd.f32 0.0, %v625
    %v627 = vpop.f32.mrb[0].mxu0
    %628 = vdwg.mxu0
    %629 = vrot.lane.b32.xlu0 %v209, 120
    %v630 = vpop.permute.xlu0 %629
    %631 = vrot.lane.b32.xlu0 %v214, 120
    %v632 = vpop.permute.xlu0 %631
    %633 = vrot.lane.b32.xlu0 %v209, 88
    %v634 = vpop.permute.xlu0 %633
    %635 = vrot.lane.b32.xlu0 %v214, 88
    %v636 = vpop.permute.xlu0 %635
    %v637 = vsel %vm233, %v630, 0
    %v639 = vsel %vm233, %v632, 0
    %v641 = vsel %vm233, %v634, 0
    %v643 = vsel %vm233, %v636, 0
    %645 = vmatprep.subr.mxu0 0.0
    %646 = vmatpush1.xpose.msra.mxu0 %v641
    %647 = vmatprep.subr.mxu0 0.0
    %648 = vmatpush1.xpose.msra.mxu0 %v643
    %649 = vmatprep.subr.mxu0 0.0
    %650 = vmatpush1.xpose.msra.mxu0 0.0
    %651 = vmatprep.subr.mxu0 0.0
    %652 = vmatpush1.xpose.msra.mxu0 0.0
    %653 = vmatprep.subr.mxu0 0.0
    %654 = vmatpush1.xpose.msra.mxu0 0.0
    %655 = vmatprep.subr.mxu0 0.0
    %656 = vmatpush1.xpose.msra.mxu0 0.0
    %657 = vmatprep.subr.mxu0 0.0
    %658 = vmatpush1.xpose.msra.mxu0 0.0
    %659 = vmatprep.subr.mxu0 0.0
    %660 = vmatpush1.xpose.msra.mxu0 0.0
    %661 = vmatprep.subr.mxu0 0.0
    %662 = vmatpush1.xpose.msra.mxu0 0.0
    %663 = vmatprep.subr.mxu0 0.0
    %664 = vmatpush1.xpose.msra.mxu0 0.0
    %665 = vmatprep.subr.mxu0 0.0
    %666 = vmatpush1.xpose.msra.mxu0 0.0
    %667 = vmatprep.subr.mxu0 0.0
    %668 = vmatpush1.xpose.msra.mxu0 0.0
    %669 = vmatprep.subr.mxu0 0.0
    %670 = vmatpush1.xpose.msra.mxu0 0.0
    %671 = vmatprep.subr.mxu0 0.0
    %672 = vmatpush1.xpose.msra.mxu0 0.0
    %673 = vmatprep.subr.mxu0 0.0
    %674 = vmatpush1.xpose.msra.mxu0 0.0
    %675 = vmatprep.subr.mxu0 0.0
    %676 = vmatpush1.xpose.msra.mxu0 0.0
    %677 = vmatprep.subr.mxu0 0.0
    %678 = vmatpush1.xpose.msra.mxu0 0.0
    %679 = vmatprep.subr.mxu0 0.0
    %680 = vmatpush1.xpose.msra.mxu0 0.0
    %681 = vmatprep.subr.mxu0 0.0
    %682 = vmatpush1.xpose.msra.mxu0 0.0
    %683 = vmatprep.subr.mxu0 0.0
    %684 = vmatpush1.xpose.msra.mxu0 0.0
    %685 = vmatprep.subr.mxu0 0.0
    %686 = vmatpush1.xpose.msra.mxu0 0.0
    %687 = vmatprep.subr.mxu0 0.0
    %688 = vmatpush1.xpose.msra.mxu0 0.0
    %689 = vmatprep.subr.mxu0 0.0
    %690 = vmatpush1.xpose.msra.mxu0 0.0
    %691 = vmatprep.subr.mxu0 0.0
    %692 = vmatpush1.xpose.msra.mxu0 0.0
    %693 = vmatprep.subr.mxu0 0.0
    %694 = vmatpush1.xpose.msra.mxu0 0.0
    %695 = vmatprep.subr.mxu0 0.0
    %696 = vmatpush1.xpose.msra.mxu0 0.0
    %697 = vmatprep.subr.mxu0 0.0
    %698 = vmatpush1.xpose.msra.mxu0 0.0
    %699 = vmatprep.subr.mxu0 0.0
    %700 = vmatpush1.xpose.msra.mxu0 0.0
    %701 = vmatprep.subr.mxu0 0.0
    %702 = vmatpush1.xpose.msra.mxu0 0.0
    %703 = vmatprep.subr.mxu0 0.0
    %704 = vmatpush1.xpose.msra.mxu0 0.0
    %705 = vmatprep.subr.mxu0 0.0
    %706 = vmatpush1.xpose.msra.mxu0 0.0
    %707 = vmatprep.subr.mxu0 0.0
    %708 = vmatpush1.xpose.msra.mxu0 0.0
    %709 = vmatprep.mubr.f32.mxu0 0.0
    %710 = vmatmul.mubr.f32.gmra.mrb[0].mxu0 %v637
    %v711 = vpop.f32.mrb[0].mxu0
    %v712 = vadd.f32 0.0, %v711
    %v713 = vpop.f32.mrb[0].mxu0
    %714 = vmatprep.mubr.f32.mxu0 0.0
    %715 = vmatmul.mubr.f32.gmra.mrb[0].mxu0 %v639
    %v716 = vpop.f32.mrb[0].mxu0
    %v717 = vadd.f32 0.0, %v716
    %v718 = vpop.f32.mrb[0].mxu0
    %719 = vdwg.mxu0
    %720 = vrot.lane.b32.xlu0 %v219, 120
    %v721 = vpop.permute.xlu0 %720
    %722 = vrot.lane.b32.xlu0 %v224, 120
    %v723 = vpop.permute.xlu0 %722
    %724 = vrot.lane.b32.xlu0 %v219, 88
    %v725 = vpop.permute.xlu0 %724
    %726 = vrot.lane.b32.xlu0 %v224, 88
    %v727 = vpop.permute.xlu0 %726
    %v728 = vsel %vm233, %v721, 0
    %v730 = vsel %vm233, %v723, 0
    %v732 = vsel %vm233, %v725, 0
    %v734 = vsel %vm233, %v727, 0
    %736 = vmatprep.subr.mxu0 0.0
    %737 = vmatpush1.xpose.msra.mxu0 %v732
    %738 = vmatprep.subr.mxu0 0.0
    %739 = vmatpush1.xpose.msra.mxu0 %v734
    %740 = vmatprep.subr.mxu0 0.0
    %741 = vmatpush1.xpose.msra.mxu0 0.0
    %742 = vmatprep.subr.mxu0 0.0
    %743 = vmatpush1.xpose.msra.mxu0 0.0
    %744 = vmatprep.subr.mxu0 0.0
    %745 = vmatpush1.xpose.msra.mxu0 0.0
    %746 = vmatprep.subr.mxu0 0.0
    %747 = vmatpush1.xpose.msra.mxu0 0.0
    %748 = vmatprep.subr.mxu0 0.0
    %749 = vmatpush1.xpose.msra.mxu0 0.0
    %750 = vmatprep.subr.mxu0 0.0
    %751 = vmatpush1.xpose.msra.mxu0 0.0
    %752 = vmatprep.subr.mxu0 0.0
    %753 = vmatpush1.xpose.msra.mxu0 0.0
    %754 = vmatprep.subr.mxu0 0.0
    %755 = vmatpush1.xpose.msra.mxu0 0.0
    %756 = vmatprep.subr.mxu0 0.0
    %757 = vmatpush1.xpose.msra.mxu0 0.0
    %758 = vmatprep.subr.mxu0 0.0
    %759 = vmatpush1.xpose.msra.mxu0 0.0
    %760 = vmatprep.subr.mxu0 0.0
    %761 = vmatpush1.xpose.msra.mxu0 0.0
    %762 = vmatprep.subr.mxu0 0.0
    %763 = vmatpush1.xpose.msra.mxu0 0.0
    %764 = vmatprep.subr.mxu0 0.0
    %765 = vmatpush1.xpose.msra.mxu0 0.0
    %766 = vmatprep.subr.mxu0 0.0
    %767 = vmatpush1.xpose.msra.mxu0 0.0
    %768 = vmatprep.subr.mxu0 0.0
    %769 = vmatpush1.xpose.msra.mxu0 0.0
    %770 = vmatprep.subr.mxu0 0.0
    %771 = vmatpush1.xpose.msra.mxu0 0.0
    %772 = vmatprep.subr.mxu0 0.0
    %773 = vmatpush1.xpose.msra.mxu0 0.0
    %774 = vmatprep.subr.mxu0 0.0
    %775 = vmatpush1.xpose.msra.mxu0 0.0
    %776 = vmatprep.subr.mxu0 0.0
    %777 = vmatpush1.xpose.msra.mxu0 0.0
    %778 = vmatprep.subr.mxu0 0.0
    %779 = vmatpush1.xpose.msra.mxu0 0.0
    %780 = vmatprep.subr.mxu0 0.0
    %781 = vmatpush1.xpose.msra.mxu0 0.0
    %782 = vmatprep.subr.mxu0 0.0
    %783 = vmatpush1.xpose.msra.mxu0 0.0
    %784 = vmatprep.subr.mxu0 0.0
    %785 = vmatpush1.xpose.msra.mxu0 0.0
    %786 = vmatprep.subr.mxu0 0.0
    %787 = vmatpush1.xpose.msra.mxu0 0.0
    %788 = vmatprep.subr.mxu0 0.0
    %789 = vmatpush1.xpose.msra.mxu0 0.0
    %790 = vmatprep.subr.mxu0 0.0
    %791 = vmatpush1.xpose.msra.mxu0 0.0
    %792 = vmatprep.subr.mxu0 0.0
    %793 = vmatpush1.xpose.msra.mxu0 0.0
    %794 = vmatprep.subr.mxu0 0.0
    %795 = vmatpush1.xpose.msra.mxu0 0.0
    %796 = vmatprep.subr.mxu0 0.0
    %797 = vmatpush1.xpose.msra.mxu0 0.0
    %798 = vmatprep.subr.mxu0 0.0
    %799 = vmatpush1.xpose.msra.mxu0 0.0
    %800 = vmatprep.mubr.f32.mxu0 0.0
    %801 = vmatmul.mubr.f32.gmra.mrb[0].mxu0 %v728
    %v802 = vpop.f32.mrb[0].mxu0
    %v803 = vadd.f32 0.0, %v802
    %v804 = vpop.f32.mrb[0].mxu0
    %805 = vmatprep.mubr.f32.mxu0 0.0
    %806 = vmatmul.mubr.f32.gmra.mrb[0].mxu0 %v730
    %v807 = vpop.f32.mrb[0].mxu0
    %v808 = vadd.f32 0.0, %v807
    %v809 = vpop.f32.mrb[0].mxu0
    %810 = vdwg.mxu0
    %v811 = vmul.f32 %v712, 0.35355338
    %v812 = vmul.f32 %v717, 0.35355338
    %v813 = vmul.f32 %v803, 0.35355338
    %v814 = vmul.f32 %v808, 0.35355338
    %v815 = vsel %vm410, %v811, -inf
    %816 = vmax.xlane.f32.xlu0 %v815
    %v817 = vpop.xlane.xlu0 %816
    %v818 = vsel %vm410, %v812, -inf
    %819 = vmax.xlane.f32.xlu0 %v818
    %v820 = vpop.xlane.xlu0 %819
    %v821 = vsel %vm410, %v813, -inf
    %822 = vmax.xlane.f32.xlu0 %v821
    %v823 = vpop.xlane.xlu0 %822
    %v824 = vsel %vm410, %v814, -inf
    %825 = vmax.xlane.f32.xlu0 %v824
    %v826 = vpop.xlane.xlu0 %825
    %v827 = vsub.f32 %v811, %v817
    %v828 = vsub.f32 %v812, %v820
    %v829 = vsub.f32 %v813, %v823
    %v830 = vsub.f32 %v814, %v826
    %v831 = vmul.f32 %v827, 1.442695
    %v832 = vpow.pop %v831
    %v833 = vmul.f32 %v828, 1.442695
    %v834 = vpow.pop %v833
    %v835 = vmul.f32 %v829, 1.442695
    %v836 = vpow.pop %v835
    %v837 = vmul.f32 %v830, 1.442695
    %v838 = vpow.pop %v837
    %v839 = vsel %vm410, %v832, 0.0
    %840 = vadd.xlane.f32.xlu0 %v839
    %v841 = vpop.xlane.xlu0 %840
    %v842 = vsel %vm410, %v834, 0.0
    %843 = vadd.xlane.f32.xlu0 %v842
    %v844 = vpop.xlane.xlu0 %843
    %v845 = vsel %vm410, %v836, 0.0
    %846 = vadd.xlane.f32.xlu0 %v845
    %v847 = vpop.xlane.xlu0 %846
    %v848 = vsel %vm410, %v838, 0.0
    %849 = vadd.xlane.f32.xlu0 %v848
    %v850 = vpop.xlane.xlu0 %849
    %v851 = vrcp.pop %v841
    %v852 = vrcp.pop %v844
    %v853 = vrcp.pop %v847
    %v854 = vrcp.pop %v850
    %v855 = vmul.f32 %v832, %v851
    %v856 = vmul.f32 %v834, %v852
    %v857 = vmul.f32 %v836, %v853
    %v858 = vmul.f32 %v838, %v854
    %859 = vrot.lane.b32.xlu0 %v209, 56
    %v860 = vpop.permute.xlu0 %859
    %861 = vrot.lane.b32.xlu0 %v214, 56
    %v862 = vpop.permute.xlu0 %861
    %v866 = vsel %vm410, %v855, 0
    %v869 = vsel %vm410, %v856, 0
    %871 = vmatprep.subr.mxu0 0.0
    %872 = vmatpush1.msra.mxu0 %v860
    %873 = vmatprep.subr.mxu0 0.0
    %874 = vmatpush1.msra.mxu0 %v862
    %875 = vmatprep.subr.mxu0 0.0
    %876 = vmatpush1.msra.mxu0 0.0
    %877 = vmatprep.subr.mxu0 0.0
    %878 = vmatpush1.msra.mxu0 0.0
    %879 = vmatprep.subr.mxu0 0.0
    %880 = vmatpush1.msra.mxu0 0.0
    %881 = vmatprep.subr.mxu0 0.0
    %882 = vmatpush1.msra.mxu0 0.0
    %883 = vmatprep.subr.mxu0 0.0
    %884 = vmatpush1.msra.mxu0 0.0
    %885 = vmatprep.subr.mxu0 0.0
    %886 = vmatpush1.msra.mxu0 0.0
    %887 = vmatprep.subr.mxu0 0.0
    %888 = vmatpush1.msra.mxu0 0.0
    %889 = vmatprep.subr.mxu0 0.0
    %890 = vmatpush1.msra.mxu0 0.0
    %891 = vmatprep.subr.mxu0 0.0
    %892 = vmatpush1.msra.mxu0 0.0
    %893 = vmatprep.subr.mxu0 0.0
    %894 = vmatpush1.msra.mxu0 0.0
    %895 = vmatprep.subr.mxu0 0.0
    %896 = vmatpush1.msra.mxu0 0.0
    %897 = vmatprep.subr.mxu0 0.0
    %898 = vmatpush1.msra.mxu0 0.0
    %899 = vmatprep.subr.mxu0 0.0
    %900 = vmatpush1.msra.mxu0 0.0
    %901 = vmatprep.subr.mxu0 0.0
    %902 = vmatpush1.msra.mxu0 0.0
    %903 = vmatprep.subr.mxu0 0.0
    %904 = vmatpush1.msra.mxu0 0.0
    %905 = vmatprep.subr.mxu0 0.0
    %906 = vmatpush1.msra.mxu0 0.0
    %907 = vmatprep.subr.mxu0 0.0
    %908 = vmatpush1.msra.mxu0 0.0
    %909 = vmatprep.subr.mxu0 0.0
    %910 = vmatpush1.msra.mxu0 0.0
    %911 = vmatprep.subr.mxu0 0.0
    %912 = vmatpush1.msra.mxu0 0.0
    %913 = vmatprep.subr.mxu0 0.0
    %914 = vmatpush1.msra.mxu0 0.0
    %915 = vmatprep.subr.mxu0 0.0
    %916 = vmatpush1.msra.mxu0 0.0
    %917 = vmatprep.subr.mxu0 0.0
    %918 = vmatpush1.msra.mxu0 0.0
    %919 = vmatprep.subr.mxu0 0.0
    %920 = vmatpush1.msra.mxu0 0.0
    %921 = vmatprep.subr.mxu0 0.0
    %922 = vmatpush1.msra.mxu0 0.0
    %923 = vmatprep.subr.mxu0 0.0
    %924 = vmatpush1.msra.mxu0 0.0
    %925 = vmatprep.subr.mxu0 0.0
    %926 = vmatpush1.msra.mxu0 0.0
    %927 = vmatprep.subr.mxu0 0.0
    %928 = vmatpush1.msra.mxu0 0.0
    %929 = vmatprep.subr.mxu0 0.0
    %930 = vmatpush1.msra.mxu0 0.0
    %931 = vmatprep.subr.mxu0 0.0
    %932 = vmatpush1.msra.mxu0 0.0
    %933 = vmatprep.subr.mxu0 0.0
    %934 = vmatpush1.msra.mxu0 0.0
    %935 = vmatprep.mubr.f32.mxu0 0.0
    %936 = vmatmul.mubr.f32.gmra.mrb[0].mxu0 %v866
    %v937 = vpop.f32.mrb[0].mxu0
    %v938 = vadd.f32 0.0, %v937
    %v939 = vpop.f32.mrb[0].mxu0
    %940 = vmatprep.mubr.f32.mxu0 0.0
    %941 = vmatmul.mubr.f32.gmra.mrb[0].mxu0 %v869
    %v942 = vpop.f32.mrb[0].mxu0
    %v943 = vadd.f32 0.0, %v942
    %v944 = vpop.f32.mrb[0].mxu0
    %945 = vdwg.mxu0
    %946 = vrot.lane.b32.xlu0 %v219, 56
    %v947 = vpop.permute.xlu0 %946
    %948 = vrot.lane.b32.xlu0 %v224, 56
    %v949 = vpop.permute.xlu0 %948
    %v953 = vsel %vm410, %v857, 0
    %v956 = vsel %vm410, %v858, 0
    %958 = vmatprep.subr.mxu0 0.0
    %959 = vmatpush1.msra.mxu0 %v947
    %960 = vmatprep.subr.mxu0 0.0
    %961 = vmatpush1.msra.mxu0 %v949
    %962 = vmatprep.subr.mxu0 0.0
    %963 = vmatpush1.msra.mxu0 0.0
    %964 = vmatprep.subr.mxu0 0.0
    %965 = vmatpush1.msra.mxu0 0.0
    %966 = vmatprep.subr.mxu0 0.0
    %967 = vmatpush1.msra.mxu0 0.0
    %968 = vmatprep.subr.mxu0 0.0
    %969 = vmatpush1.msra.mxu0 0.0
    %970 = vmatprep.subr.mxu0 0.0
    %971 = vmatpush1.msra.mxu0 0.0
    %972 = vmatprep.subr.mxu0 0.0
    %973 = vmatpush1.msra.mxu0 0.0
    %974 = vmatprep.subr.mxu0 0.0
    %975 = vmatpush1.msra.mxu0 0.0
    %976 = vmatprep.subr.mxu0 0.0
    %977 = vmatpush1.msra.mxu0 0.0
    %978 = vmatprep.subr.mxu0 0.0
    %979 = vmatpush1.msra.mxu0 0.0
    %980 = vmatprep.subr.mxu0 0.0
    %981 = vmatpush1.msra.mxu0 0.0
    %982 = vmatprep.subr.mxu0 0.0
    %983 = vmatpush1.msra.mxu0 0.0
    %984 = vmatprep.subr.mxu0 0.0
    %985 = vmatpush1.msra.mxu0 0.0
    %986 = vmatprep.subr.mxu0 0.0
    %987 = vmatpush1.msra.mxu0 0.0
    %988 = vmatprep.subr.mxu0 0.0
    %989 = vmatpush1.msra.mxu0 0.0
    %990 = vmatprep.subr.mxu0 0.0
    %991 = vmatpush1.msra.mxu0 0.0
    %992 = vmatprep.subr.mxu0 0.0
    %993 = vmatpush1.msra.mxu0 0.0
    %994 = vmatprep.subr.mxu0 0.0
    %995 = vmatpush1.msra.mxu0 0.0
    %996 = vmatprep.subr.mxu0 0.0
    %997 = vmatpush1.msra.mxu0 0.0
    %998 = vmatprep.subr.mxu0 0.0
    %999 = vmatpush1.msra.mxu0 0.0
    %1000 = vmatprep.subr.mxu0 0.0
    %1001 = vmatpush1.msra.mxu0 0.0
    %1002 = vmatprep.subr.mxu0 0.0
    %1003 = vmatpush1.msra.mxu0 0.0
    %1004 = vmatprep.subr.mxu0 0.0
    %1005 = vmatpush1.msra.mxu0 0.0
    %1006 = vmatprep.subr.mxu0 0.0
    %1007 = vmatpush1.msra.mxu0 0.0
    %1008 = vmatprep.subr.mxu0 0.0
    %1009 = vmatpush1.msra.mxu0 0.0
    %1010 = vmatprep.subr.mxu0 0.0
    %1011 = vmatpush1.msra.mxu0 0.0
    %1012 = vmatprep.subr.mxu0 0.0
    %1013 = vmatpush1.msra.mxu0 0.0
    %1014 = vmatprep.subr.mxu0 0.0
    %1015 = vmatpush1.msra.mxu0 0.0
    %1016 = vmatprep.subr.mxu0 0.0
    %1017 = vmatpush1.msra.mxu0 0.0
    %1018 = vmatprep.subr.mxu0 0.0
    %1019 = vmatpush1.msra.mxu0 0.0
    %1020 = vmatprep.subr.mxu0 0.0
    %1021 = vmatpush1.msra.mxu0 0.0
    %1022 = vmatprep.mubr.f32.mxu0 0.0
    %1023 = vmatmul.mubr.f32.gmra.mrb[0].mxu0 %v953
    %v1024 = vpop.f32.mrb[0].mxu0
    %v1025 = vadd.f32 0.0, %v1024
    %v1026 = vpop.f32.mrb[0].mxu0
    %1027 = vmatprep.mubr.f32.mxu0 0.0
    %1028 = vmatmul.mubr.f32.gmra.mrb[0].mxu0 %v956
    %v1029 = vpop.f32.mrb[0].mxu0
    %v1030 = vadd.f32 0.0, %v1029
    %v1031 = vpop.f32.mrb[0].mxu0
    %1032 = vdwg.mxu0
    %1033 = vrot.lane.b32.xlu0 %v209, 112
    %v1034 = vpop.permute.xlu0 %1033
    %1035 = vrot.lane.b32.xlu0 %v214, 112
    %v1036 = vpop.permute.xlu0 %1035
    %1037 = vrot.lane.b32.xlu0 %v209, 80
    %v1038 = vpop.permute.xlu0 %1037
    %1039 = vrot.lane.b32.xlu0 %v214, 80
    %v1040 = vpop.permute.xlu0 %1039
    %v1041 = vsel %vm233, %v1034, 0
    %v1043 = vsel %vm233, %v1036, 0
    %v1045 = vsel %vm233, %v1038, 0
    %v1047 = vsel %vm233, %v1040, 0
    %1049 = vmatprep.subr.mxu0 0.0
    %1050 = vmatpush1.xpose.msra.mxu0 %v1045
    %1051 = vmatprep.subr.mxu0 0.0
    %1052 = vmatpush1.xpose.msra.mxu0 %v1047
    %1053 = vmatprep.subr.mxu0 0.0
    %1054 = vmatpush1.xpose.msra.mxu0 0.0
    %1055 = vmatprep.subr.mxu0 0.0
    %1056 = vmatpush1.xpose.msra.mxu0 0.0
    %1057 = vmatprep.subr.mxu0 0.0
    %1058 = vmatpush1.xpose.msra.mxu0 0.0
    %1059 = vmatprep.subr.mxu0 0.0
    %1060 = vmatpush1.xpose.msra.mxu0 0.0
    %1061 = vmatprep.subr.mxu0 0.0
    %1062 = vmatpush1.xpose.msra.mxu0 0.0
    %1063 = vmatprep.subr.mxu0 0.0
    %1064 = vmatpush1.xpose.msra.mxu0 0.0
    %1065 = vmatprep.subr.mxu0 0.0
    %1066 = vmatpush1.xpose.msra.mxu0 0.0
    %1067 = vmatprep.subr.mxu0 0.0
    %1068 = vmatpush1.xpose.msra.mxu0 0.0
    %1069 = vmatprep.subr.mxu0 0.0
    %1070 = vmatpush1.xpose.msra.mxu0 0.0
    %1071 = vmatprep.subr.mxu0 0.0
    %1072 = vmatpush1.xpose.msra.mxu0 0.0
    %1073 = vmatprep.subr.mxu0 0.0
    %1074 = vmatpush1.xpose.msra.mxu0 0.0
    %1075 = vmatprep.subr.mxu0 0.0
    %1076 = vmatpush1.xpose.msra.mxu0 0.0
    %1077 = vmatprep.subr.mxu0 0.0
    %1078 = vmatpush1.xpose.msra.mxu0 0.0
    %1079 = vmatprep.subr.mxu0 0.0
    %1080 = vmatpush1.xpose.msra.mxu0 0.0
    %1081 = vmatprep.subr.mxu0 0.0
    %1082 = vmatpush1.xpose.msra.mxu0 0.0
    %1083 = vmatprep.subr.mxu0 0.0
    %1084 = vmatpush1.xpose.msra.mxu0 0.0
    %1085 = vmatprep.subr.mxu0 0.0
    %1086 = vmatpush1.xpose.msra.mxu0 0.0
    %1087 = vmatprep.subr.mxu0 0.0
    %1088 = vmatpush1.xpose.msra.mxu0 0.0
    %1089 = vmatprep.subr.mxu0 0.0
    %1090 = vmatpush1.xpose.msra.mxu0 0.0
    %1091 = vmatprep.subr.mxu0 0.0
    %1092 = vmatpush1.xpose.msra.mxu0 0.0
    %1093 = vmatprep.subr.mxu0 0.0
    %1094 = vmatpush1.xpose.msra.mxu0 0.0
    %1095 = vmatprep.subr.mxu0 0.0
    %1096 = vmatpush1.xpose.msra.mxu0 0.0
    %1097 = vmatprep.subr.mxu0 0.0
    %1098 = vmatpush1.xpose.msra.mxu0 0.0
    %1099 = vmatprep.subr.mxu0 0.0
    %1100 = vmatpush1.xpose.msra.mxu0 0.0
    %1101 = vmatprep.subr.mxu0 0.0
    %1102 = vmatpush1.xpose.msra.mxu0 0.0
    %1103 = vmatprep.subr.mxu0 0.0
    %1104 = vmatpush1.xpose.msra.mxu0 0.0
    %1105 = vmatprep.subr.mxu0 0.0
    %1106 = vmatpush1.xpose.msra.mxu0 0.0
    %1107 = vmatprep.subr.mxu0 0.0
    %1108 = vmatpush1.xpose.msra.mxu0 0.0
    %1109 = vmatprep.subr.mxu0 0.0
    %1110 = vmatpush1.xpose.msra.mxu0 0.0
    %1111 = vmatprep.subr.mxu0 0.0
    %1112 = vmatpush1.xpose.msra.mxu0 0.0
    %1113 = vmatprep.mubr.f32.mxu0 0.0
    %1114 = vmatmul.mubr.f32.gmra.mrb[0].mxu0 %v1041
    %v1115 = vpop.f32.mrb[0].mxu0
    %v1116 = vadd.f32 0.0, %v1115
    %v1117 = vpop.f32.mrb[0].mxu0
    %1118 = vmatprep.mubr.f32.mxu0 0.0
    %1119 = vmatmul.mubr.f32.gmra.mrb[0].mxu0 %v1043
    %v1120 = vpop.f32.mrb[0].mxu0
    %v1121 = vadd.f32 0.0, %v1120
    %v1122 = vpop.f32.mrb[0].mxu0
    %1123 = vdwg.mxu0
    %1124 = vrot.lane.b32.xlu0 %v219, 112
    %v1125 = vpop.permute.xlu0 %1124
    %1126 = vrot.lane.b32.xlu0 %v224, 112
    %v1127 = vpop.permute.xlu0 %1126
    %1128 = vrot.lane.b32.xlu0 %v219, 80
    %v1129 = vpop.permute.xlu0 %1128
    %1130 = vrot.lane.b32.xlu0 %v224, 80
    %v1131 = vpop.permute.xlu0 %1130
    %v1132 = vsel %vm233, %v1125, 0
    %v1134 = vsel %vm233, %v1127, 0
    %v1136 = vsel %vm233, %v1129, 0
    %v1138 = vsel %vm233, %v1131, 0
    %1140 = vmatprep.subr.mxu0 0.0
    %1141 = vmatpush1.xpose.msra.mxu0 %v1136
    %1142 = vmatprep.subr.mxu0 0.0
    %1143 = vmatpush1.xpose.msra.mxu0 %v1138
    %1144 = vmatprep.subr.mxu0 0.0
    %1145 = vmatpush1.xpose.msra.mxu0 0.0
    %1146 = vmatprep.subr.mxu0 0.0
    %1147 = vmatpush1.xpose.msra.mxu0 0.0
    %1148 = vmatprep.subr.mxu0 0.0
    %1149 = vmatpush1.xpose.msra.mxu0 0.0
    %1150 = vmatprep.subr.mxu0 0.0
    %1151 = vmatpush1.xpose.msra.mxu0 0.0
    %1152 = vmatprep.subr.mxu0 0.0
    %1153 = vmatpush1.xpose.msra.mxu0 0.0
    %1154 = vmatprep.subr.mxu0 0.0
    %1155 = vmatpush1.xpose.msra.mxu0 0.0
    %1156 = vmatprep.subr.mxu0 0.0
    %1157 = vmatpush1.xpose.msra.mxu0 0.0
    %1158 = vmatprep.subr.mxu0 0.0
    %1159 = vmatpush1.xpose.msra.mxu0 0.0
    %1160 = vmatprep.subr.mxu0 0.0
    %1161 = vmatpush1.xpose.msra.mxu0 0.0
    %1162 = vmatprep.subr.mxu0 0.0
    %1163 = vmatpush1.xpose.msra.mxu0 0.0
    %1164 = vmatprep.subr.mxu0 0.0
    %1165 = vmatpush1.xpose.msra.mxu0 0.0
    %1166 = vmatprep.subr.mxu0 0.0
    %1167 = vmatpush1.xpose.msra.mxu0 0.0
    %1168 = vmatprep.subr.mxu0 0.0
    %1169 = vmatpush1.xpose.msra.mxu0 0.0
    %1170 = vmatprep.subr.mxu0 0.0
    %1171 = vmatpush1.xpose.msra.mxu0 0.0
    %1172 = vmatprep.subr.mxu0 0.0
    %1173 = vmatpush1.xpose.msra.mxu0 0.0
    %1174 = vmatprep.subr.mxu0 0.0
    %1175 = vmatpush1.xpose.msra.mxu0 0.0
    %1176 = vmatprep.subr.mxu0 0.0
    %1177 = vmatpush1.xpose.msra.mxu0 0.0
    %1178 = vmatprep.subr.mxu0 0.0
    %1179 = vmatpush1.xpose.msra.mxu0 0.0
    %1180 = vmatprep.subr.mxu0 0.0
    %1181 = vmatpush1.xpose.msra.mxu0 0.0
    %1182 = vmatprep.subr.mxu0 0.0
    %1183 = vmatpush1.xpose.msra.mxu0 0.0
    %1184 = vmatprep.subr.mxu0 0.0
    %1185 = vmatpush1.xpose.msra.mxu0 0.0
    %1186 = vmatprep.subr.mxu0 0.0
    %1187 = vmatpush1.xpose.msra.mxu0 0.0
    %1188 = vmatprep.subr.mxu0 0.0
    %1189 = vmatpush1.xpose.msra.mxu0 0.0
    %1190 = vmatprep.subr.mxu0 0.0
    %1191 = vmatpush1.xpose.msra.mxu0 0.0
    %1192 = vmatprep.subr.mxu0 0.0
    %1193 = vmatpush1.xpose.msra.mxu0 0.0
    %1194 = vmatprep.subr.mxu0 0.0
    %1195 = vmatpush1.xpose.msra.mxu0 0.0
    %1196 = vmatprep.subr.mxu0 0.0
    %1197 = vmatpush1.xpose.msra.mxu0 0.0
    %1198 = vmatprep.subr.mxu0 0.0
    %1199 = vmatpush1.xpose.msra.mxu0 0.0
    %1200 = vmatprep.subr.mxu0 0.0
    %1201 = vmatpush1.xpose.msra.mxu0 0.0
    %1202 = vmatprep.subr.mxu0 0.0
    %1203 = vmatpush1.xpose.msra.mxu0 0.0
    %1204 = vmatprep.mubr.f32.mxu0 0.0
    %1205 = vmatmul.mubr.f32.gmra.mrb[0].mxu0 %v1132
    %v1206 = vpop.f32.mrb[0].mxu0
    %v1207 = vadd.f32 0.0, %v1206
    %v1208 = vpop.f32.mrb[0].mxu0
    %1209 = vmatprep.mubr.f32.mxu0 0.0
    %1210 = vmatmul.mubr.f32.gmra.mrb[0].mxu0 %v1134
    %v1211 = vpop.f32.mrb[0].mxu0
    %v1212 = vadd.f32 0.0, %v1211
    %v1213 = vpop.f32.mrb[0].mxu0
    %1214 = vdwg.mxu0
    %v1215 = vmul.f32 %v1116, 0.35355338
    %v1216 = vmul.f32 %v1121, 0.35355338
    %v1217 = vmul.f32 %v1207, 0.35355338
    %v1218 = vmul.f32 %v1212, 0.35355338
    %v1219 = vsel %vm410, %v1215, -inf
    %1220 = vmax.xlane.f32.xlu0 %v1219
    %v1221 = vpop.xlane.xlu0 %1220
    %v1222 = vsel %vm410, %v1216, -inf
    %1223 = vmax.xlane.f32.xlu0 %v1222
    %v1224 = vpop.xlane.xlu0 %1223
    %v1225 = vsel %vm410, %v1217, -inf
    %1226 = vmax.xlane.f32.xlu0 %v1225
    %v1227 = vpop.xlane.xlu0 %1226
    %v1228 = vsel %vm410, %v1218, -inf
    %1229 = vmax.xlane.f32.xlu0 %v1228
    %v1230 = vpop.xlane.xlu0 %1229
    %v1231 = vsub.f32 %v1215, %v1221
    %v1232 = vsub.f32 %v1216, %v1224
    %v1233 = vsub.f32 %v1217, %v1227
    %v1234 = vsub.f32 %v1218, %v1230
    %v1235 = vmul.f32 %v1231, 1.442695
    %v1236 = vpow.pop %v1235
    %v1237 = vmul.f32 %v1232, 1.442695
    %v1238 = vpow.pop %v1237
    %v1239 = vmul.f32 %v1233, 1.442695
    %v1240 = vpow.pop %v1239
    %v1241 = vmul.f32 %v1234, 1.442695
    %v1242 = vpow.pop %v1241
    %v1243 = vsel %vm410, %v1236, 0.0
    %1244 = vadd.xlane.f32.xlu0 %v1243
    %v1245 = vpop.xlane.xlu0 %1244
    %v1246 = vsel %vm410, %v1238, 0.0
    %1247 = vadd.xlane.f32.xlu0 %v1246
    %v1248 = vpop.xlane.xlu0 %1247
    %v1249 = vsel %vm410, %v1240, 0.0
    %1250 = vadd.xlane.f32.xlu0 %v1249
    %v1251 = vpop.xlane.xlu0 %1250
    %v1252 = vsel %vm410, %v1242, 0.0
    %1253 = vadd.xlane.f32.xlu0 %v1252
    %v1254 = vpop.xlane.xlu0 %1253
    %v1255 = vrcp.pop %v1245
    %v1256 = vrcp.pop %v1248
    %v1257 = vrcp.pop %v1251
    %v1258 = vrcp.pop %v1254
    %v1259 = vmul.f32 %v1236, %v1255
    %v1260 = vmul.f32 %v1238, %v1256
    %v1261 = vmul.f32 %v1240, %v1257
    %v1262 = vmul.f32 %v1242, %v1258
    %1263 = vrot.lane.b32.xlu0 %v209, 48
    %v1264 = vpop.permute.xlu0 %1263
    %1265 = vrot.lane.b32.xlu0 %v214, 48
    %v1266 = vpop.permute.xlu0 %1265
    %v1270 = vsel %vm410, %v1259, 0
    %v1273 = vsel %vm410, %v1260, 0
    %1275 = vmatprep.subr.mxu0 0.0
    %1276 = vmatpush1.msra.mxu0 %v1264
    %1277 = vmatprep.subr.mxu0 0.0
    %1278 = vmatpush1.msra.mxu0 %v1266
    %1279 = vmatprep.subr.mxu0 0.0
    %1280 = vmatpush1.msra.mxu0 0.0
    %1281 = vmatprep.subr.mxu0 0.0
    %1282 = vmatpush1.msra.mxu0 0.0
    %1283 = vmatprep.subr.mxu0 0.0
    %1284 = vmatpush1.msra.mxu0 0.0
    %1285 = vmatprep.subr.mxu0 0.0
    %1286 = vmatpush1.msra.mxu0 0.0
    %1287 = vmatprep.subr.mxu0 0.0
    %1288 = vmatpush1.msra.mxu0 0.0
    %1289 = vmatprep.subr.mxu0 0.0
    %1290 = vmatpush1.msra.mxu0 0.0
    %1291 = vmatprep.subr.mxu0 0.0
    %1292 = vmatpush1.msra.mxu0 0.0
    %1293 = vmatprep.subr.mxu0 0.0
    %1294 = vmatpush1.msra.mxu0 0.0
    %1295 = vmatprep.subr.mxu0 0.0
    %1296 = vmatpush1.msra.mxu0 0.0
    %1297 = vmatprep.subr.mxu0 0.0
    %1298 = vmatpush1.msra.mxu0 0.0
    %1299 = vmatprep.subr.mxu0 0.0
    %1300 = vmatpush1.msra.mxu0 0.0
    %1301 = vmatprep.subr.mxu0 0.0
    %1302 = vmatpush1.msra.mxu0 0.0
    %1303 = vmatprep.subr.mxu0 0.0
    %1304 = vmatpush1.msra.mxu0 0.0
    %1305 = vmatprep.subr.mxu0 0.0
    %1306 = vmatpush1.msra.mxu0 0.0
    %1307 = vmatprep.subr.mxu0 0.0
    %1308 = vmatpush1.msra.mxu0 0.0
    %1309 = vmatprep.subr.mxu0 0.0
    %1310 = vmatpush1.msra.mxu0 0.0
    %1311 = vmatprep.subr.mxu0 0.0
    %1312 = vmatpush1.msra.mxu0 0.0
    %1313 = vmatprep.subr.mxu0 0.0
    %1314 = vmatpush1.msra.mxu0 0.0
    %1315 = vmatprep.subr.mxu0 0.0
    %1316 = vmatpush1.msra.mxu0 0.0
    %1317 = vmatprep.subr.mxu0 0.0
    %1318 = vmatpush1.msra.mxu0 0.0
    %1319 = vmatprep.subr.mxu0 0.0
    %1320 = vmatpush1.msra.mxu0 0.0
    %1321 = vmatprep.subr.mxu0 0.0
    %1322 = vmatpush1.msra.mxu0 0.0
    %1323 = vmatprep.subr.mxu0 0.0
    %1324 = vmatpush1.msra.mxu0 0.0
    %1325 = vmatprep.subr.mxu0 0.0
    %1326 = vmatpush1.msra.mxu0 0.0
    %1327 = vmatprep.subr.mxu0 0.0
    %1328 = vmatpush1.msra.mxu0 0.0
    %1329 = vmatprep.subr.mxu0 0.0
    %1330 = vmatpush1.msra.mxu0 0.0
    %1331 = vmatprep.subr.mxu0 0.0
    %1332 = vmatpush1.msra.mxu0 0.0
    %1333 = vmatprep.subr.mxu0 0.0
    %1334 = vmatpush1.msra.mxu0 0.0
    %1335 = vmatprep.subr.mxu0 0.0
    %1336 = vmatpush1.msra.mxu0 0.0
    %1337 = vmatprep.subr.mxu0 0.0
    %1338 = vmatpush1.msra.mxu0 0.0
    %1339 = vmatprep.mubr.f32.mxu0 0.0
    %1340 = vmatmul.mubr.f32.gmra.mrb[0].mxu0 %v1270
    %v1341 = vpop.f32.mrb[0].mxu0
    %v1342 = vadd.f32 0.0, %v1341
    %v1343 = vpop.f32.mrb[0].mxu0
    %1344 = vmatprep.mubr.f32.mxu0 0.0
    %1345 = vmatmul.mubr.f32.gmra.mrb[0].mxu0 %v1273
    %v1346 = vpop.f32.mrb[0].mxu0
    %v1347 = vadd.f32 0.0, %v1346
    %v1348 = vpop.f32.mrb[0].mxu0
    %1349 = vdwg.mxu0
    %1350 = vrot.lane.b32.xlu0 %v219, 48
    %v1351 = vpop.permute.xlu0 %1350
    %1352 = vrot.lane.b32.xlu0 %v224, 48
    %v1353 = vpop.permute.xlu0 %1352
    %v1357 = vsel %vm410, %v1261, 0
    %v1360 = vsel %vm410, %v1262, 0
    %1362 = vmatprep.subr.mxu0 0.0
    %1363 = vmatpush1.msra.mxu0 %v1351
    %1364 = vmatprep.subr.mxu0 0.0
    %1365 = vmatpush1.msra.mxu0 %v1353
    %1366 = vmatprep.subr.mxu0 0.0
    %1367 = vmatpush1.msra.mxu0 0.0
    %1368 = vmatprep.subr.mxu0 0.0
    %1369 = vmatpush1.msra.mxu0 0.0
    %1370 = vmatprep.subr.mxu0 0.0
    %1371 = vmatpush1.msra.mxu0 0.0
    %1372 = vmatprep.subr.mxu0 0.0
    %1373 = vmatpush1.msra.mxu0 0.0
    %1374 = vmatprep.subr.mxu0 0.0
    %1375 = vmatpush1.msra.mxu0 0.0
    %1376 = vmatprep.subr.mxu0 0.0
    %1377 = vmatpush1.msra.mxu0 0.0
    %1378 = vmatprep.subr.mxu0 0.0
    %1379 = vmatpush1.msra.mxu0 0.0
    %1380 = vmatprep.subr.mxu0 0.0
    %1381 = vmatpush1.msra.mxu0 0.0
    %1382 = vmatprep.subr.mxu0 0.0
    %1383 = vmatpush1.msra.mxu0 0.0
    %1384 = vmatprep.subr.mxu0 0.0
    %1385 = vmatpush1.msra.mxu0 0.0
    %1386 = vmatprep.subr.mxu0 0.0
    %1387 = vmatpush1.msra.mxu0 0.0
    %1388 = vmatprep.subr.mxu0 0.0
    %1389 = vmatpush1.msra.mxu0 0.0
    %1390 = vmatprep.subr.mxu0 0.0
    %1391 = vmatpush1.msra.mxu0 0.0
    %1392 = vmatprep.subr.mxu0 0.0
    %1393 = vmatpush1.msra.mxu0 0.0
    %1394 = vmatprep.subr.mxu0 0.0
    %1395 = vmatpush1.msra.mxu0 0.0
    %1396 = vmatprep.subr.mxu0 0.0
    %1397 = vmatpush1.msra.mxu0 0.0
    %1398 = vmatprep.subr.mxu0 0.0
    %1399 = vmatpush1.msra.mxu0 0.0
    %1400 = vmatprep.subr.mxu0 0.0
    %1401 = vmatpush1.msra.mxu0 0.0
    %1402 = vmatprep.subr.mxu0 0.0
    %1403 = vmatpush1.msra.mxu0 0.0
    %1404 = vmatprep.subr.mxu0 0.0
    %1405 = vmatpush1.msra.mxu0 0.0
    %1406 = vmatprep.subr.mxu0 0.0
    %1407 = vmatpush1.msra.mxu0 0.0
    %1408 = vmatprep.subr.mxu0 0.0
    %1409 = vmatpush1.msra.mxu0 0.0
    %1410 = vmatprep.subr.mxu0 0.0
    %1411 = vmatpush1.msra.mxu0 0.0
    %1412 = vmatprep.subr.mxu0 0.0
    %1413 = vmatpush1.msra.mxu0 0.0
    %1414 = vmatprep.subr.mxu0 0.0
    %1415 = vmatpush1.msra.mxu0 0.0
    %1416 = vmatprep.subr.mxu0 0.0
    %1417 = vmatpush1.msra.mxu0 0.0
    %1418 = vmatprep.subr.mxu0 0.0
    %1419 = vmatpush1.msra.mxu0 0.0
    %1420 = vmatprep.subr.mxu0 0.0
    %1421 = vmatpush1.msra.mxu0 0.0
    %1422 = vmatprep.subr.mxu0 0.0
    %1423 = vmatpush1.msra.mxu0 0.0
    %1424 = vmatprep.subr.mxu0 0.0
    %1425 = vmatpush1.msra.mxu0 0.0
    %1426 = vmatprep.mubr.f32.mxu0 0.0
    %1427 = vmatmul.mubr.f32.gmra.mrb[0].mxu0 %v1357
    %v1428 = vpop.f32.mrb[0].mxu0
    %v1429 = vadd.f32 0.0, %v1428
    %v1430 = vpop.f32.mrb[0].mxu0
    %1431 = vmatprep.mubr.f32.mxu0 0.0
    %1432 = vmatmul.mubr.f32.gmra.mrb[0].mxu0 %v1360
    %v1433 = vpop.f32.mrb[0].mxu0
    %v1434 = vadd.f32 0.0, %v1433
    %v1435 = vpop.f32.mrb[0].mxu0
    %1436 = vdwg.mxu0
    %1437 = vrot.lane.b32.xlu0 %v209, 104
    %v1438 = vpop.permute.xlu0 %1437
    %1439 = vrot.lane.b32.xlu0 %v214, 104
    %v1440 = vpop.permute.xlu0 %1439
    %1441 = vrot.lane.b32.xlu0 %v209, 72
    %v1442 = vpop.permute.xlu0 %1441
    %1443 = vrot.lane.b32.xlu0 %v214, 72
    %v1444 = vpop.permute.xlu0 %1443
    %v1445 = vsel %vm233, %v1438, 0
    %v1447 = vsel %vm233, %v1440, 0
    %v1449 = vsel %vm233, %v1442, 0
    %v1451 = vsel %vm233, %v1444, 0
    %1453 = vmatprep.subr.mxu0 0.0
    %1454 = vmatpush1.xpose.msra.mxu0 %v1449
    %1455 = vmatprep.subr.mxu0 0.0
    %1456 = vmatpush1.xpose.msra.mxu0 %v1451
    %1457 = vmatprep.subr.mxu0 0.0
    %1458 = vmatpush1.xpose.msra.mxu0 0.0
    %1459 = vmatprep.subr.mxu0 0.0
    %1460 = vmatpush1.xpose.msra.mxu0 0.0
    %1461 = vmatprep.subr.mxu0 0.0
    %1462 = vmatpush1.xpose.msra.mxu0 0.0
    %1463 = vmatprep.subr.mxu0 0.0
    %1464 = vmatpush1.xpose.msra.mxu0 0.0
    %1465 = vmatprep.subr.mxu0 0.0
    %1466 = vmatpush1.xpose.msra.mxu0 0.0
    %1467 = vmatprep.subr.mxu0 0.0
    %1468 = vmatpush1.xpose.msra.mxu0 0.0
    %1469 = vmatprep.subr.mxu0 0.0
    %1470 = vmatpush1.xpose.msra.mxu0 0.0
    %1471 = vmatprep.subr.mxu0 0.0
    %1472 = vmatpush1.xpose.msra.mxu0 0.0
    %1473 = vmatprep.subr.mxu0 0.0
    %1474 = vmatpush1.xpose.msra.mxu0 0.0
    %1475 = vmatprep.subr.mxu0 0.0
    %1476 = vmatpush1.xpose.msra.mxu0 0.0
    %1477 = vmatprep.subr.mxu0 0.0
    %1478 = vmatpush1.xpose.msra.mxu0 0.0
    %1479 = vmatprep.subr.mxu0 0.0
    %1480 = vmatpush1.xpose.msra.mxu0 0.0
    %1481 = vmatprep.subr.mxu0 0.0
    %1482 = vmatpush1.xpose.msra.mxu0 0.0
    %1483 = vmatprep.subr.mxu0 0.0
    %1484 = vmatpush1.xpose.msra.mxu0 0.0
    %1485 = vmatprep.subr.mxu0 0.0
    %1486 = vmatpush1.xpose.msra.mxu0 0.0
    %1487 = vmatprep.subr.mxu0 0.0
    %1488 = vmatpush1.xpose.msra.mxu0 0.0
    %1489 = vmatprep.subr.mxu0 0.0
    %1490 = vmatpush1.xpose.msra.mxu0 0.0
    %1491 = vmatprep.subr.mxu0 0.0
    %1492 = vmatpush1.xpose.msra.mxu0 0.0
    %1493 = vmatprep.subr.mxu0 0.0
    %1494 = vmatpush1.xpose.msra.mxu0 0.0
    %1495 = vmatprep.subr.mxu0 0.0
    %1496 = vmatpush1.xpose.msra.mxu0 0.0
    %1497 = vmatprep.subr.mxu0 0.0
    %1498 = vmatpush1.xpose.msra.mxu0 0.0
    %1499 = vmatprep.subr.mxu0 0.0
    %1500 = vmatpush1.xpose.msra.mxu0 0.0
    %1501 = vmatprep.subr.mxu0 0.0
    %1502 = vmatpush1.xpose.msra.mxu0 0.0
    %1503 = vmatprep.subr.mxu0 0.0
    %1504 = vmatpush1.xpose.msra.mxu0 0.0
    %1505 = vmatprep.subr.mxu0 0.0
    %1506 = vmatpush1.xpose.msra.mxu0 0.0
    %1507 = vmatprep.subr.mxu0 0.0
    %1508 = vmatpush1.xpose.msra.mxu0 0.0
    %1509 = vmatprep.subr.mxu0 0.0
    %1510 = vmatpush1.xpose.msra.mxu0 0.0
    %1511 = vmatprep.subr.mxu0 0.0
    %1512 = vmatpush1.xpose.msra.mxu0 0.0
    %1513 = vmatprep.subr.mxu0 0.0
    %1514 = vmatpush1.xpose.msra.mxu0 0.0
    %1515 = vmatprep.subr.mxu0 0.0
    %1516 = vmatpush1.xpose.msra.mxu0 0.0
    %1517 = vmatprep.mubr.f32.mxu0 0.0
    %1518 = vmatmul.mubr.f32.gmra.mrb[0].mxu0 %v1445
    %v1519 = vpop.f32.mrb[0].mxu0
    %v1520 = vadd.f32 0.0, %v1519
    %v1521 = vpop.f32.mrb[0].mxu0
    %1522 = vmatprep.mubr.f32.mxu0 0.0
    %1523 = vmatmul.mubr.f32.gmra.mrb[0].mxu0 %v1447
    %v1524 = vpop.f32.mrb[0].mxu0
    %v1525 = vadd.f32 0.0, %v1524
    %v1526 = vpop.f32.mrb[0].mxu0
    %1527 = vdwg.mxu0
    %1528 = vrot.lane.b32.xlu0 %v219, 104
    %v1529 = vpop.permute.xlu0 %1528
    %1530 = vrot.lane.b32.xlu0 %v224, 104
    %v1531 = vpop.permute.xlu0 %1530
    %1532 = vrot.lane.b32.xlu0 %v219, 72
    %v1533 = vpop.permute.xlu0 %1532
    %1534 = vrot.lane.b32.xlu0 %v224, 72
    %v1535 = vpop.permute.xlu0 %1534
    %v1536 = vsel %vm233, %v1529, 0
    %v1538 = vsel %vm233, %v1531, 0
    %v1540 = vsel %vm233, %v1533, 0
    %v1542 = vsel %vm233, %v1535, 0
    %1544 = vmatprep.subr.mxu0 0.0
    %1545 = vmatpush1.xpose.msra.mxu0 %v1540
    %1546 = vmatprep.subr.mxu0 0.0
    %1547 = vmatpush1.xpose.msra.mxu0 %v1542
    %1548 = vmatprep.subr.mxu0 0.0
    %1549 = vmatpush1.xpose.msra.mxu0 0.0
    %1550 = vmatprep.subr.mxu0 0.0
    %1551 = vmatpush1.xpose.msra.mxu0 0.0
    %1552 = vmatprep.subr.mxu0 0.0
    %1553 = vmatpush1.xpose.msra.mxu0 0.0
    %1554 = vmatprep.subr.mxu0 0.0
    %1555 = vmatpush1.xpose.msra.mxu0 0.0
    %1556 = vmatprep.subr.mxu0 0.0
    %1557 = vmatpush1.xpose.msra.mxu0 0.0
    %1558 = vmatprep.subr.mxu0 0.0
    %1559 = vmatpush1.xpose.msra.mxu0 0.0
    %1560 = vmatprep.subr.mxu0 0.0
    %1561 = vmatpush1.xpose.msra.mxu0 0.0
    %1562 = vmatprep.subr.mxu0 0.0
    %1563 = vmatpush1.xpose.msra.mxu0 0.0
    %1564 = vmatprep.subr.mxu0 0.0
    %1565 = vmatpush1.xpose.msra.mxu0 0.0
    %1566 = vmatprep.subr.mxu0 0.0
    %1567 = vmatpush1.xpose.msra.mxu0 0.0
    %1568 = vmatprep.subr.mxu0 0.0
    %1569 = vmatpush1.xpose.msra.mxu0 0.0
    %1570 = vmatprep.subr.mxu0 0.0
    %1571 = vmatpush1.xpose.msra.mxu0 0.0
    %1572 = vmatprep.subr.mxu0 0.0
    %1573 = vmatpush1.xpose.msra.mxu0 0.0
    %1574 = vmatprep.subr.mxu0 0.0
    %1575 = vmatpush1.xpose.msra.mxu0 0.0
    %1576 = vmatprep.subr.mxu0 0.0
    %1577 = vmatpush1.xpose.msra.mxu0 0.0
    %1578 = vmatprep.subr.mxu0 0.0
    %1579 = vmatpush1.xpose.msra.mxu0 0.0
    %1580 = vmatprep.subr.mxu0 0.0
    %1581 = vmatpush1.xpose.msra.mxu0 0.0
    %1582 = vmatprep.subr.mxu0 0.0
    %1583 = vmatpush1.xpose.msra.mxu0 0.0
    %1584 = vmatprep.subr.mxu0 0.0
    %1585 = vmatpush1.xpose.msra.mxu0 0.0
    %1586 = vmatprep.subr.mxu0 0.0
    %1587 = vmatpush1.xpose.msra.mxu0 0.0
    %1588 = vmatprep.subr.mxu0 0.0
    %1589 = vmatpush1.xpose.msra.mxu0 0.0
    %1590 = vmatprep.subr.mxu0 0.0
    %1591 = vmatpush1.xpose.msra.mxu0 0.0
    %1592 = vmatprep.subr.mxu0 0.0
    %1593 = vmatpush1.xpose.msra.mxu0 0.0
    %1594 = vmatprep.subr.mxu0 0.0
    %1595 = vmatpush1.xpose.msra.mxu0 0.0
    %1596 = vmatprep.subr.mxu0 0.0
    %1597 = vmatpush1.xpose.msra.mxu0 0.0
    %1598 = vmatprep.subr.mxu0 0.0
    %1599 = vmatpush1.xpose.msra.mxu0 0.0
    %1600 = vmatprep.subr.mxu0 0.0
    %1601 = vmatpush1.xpose.msra.mxu0 0.0
    %1602 = vmatprep.subr.mxu0 0.0
    %1603 = vmatpush1.xpose.msra.mxu0 0.0
    %1604 = vmatprep.subr.mxu0 0.0
    %1605 = vmatpush1.xpose.msra.mxu0 0.0
    %1606 = vmatprep.subr.mxu0 0.0
    %1607 = vmatpush1.xpose.msra.mxu0 0.0
    %1608 = vmatprep.mubr.f32.mxu0 0.0
    %1609 = vmatmul.mubr.f32.gmra.mrb[0].mxu0 %v1536
    %v1610 = vpop.f32.mrb[0].mxu0
    %v1611 = vadd.f32 0.0, %v1610
    %v1612 = vpop.f32.mrb[0].mxu0
    %1613 = vmatprep.mubr.f32.mxu0 0.0
    %1614 = vmatmul.mubr.f32.gmra.mrb[0].mxu0 %v1538
    %v1615 = vpop.f32.mrb[0].mxu0
    %v1616 = vadd.f32 0.0, %v1615
    %v1617 = vpop.f32.mrb[0].mxu0
    %1618 = vdwg.mxu0
    %v1619 = vmul.f32 %v1520, 0.35355338
    %v1620 = vmul.f32 %v1525, 0.35355338
    %v1621 = vmul.f32 %v1611, 0.35355338
    %v1622 = vmul.f32 %v1616, 0.35355338
    %v1623 = vsel %vm410, %v1619, -inf
    %1624 = vmax.xlane.f32.xlu0 %v1623
    %v1625 = vpop.xlane.xlu0 %1624
    %v1626 = vsel %vm410, %v1620, -inf
    %1627 = vmax.xlane.f32.xlu0 %v1626
    %v1628 = vpop.xlane.xlu0 %1627
    %v1629 = vsel %vm410, %v1621, -inf
    %1630 = vmax.xlane.f32.xlu0 %v1629
    %v1631 = vpop.xlane.xlu0 %1630
    %v1632 = vsel %vm410, %v1622, -inf
    %1633 = vmax.xlane.f32.xlu0 %v1632
    %v1634 = vpop.xlane.xlu0 %1633
    %v1635 = vsub.f32 %v1619, %v1625
    %v1636 = vsub.f32 %v1620, %v1628
    %v1637 = vsub.f32 %v1621, %v1631
    %v1638 = vsub.f32 %v1622, %v1634
    %v1639 = vmul.f32 %v1635, 1.442695
    %v1640 = vpow.pop %v1639
    %v1641 = vmul.f32 %v1636, 1.442695
    %v1642 = vpow.pop %v1641
    %v1643 = vmul.f32 %v1637, 1.442695
    %v1644 = vpow.pop %v1643
    %v1645 = vmul.f32 %v1638, 1.442695
    %v1646 = vpow.pop %v1645
    %v1647 = vsel %vm410, %v1640, 0.0
    %1648 = vadd.xlane.f32.xlu0 %v1647
    %v1649 = vpop.xlane.xlu0 %1648
    %v1650 = vsel %vm410, %v1642, 0.0
    %1651 = vadd.xlane.f32.xlu0 %v1650
    %v1652 = vpop.xlane.xlu0 %1651
    %v1653 = vsel %vm410, %v1644, 0.0
    %1654 = vadd.xlane.f32.xlu0 %v1653
    %v1655 = vpop.xlane.xlu0 %1654
    %v1656 = vsel %vm410, %v1646, 0.0
    %1657 = vadd.xlane.f32.xlu0 %v1656
    %v1658 = vpop.xlane.xlu0 %1657
    %v1659 = vrcp.pop %v1649
    %v1660 = vrcp.pop %v1652
    %v1661 = vrcp.pop %v1655
    %v1662 = vrcp.pop %v1658
    %v1663 = vmul.f32 %v1640, %v1659
    %v1664 = vmul.f32 %v1642, %v1660
    %v1665 = vmul.f32 %v1644, %v1661
    %v1666 = vmul.f32 %v1646, %v1662
    %1667 = vrot.lane.b32.xlu0 %v209, 40
    %v1668 = vpop.permute.xlu0 %1667
    %1669 = vrot.lane.b32.xlu0 %v214, 40
    %v1670 = vpop.permute.xlu0 %1669
    %v1674 = vsel %vm410, %v1663, 0
    %v1677 = vsel %vm410, %v1664, 0
    %1679 = vmatprep.subr.mxu0 0.0
    %1680 = vmatpush1.msra.mxu0 %v1668
    %1681 = vmatprep.subr.mxu0 0.0
    %1682 = vmatpush1.msra.mxu0 %v1670
    %1683 = vmatprep.subr.mxu0 0.0
    %1684 = vmatpush1.msra.mxu0 0.0
    %1685 = vmatprep.subr.mxu0 0.0
    %1686 = vmatpush1.msra.mxu0 0.0
    %1687 = vmatprep.subr.mxu0 0.0
    %1688 = vmatpush1.msra.mxu0 0.0
    %1689 = vmatprep.subr.mxu0 0.0
    %1690 = vmatpush1.msra.mxu0 0.0
    %1691 = vmatprep.subr.mxu0 0.0
    %1692 = vmatpush1.msra.mxu0 0.0
    %1693 = vmatprep.subr.mxu0 0.0
    %1694 = vmatpush1.msra.mxu0 0.0
    %1695 = vmatprep.subr.mxu0 0.0
    %1696 = vmatpush1.msra.mxu0 0.0
    %1697 = vmatprep.subr.mxu0 0.0
    %1698 = vmatpush1.msra.mxu0 0.0
    %1699 = vmatprep.subr.mxu0 0.0
    %1700 = vmatpush1.msra.mxu0 0.0
    %1701 = vmatprep.subr.mxu0 0.0
    %1702 = vmatpush1.msra.mxu0 0.0
    %1703 = vmatprep.subr.mxu0 0.0
    %1704 = vmatpush1.msra.mxu0 0.0
    %1705 = vmatprep.subr.mxu0 0.0
    %1706 = vmatpush1.msra.mxu0 0.0
    %1707 = vmatprep.subr.mxu0 0.0
    %1708 = vmatpush1.msra.mxu0 0.0
    %1709 = vmatprep.subr.mxu0 0.0
    %1710 = vmatpush1.msra.mxu0 0.0
    %1711 = vmatprep.subr.mxu0 0.0
    %1712 = vmatpush1.msra.mxu0 0.0
    %1713 = vmatprep.subr.mxu0 0.0
    %1714 = vmatpush1.msra.mxu0 0.0
    %1715 = vmatprep.subr.mxu0 0.0
    %1716 = vmatpush1.msra.mxu0 0.0
    %1717 = vmatprep.subr.mxu0 0.0
    %1718 = vmatpush1.msra.mxu0 0.0
    %1719 = vmatprep.subr.mxu0 0.0
    %1720 = vmatpush1.msra.mxu0 0.0
    %1721 = vmatprep.subr.mxu0 0.0
    %1722 = vmatpush1.msra.mxu0 0.0
    %1723 = vmatprep.subr.mxu0 0.0
    %1724 = vmatpush1.msra.mxu0 0.0
    %1725 = vmatprep.subr.mxu0 0.0
    %1726 = vmatpush1.msra.mxu0 0.0
    %1727 = vmatprep.subr.mxu0 0.0
    %1728 = vmatpush1.msra.mxu0 0.0
    %1729 = vmatprep.subr.mxu0 0.0
    %1730 = vmatpush1.msra.mxu0 0.0
    %1731 = vmatprep.subr.mxu0 0.0
    %1732 = vmatpush1.msra.mxu0 0.0
    %1733 = vmatprep.subr.mxu0 0.0
    %1734 = vmatpush1.msra.mxu0 0.0
    %1735 = vmatprep.subr.mxu0 0.0
    %1736 = vmatpush1.msra.mxu0 0.0
    %1737 = vmatprep.subr.mxu0 0.0
    %1738 = vmatpush1.msra.mxu0 0.0
    %1739 = vmatprep.subr.mxu0 0.0
    %1740 = vmatpush1.msra.mxu0 0.0
    %1741 = vmatprep.subr.mxu0 0.0
    %1742 = vmatpush1.msra.mxu0 0.0
    %1743 = vmatprep.mubr.f32.mxu0 0.0
    %1744 = vmatmul.mubr.f32.gmra.mrb[0].mxu0 %v1674
    %v1745 = vpop.f32.mrb[0].mxu0
    %v1746 = vadd.f32 0.0, %v1745
    %v1747 = vpop.f32.mrb[0].mxu0
    %1748 = vmatprep.mubr.f32.mxu0 0.0
    %1749 = vmatmul.mubr.f32.gmra.mrb[0].mxu0 %v1677
    %v1750 = vpop.f32.mrb[0].mxu0
    %v1751 = vadd.f32 0.0, %v1750
    %v1752 = vpop.f32.mrb[0].mxu0
    %1753 = vdwg.mxu0
    %1754 = vrot.lane.b32.xlu0 %v219, 40
    %v1755 = vpop.permute.xlu0 %1754
    %1756 = vrot.lane.b32.xlu0 %v224, 40
    %v1757 = vpop.permute.xlu0 %1756
    %v1761 = vsel %vm410, %v1665, 0
    %v1764 = vsel %vm410, %v1666, 0
    %1766 = vmatprep.subr.mxu0 0.0
    %1767 = vmatpush1.msra.mxu0 %v1755
    %1768 = vmatprep.subr.mxu0 0.0
    %1769 = vmatpush1.msra.mxu0 %v1757
    %1770 = vmatprep.subr.mxu0 0.0
    %1771 = vmatpush1.msra.mxu0 0.0
    %1772 = vmatprep.subr.mxu0 0.0
    %1773 = vmatpush1.msra.mxu0 0.0
    %1774 = vmatprep.subr.mxu0 0.0
    %1775 = vmatpush1.msra.mxu0 0.0
    %1776 = vmatprep.subr.mxu0 0.0
    %1777 = vmatpush1.msra.mxu0 0.0
    %1778 = vmatprep.subr.mxu0 0.0
    %1779 = vmatpush1.msra.mxu0 0.0
    %1780 = vmatprep.subr.mxu0 0.0
    %1781 = vmatpush1.msra.mxu0 0.0
    %1782 = vmatprep.subr.mxu0 0.0
    %1783 = vmatpush1.msra.mxu0 0.0
    %1784 = vmatprep.subr.mxu0 0.0
    %1785 = vmatpush1.msra.mxu0 0.0
    %1786 = vmatprep.subr.mxu0 0.0
    %1787 = vmatpush1.msra.mxu0 0.0
    %1788 = vmatprep.subr.mxu0 0.0
    %1789 = vmatpush1.msra.mxu0 0.0
    %1790 = vmatprep.subr.mxu0 0.0
    %1791 = vmatpush1.msra.mxu0 0.0
    %1792 = vmatprep.subr.mxu0 0.0
    %1793 = vmatpush1.msra.mxu0 0.0
    %1794 = vmatprep.subr.mxu0 0.0
    %1795 = vmatpush1.msra.mxu0 0.0
    %1796 = vmatprep.subr.mxu0 0.0
    %1797 = vmatpush1.msra.mxu0 0.0
    %1798 = vmatprep.subr.mxu0 0.0
    %1799 = vmatpush1.msra.mxu0 0.0
    %1800 = vmatprep.subr.mxu0 0.0
    %1801 = vmatpush1.msra.mxu0 0.0
    %1802 = vmatprep.subr.mxu0 0.0
    %1803 = vmatpush1.msra.mxu0 0.0
    %1804 = vmatprep.subr.mxu0 0.0
    %1805 = vmatpush1.msra.mxu0 0.0
    %1806 = vmatprep.subr.mxu0 0.0
    %1807 = vmatpush1.msra.mxu0 0.0
    %1808 = vmatprep.subr.mxu0 0.0
    %1809 = vmatpush1.msra.mxu0 0.0
    %1810 = vmatprep.subr.mxu0 0.0
    %1811 = vmatpush1.msra.mxu0 0.0
    %1812 = vmatprep.subr.mxu0 0.0
    %1813 = vmatpush1.msra.mxu0 0.0
    %1814 = vmatprep.subr.mxu0 0.0
    %1815 = vmatpush1.msra.mxu0 0.0
    %1816 = vmatprep.subr.mxu0 0.0
    %1817 = vmatpush1.msra.mxu0 0.0
    %1818 = vmatprep.subr.mxu0 0.0
    %1819 = vmatpush1.msra.mxu0 0.0
    %1820 = vmatprep.subr.mxu0 0.0
    %1821 = vmatpush1.msra.mxu0 0.0
    %1822 = vmatprep.subr.mxu0 0.0
    %1823 = vmatpush1.msra.mxu0 0.0
    %1824 = vmatprep.subr.mxu0 0.0
    %1825 = vmatpush1.msra.mxu0 0.0
    %1826 = vmatprep.subr.mxu0 0.0
    %1827 = vmatpush1.msra.mxu0 0.0
    %1828 = vmatprep.subr.mxu0 0.0
    %1829 = vmatpush1.msra.mxu0 0.0
    %1830 = vmatprep.mubr.f32.mxu0 0.0
    %1831 = vmatmul.mubr.f32.gmra.mrb[0].mxu0 %v1761
    %v1832 = vpop.f32.mrb[0].mxu0
    %v1833 = vadd.f32 0.0, %v1832
    %v1834 = vpop.f32.mrb[0].mxu0
    %1835 = vmatprep.mubr.f32.mxu0 0.0
    %1836 = vmatmul.mubr.f32.gmra.mrb[0].mxu0 %v1764
    %v1837 = vpop.f32.mrb[0].mxu0
    %v1838 = vadd.f32 0.0, %v1837
    %v1839 = vpop.f32.mrb[0].mxu0
    %1840 = vdwg.mxu0
    %1845 = vrot.lane.b32.xlu0 %v938, 8
    %v1846 = vpop.permute.xlu0 %1845
    %1847 = vrot.lane.b32.xlu0 %v943, 8
    %v1848 = vpop.permute.xlu0 %1847
    %1849 = vrot.lane.b32.xlu0 %v1025, 8
    %v1850 = vpop.permute.xlu0 %1849
    %1851 = vrot.lane.b32.xlu0 %v1030, 8
    %v1852 = vpop.permute.xlu0 %1851
    %1861 = vrot.lane.b32.xlu0 %v1342, 16
    %v1862 = vpop.permute.xlu0 %1861
    %1863 = vrot.lane.b32.xlu0 %v1347, 16
    %v1864 = vpop.permute.xlu0 %1863
    %1865 = vrot.lane.b32.xlu0 %v1429, 16
    %v1866 = vpop.permute.xlu0 %1865
    %1867 = vrot.lane.b32.xlu0 %v1434, 16
    %v1868 = vpop.permute.xlu0 %1867
    %1877 = vrot.lane.b32.xlu0 %v1746, 24
    %v1878 = vpop.permute.xlu0 %1877
    %1879 = vrot.lane.b32.xlu0 %v1751, 24
    %v1880 = vpop.permute.xlu0 %1879
    %1881 = vrot.lane.b32.xlu0 %v1833, 24
    %v1882 = vpop.permute.xlu0 %1881
    %1883 = vrot.lane.b32.xlu0 %v1838, 24
    %v1884 = vpop.permute.xlu0 %1883
    %v1889 = vsel %vm233, %v534, %v1846
    %v1890 = vsel %vm233, %v539, %v1848
    %v1891 = vsel %vm233, %v621, %v1850
    %v1892 = vsel %vm233, %v626, %v1852
    %v1893 = vsel %vm410, %v1889, %v1862
    %v1894 = vsel %vm410, %v1890, %v1864
    %v1895 = vsel %vm410, %v1891, %v1866
    %v1896 = vsel %vm410, %v1892, %v1868
    %vm1897 = vcmask 195584
    %v1898 = vsel %vm1897, %v1893, %v1878
    %v1899 = vsel %vm1897, %v1894, %v1880
    %v1900 = vsel %vm1897, %v1895, %v1882
    %v1901 = vsel %vm1897, %v1896, %v1884
    %v1902 = vld [vmem:[%s1 + $0x80] sm:$0xff]
    %v1903 = vld [vmem:[%s1 + $0x88] sm:$0xff]
    %v1904 = vld [vmem:[%s1 + $0x90] sm:$0xff]
    %v1905 = vld [vmem:[%s1 + $0x98] sm:$0xff]
    %v1906 = vld [vmem:[%s1 + $0xa1] sm:$0x1]
    %v1907 = vlaneseq
    %v1908 = vshrl.u32 %v1907, 7
    %v1909 = vsub.s32 0, %v1908
    %v1910 = vrot.slane %v1906, %v1909
    %v1912 = vsel %vm23, %v1898, 0
    %v1915 = vsel %vm23, %v1899, 0
    %v1918 = vsel %vm23, %v1900, 0
    %v1921 = vsel %vm23, %v1901, 0
    %1923 = vmatprep.subr.mxu0 0.0
    %1924 = vmatpush1.msra.mxu0 %v1902
    %1925 = vmatprep.subr.mxu0 0.0
    %1926 = vmatpush1.msra.mxu0 %v1903
    %1927 = vmatprep.subr.mxu0 0.0
    %1928 = vmatpush1.msra.mxu0 %v1904
    %1929 = vmatprep.subr.mxu0 0.0
    %1930 = vmatpush1.msra.mxu0 %v1905
    %1931 = vmatprep.subr.mxu0 0.0
    %1932 = vmatpush1.msra.mxu0 0.0
    %1933 = vmatprep.subr.mxu0 0.0
    %1934 = vmatpush1.msra.mxu0 0.0
    %1935 = vmatprep.subr.mxu0 0.0
    %1936 = vmatpush1.msra.mxu0 0.0
    %1937 = vmatprep.subr.mxu0 0.0
    %1938 = vmatpush1.msra.mxu0 0.0
    %1939 = vmatprep.subr.mxu0 0.0
    %1940 = vmatpush1.msra.mxu0 0.0
    %1941 = vmatprep.subr.mxu0 0.0
    %1942 = vmatpush1.msra.mxu0 0.0
    %1943 = vmatprep.subr.mxu0 0.0
    %1944 = vmatpush1.msra.mxu0 0.0
    %1945 = vmatprep.subr.mxu0 0.0
    %1946 = vmatpush1.msra.mxu0 0.0
    %1947 = vmatprep.subr.mxu0 0.0
    %1948 = vmatpush1.msra.mxu0 0.0
    %1949 = vmatprep.subr.mxu0 0.0
    %1950 = vmatpush1.msra.mxu0 0.0
    %1951 = vmatprep.subr.mxu0 0.0
    %1952 = vmatpush1.msra.mxu0 0.0
    %1953 = vmatprep.subr.mxu0 0.0
    %1954 = vmatpush1.msra.mxu0 0.0
    %1955 = vmatprep.subr.mxu0 0.0
    %1956 = vmatpush1.msra.mxu0 0.0
    %1957 = vmatprep.subr.mxu0 0.0
    %1958 = vmatpush1.msra.mxu0 0.0
    %1959 = vmatprep.subr.mxu0 0.0
    %1960 = vmatpush1.msra.mxu0 0.0
    %1961 = vmatprep.subr.mxu0 0.0
    %1962 = vmatpush1.msra.mxu0 0.0
    %1963 = vmatprep.subr.mxu0 0.0
    %1964 = vmatpush1.msra.mxu0 0.0
    %1965 = vmatprep.subr.mxu0 0.0
    %1966 = vmatpush1.msra.mxu0 0.0
    %1967 = vmatprep.subr.mxu0 0.0
    %1968 = vmatpush1.msra.mxu0 0.0
    %1969 = vmatprep.subr.mxu0 0.0
    %1970 = vmatpush1.msra.mxu0 0.0
    %1971 = vmatprep.subr.mxu0 0.0
    %1972 = vmatpush1.msra.mxu0 0.0
    %1973 = vmatprep.subr.mxu0 0.0
    %1974 = vmatpush1.msra.mxu0 0.0
    %1975 = vmatprep.subr.mxu0 0.0
    %1976 = vmatpush1.msra.mxu0 0.0
    %1977 = vmatprep.subr.mxu0 0.0
    %1978 = vmatpush1.msra.mxu0 0.0
    %1979 = vmatprep.subr.mxu0 0.0
    %1980 = vmatpush1.msra.mxu0 0.0
    %1981 = vmatprep.subr.mxu0 0.0
    %1982 = vmatpush1.msra.mxu0 0.0
    %1983 = vmatprep.subr.mxu0 0.0
    %1984 = vmatpush1.msra.mxu0 0.0
    %1985 = vmatprep.subr.mxu0 0.0
    %1986 = vmatpush1.msra.mxu0 0.0
    %1987 = vmatprep.mubr.f32.mxu0 0.0
    %1988 = vmatmul.mubr.f32.gmra.mrb[0].mxu0 %v1912
    %v1989 = vpop.f32.mrb[0].mxu0
    %v1990 = vadd.f32 %v1910, %v1989
    %v1991 = vpop.f32.mrb[0].mxu0
    %1992 = vmatprep.mubr.f32.mxu0 0.0
    %1993 = vmatmul.mubr.f32.gmra.mrb[0].mxu0 %v1915
    %v1994 = vpop.f32.mrb[0].mxu0
    %v1995 = vadd.f32 %v1910, %v1994
    %v1996 = vpop.f32.mrb[0].mxu0
    %1997 = vmatprep.mubr.f32.mxu0 0.0
    %1998 = vmatmul.mubr.f32.gmra.mrb[0].mxu0 %v1918
    %v1999 = vpop.f32.mrb[0].mxu0
    %v2000 = vadd.f32 %v1910, %v1999
    %v2001 = vpop.f32.mrb[0].mxu0
    %2002 = vmatprep.mubr.f32.mxu0 0.0
    %2003 = vmatmul.mubr.f32.gmra.mrb[0].mxu0 %v1921
    %v2004 = vpop.f32.mrb[0].mxu0
    %v2005 = vadd.f32 %v1910, %v2004
    %v2006 = vpop.f32.mrb[0].mxu0
    %2007 = vdwg.mxu0
    %v2008 = vadd.f32 %v103, %v1990
    %v2009 = vadd.f32 %v108, %v1995
    %v2010 = vadd.f32 %v113, %v2000
    %v2011 = vadd.f32 %v118, %v2005
    %v2012 = vld [vmem:[%s1 + $0xa4] sm:$0x1]
    %v2013 = vld [vmem:[%s1 + $0xa5] sm:$0x1]
    %v2014 = vsel %vm23, %v2008, 0.0
    %2015 = vadd.xlane.f32.xlu0 %v2014
    %v2016 = vpop.xlane.xlu0 %2015
    %v2017 = vsel %vm23, %v2009, 0.0
    %2018 = vadd.xlane.f32.xlu0 %v2017
    %v2019 = vpop.xlane.xlu0 %2018
    %v2020 = vsel %vm23, %v2010, 0.0
    %2021 = vadd.xlane.f32.xlu0 %v2020
    %v2022 = vpop.xlane.xlu0 %2021
    %v2023 = vsel %vm23, %v2011, 0.0
    %2024 = vadd.xlane.f32.xlu0 %v2023
    %v2025 = vpop.xlane.xlu0 %2024
    %v2026 = vrcp.pop 32.0
    %v2027 = vmul.f32 %v2016, %v2026
    %v2028 = vmul.f32 %v2019, %v2026
    %v2029 = vmul.f32 %v2022, %v2026
    %v2030 = vmul.f32 %v2025, %v2026
    %v2031 = vsub.f32 %v2008, %v2027
    %v2032 = vsub.f32 %v2009, %v2028
    %v2033 = vsub.f32 %v2010, %v2029
    %v2034 = vsub.f32 %v2011, %v2030
    %v2035 = vmul.f32 %v2031, %v2031
    %v2036 = vmul.f32 %v2032, %v2032
    %v2037 = vmul.f32 %v2033, %v2033
    %v2038 = vmul.f32 %v2034, %v2034
    %v2039 = vsel %vm23, %v2035, 0.0
    %2040 = vadd.xlane.f32.xlu0 %v2039
    %v2041 = vpop.xlane.xlu0 %2040
    %v2042 = vsel %vm23, %v2036, 0.0
    %2043 = vadd.xlane.f32.xlu0 %v2042
    %v2044 = vpop.xlane.xlu0 %2043
    %v2045 = vsel %vm23, %v2037, 0.0
    %2046 = vadd.xlane.f32.xlu0 %v2045
    %v2047 = vpop.xlane.xlu0 %2046
    %v2048 = vsel %vm23, %v2038, 0.0
    %2049 = vadd.xlane.f32.xlu0 %v2048
    %v2050 = vpop.xlane.xlu0 %2049
    %v2051 = vmul.f32 %v2041, %v2026
    %v2052 = vmul.f32 %v2044, %v2026
    %v2053 = vmul.f32 %v2047, %v2026
    %v2054 = vmul.f32 %v2050, %v2026
    %v2055 = vadd.f32 %v2051, 1e-05
    %v2056 = vadd.f32 %v2052, 1e-05
    %v2057 = vadd.f32 %v2053, 1e-05
    %v2058 = vadd.f32 %v2054, 1e-05
    %v2059 = vrsqrt.pop %v2055
    %v2060 = vrsqrt.pop %v2056
    %v2061 = vrsqrt.pop %v2057
    %v2062 = vrsqrt.pop %v2058
    %v2063 = vmul.f32 %v2031, %v2059
    %v2064 = vmul.f32 %v2032, %v2060
    %v2065 = vmul.f32 %v2033, %v2061
    %v2066 = vmul.f32 %v2034, %v2062
    %v2067 = vlaneseq
    %v2068 = vshrl.u32 %v2067, 7
    %v2069 = vsub.s32 0, %v2068
    %v2070 = vrot.slane %v2012, %v2069
    %v2071 = vmul.f32 %v2063, %v2070
    %v2072 = vmul.f32 %v2064, %v2070
    %v2073 = vmul.f32 %v2065, %v2070
    %v2074 = vmul.f32 %v2066, %v2070
    %v2075 = vlaneseq
    %v2076 = vshrl.u32 %v2075, 7
    %v2077 = vsub.s32 0, %v2076
    %v2078 = vrot.slane %v2013, %v2077
    %v2079 = vadd.f32 %v2071, %v2078
    %v2080 = vadd.f32 %v2072, %v2078
    %v2081 = vadd.f32 %v2073, %v2078
    %v2082 = vadd.f32 %v2074, %v2078
    %v2083 = vld [vmem:[%s1 + $0x20] sm:$0xff]
    %v2084 = vld [vmem:[%s1 + $0x28] sm:$0xff]
    %v2085 = vld [vmem:[%s1 + $0x30] sm:$0xff]
    %v2086 = vld [vmem:[%s1 + $0x38] sm:$0xff]
    %v2087 = vld [vmem:[%s1 + $0xa2] sm:$0x1]
    %v2088 = vlaneseq
    %v2089 = vshrl.u32 %v2088, 7
    %v2090 = vsub.s32 0, %v2089
    %v2091 = vrot.slane %v2087, %v2090
    %v2093 = vsel %vm23, %v2079, 0
    %v2096 = vsel %vm23, %v2080, 0
    %v2099 = vsel %vm23, %v2081, 0
    %v2102 = vsel %vm23, %v2082, 0
    %2104 = vmatprep.subr.mxu0 0.0
    %2105 = vmatpush1.msra.mxu0 %v2083
    %2106 = vmatprep.subr.mxu0 0.0
    %2107 = vmatpush1.msra.mxu0 %v2084
    %2108 = vmatprep.subr.mxu0 0.0
    %2109 = vmatpush1.msra.mxu0 %v2085
    %2110 = vmatprep.subr.mxu0 0.0
    %2111 = vmatpush1.msra.mxu0 %v2086
    %2112 = vmatprep.subr.mxu0 0.0
    %2113 = vmatpush1.msra.mxu0 0.0
    %2114 = vmatprep.subr.mxu0 0.0
    %2115 = vmatpush1.msra.mxu0 0.0
    %2116 = vmatprep.subr.mxu0 0.0
    %2117 = vmatpush1.msra.mxu0 0.0
    %2118 = vmatprep.subr.mxu0 0.0
    %2119 = vmatpush1.msra.mxu0 0.0
    %2120 = vmatprep.subr.mxu0 0.0
    %2121 = vmatpush1.msra.mxu0 0.0
    %2122 = vmatprep.subr.mxu0 0.0
    %2123 = vmatpush1.msra.mxu0 0.0
    %2124 = vmatprep.subr.mxu0 0.0
    %2125 = vmatpush1.msra.mxu0 0.0
    %2126 = vmatprep.subr.mxu0 0.0
    %2127 = vmatpush1.msra.mxu0 0.0
    %2128 = vmatprep.subr.mxu0 0.0
    %2129 = vmatpush1.msra.mxu0 0.0
    %2130 = vmatprep.subr.mxu0 0.0
    %2131 = vmatpush1.msra.mxu0 0.0
    %2132 = vmatprep.subr.mxu0 0.0
    %2133 = vmatpush1.msra.mxu0 0.0
    %2134 = vmatprep.subr.mxu0 0.0
    %2135 = vmatpush1.msra.mxu0 0.0
    %2136 = vmatprep.subr.mxu0 0.0
    %2137 = vmatpush1.msra.mxu0 0.0
    %2138 = vmatprep.subr.mxu0 0.0
    %2139 = vmatpush1.msra.mxu0 0.0
    %2140 = vmatprep.subr.mxu0 0.0
    %2141 = vmatpush1.msra.mxu0 0.0
    %2142 = vmatprep.subr.mxu0 0.0
    %2143 = vmatpush1.msra.mxu0 0.0
    %2144 = vmatprep.subr.mxu0 0.0
    %2145 = vmatpush1.msra.mxu0 0.0
    %2146 = vmatprep.subr.mxu0 0.0
    %2147 = vmatpush1.msra.mxu0 0.0
    %2148 = vmatprep.subr.mxu0 0.0
    %2149 = vmatpush1.msra.mxu0 0.0
    %2150 = vmatprep.subr.mxu0 0.0
    %2151 = vmatpush1.msra.mxu0 0.0
    %2152 = vmatprep.subr.mxu0 0.0
    %2153 = vmatpush1.msra.mxu0 0.0
    %2154 = vmatprep.subr.mxu0 0.0
    %2155 = vmatpush1.msra.mxu0 0.0
    %2156 = vmatprep.subr.mxu0 0.0
    %2157 = vmatpush1.msra.mxu0 0.0
    %2158 = vmatprep.subr.mxu0 0.0
    %2159 = vmatpush1.msra.mxu0 0.0
    %2160 = vmatprep.subr.mxu0 0.0
    %2161 = vmatpush1.msra.mxu0 0.0
    %2162 = vmatprep.subr.mxu0 0.0
    %2163 = vmatpush1.msra.mxu0 0.0
    %2164 = vmatprep.subr.mxu0 0.0
    %2165 = vmatpush1.msra.mxu0 0.0
    %2166 = vmatprep.subr.mxu0 0.0
    %2167 = vmatpush1.msra.mxu0 0.0
    %2168 = vmatprep.mubr.f32.mxu0 0.0
    %2169 = vmatmul.mubr.f32.gmra.mrb[0].mxu0 %v2093
    %v2170 = vpop.f32.mrb[0].mxu0
    %v2171 = vadd.f32 %v2091, %v2170
    %v2172 = vpop.f32.mrb[0].mxu0
    %2173 = vmatprep.mubr.f32.mxu0 0.0
    %2174 = vmatmul.mubr.f32.gmra.mrb[0].mxu0 %v2096
    %v2175 = vpop.f32.mrb[0].mxu0
    %v2176 = vadd.f32 %v2091, %v2175
    %v2177 = vpop.f32.mrb[0].mxu0
    %2178 = vmatprep.mubr.f32.mxu0 0.0
    %2179 = vmatmul.mubr.f32.gmra.mrb[0].mxu0 %v2099
    %v2180 = vpop.f32.mrb[0].mxu0
    %v2181 = vadd.f32 %v2091, %v2180
    %v2182 = vpop.f32.mrb[0].mxu0
    %2183 = vmatprep.mubr.f32.mxu0 0.0
    %2184 = vmatmul.mubr.f32.gmra.mrb[0].mxu0 %v2102
    %v2185 = vpop.f32.mrb[0].mxu0
    %v2186 = vadd.f32 %v2091, %v2185
    %v2187 = vpop.f32.mrb[0].mxu0
    %2188 = vdwg.mxu0
    %v2189 = vmul.f32 %v2171, 0.5
    %v2190 = vmul.f32 %v2176, 0.5
    %v2191 = vmul.f32 %v2181, 0.5
    %v2192 = vmul.f32 %v2186, 0.5
    %v2193 = vmul.f32 %v2171, 0.70710677
    %v2194 = vmul.f32 %v2176, 0.70710677
    %v2195 = vmul.f32 %v2181, 0.70710677
    %v2196 = vmul.f32 %v2186, 0.70710677
    %v2197 = verf.f32.pop %v2193
    %v2198 = verf.f32.pop %v2194
    %v2199 = verf.f32.pop %v2195
    %v2200 = verf.f32.pop %v2196
    %v2201 = vadd.f32 %v2197, 1.0
    %v2202 = vadd.f32 %v2198, 1.0
    %v2203 = vadd.f32 %v2199, 1.0
    %v2204 = vadd.f32 %v2200, 1.0
    %v2205 = vmul.f32 %v2189, %v2201
    %v2206 = vmul.f32 %v2190, %v2202
    %v2207 = vmul.f32 %v2191, %v2203
    %v2208 = vmul.f32 %v2192, %v2204
    %v2209 = vld [vmem:[%s1 + $0x40] sm:$0xff]
    %v2210 = vld [vmem:[%s1 + $0x48] sm:$0xff]
    %v2211 = vld [vmem:[%s1 + $0x50] sm:$0xff]
    %v2212 = vld [vmem:[%s1 + $0x58] sm:$0xff]
    %v2213 = vld [vmem:[%s1 + $0x60] sm:$0xff]
    %v2214 = vld [vmem:[%s1 + $0x68] sm:$0xff]
    %v2215 = vld [vmem:[%s1 + $0x70] sm:$0xff]
    %v2216 = vld [vmem:[%s1 + $0x78] sm:$0xff]
    %v2217 = vld [vmem:[%s1 + $0xa3] sm:$0x1]
    %v2218 = vlaneseq
    %v2219 = vshrl.u32 %v2218, 7
    %v2220 = vsub.s32 0, %v2219
    %v2221 = vrot.slane %v2217, %v2220
    %vm2222 = vcmask 523264
    %v2224 = vsel %vm2222, %v2205, 0
    %v2227 = vsel %vm2222, %v2206, 0
    %v2230 = vsel %vm2222, %v2207, 0
    %v2233 = vsel %vm2222, %v2208, 0
    %2235 = vmatprep.subr.mxu0 0.0
    %2236 = vmatpush1.msra.mxu0 %v2209
    %2237 = vmatprep.subr.mxu0 0.0
    %2238 = vmatpush1.msra.mxu0 %v2210
    %2239 = vmatprep.subr.mxu0 0.0
    %2240 = vmatpush1.msra.mxu0 %v2211
    %2241 = vmatprep.subr.mxu0 0.0
    %2242 = vmatpush1.msra.mxu0 %v2212
    %2243 = vmatprep.subr.mxu0 0.0
    %2244 = vmatpush1.msra.mxu0 %v2213
    %2245 = vmatprep.subr.mxu0 0.0
    %2246 = vmatpush1.msra.mxu0 %v2214
    %2247 = vmatprep.subr.mxu0 0.0
    %2248 = vmatpush1.msra.mxu0 %v2215
    %2249 = vmatprep.subr.mxu0 0.0
    %2250 = vmatpush1.msra.mxu0 %v2216
    %2251 = vmatprep.subr.mxu0 0.0
    %2252 = vmatpush1.msra.mxu0 0.0
    %2253 = vmatprep.subr.mxu0 0.0
    %2254 = vmatpush1.msra.mxu0 0.0
    %2255 = vmatprep.subr.mxu0 0.0
    %2256 = vmatpush1.msra.mxu0 0.0
    %2257 = vmatprep.subr.mxu0 0.0
    %2258 = vmatpush1.msra.mxu0 0.0
    %2259 = vmatprep.subr.mxu0 0.0
    %2260 = vmatpush1.msra.mxu0 0.0
    %2261 = vmatprep.subr.mxu0 0.0
    %2262 = vmatpush1.msra.mxu0 0.0
    %2263 = vmatprep.subr.mxu0 0.0
    %2264 = vmatpush1.msra.mxu0 0.0
    %2265 = vmatprep.subr.mxu0 0.0
    %2266 = vmatpush1.msra.mxu0 0.0
    %2267 = vmatprep.subr.mxu0 0.0
    %2268 = vmatpush1.msra.mxu0 0.0
    %2269 = vmatprep.subr.mxu0 0.0
    %2270 = vmatpush1.msra.mxu0 0.0
    %2271 = vmatprep.subr.mxu0 0.0
    %2272 = vmatpush1.msra.mxu0 0.0
    %2273 = vmatprep.subr.mxu0 0.0
    %2274 = vmatpush1.msra.mxu0 0.0
    %2275 = vmatprep.subr.mxu0 0.0
    %2276 = vmatpush1.msra.mxu0 0.0
    %2277 = vmatprep.subr.mxu0 0.0
    %2278 = vmatpush1.msra.mxu0 0.0
    %2279 = vmatprep.subr.mxu0 0.0
    %2280 = vmatpush1.msra.mxu0 0.0
    %2281 = vmatprep.subr.mxu0 0.0
    %2282 = vmatpush1.msra.mxu0 0.0
    %2283 = vmatprep.subr.mxu0 0.0
    %2284 = vmatpush1.msra.mxu0 0.0
    %2285 = vmatprep.subr.mxu0 0.0
    %2286 = vmatpush1.msra.mxu0 0.0
    %2287 = vmatprep.subr.mxu0 0.0
    %2288 = vmatpush1.msra.mxu0 0.0
    %2289 = vmatprep.subr.mxu0 0.0
    %2290 = vmatpush1.msra.mxu0 0.0
    %2291 = vmatprep.subr.mxu0 0.0
    %2292 = vmatpush1.msra.mxu0 0.0
    %2293 = vmatprep.subr.mxu0 0.0
    %2294 = vmatpush1.msra.mxu0 0.0
    %2295 = vmatprep.subr.mxu0 0.0
    %2296 = vmatpush1.msra.mxu0 0.0
    %2297 = vmatprep.subr.mxu0 0.0
    %2298 = vmatpush1.msra.mxu0 0.0
    %2299 = vmatprep.mubr.f32.mxu0 0.0
    %2300 = vmatmul.mubr.f32.gmra.mrb[0].mxu0 %v2224
    %v2301 = vpop.f32.mrb[0].mxu0
    %v2302 = vadd.f32 %v2221, %v2301
    %v2303 = vpop.f32.mrb[0].mxu0
    %2304 = vmatprep.mubr.f32.mxu0 0.0
    %2305 = vmatmul.mubr.f32.gmra.mrb[0].mxu0 %v2227
    %v2306 = vpop.f32.mrb[0].mxu0
    %v2307 = vadd.f32 %v2221, %v2306
    %v2308 = vpop.f32.mrb[0].mxu0
    %2309 = vmatprep.mubr.f32.mxu0 0.0
    %2310 = vmatmul.mubr.f32.gmra.mrb[0].mxu0 %v2230
    %v2311 = vpop.f32.mrb[0].mxu0
    %v2312 = vadd.f32 %v2221, %v2311
    %v2313 = vpop.f32.mrb[0].mxu0
    %2314 = vmatprep.mubr.f32.mxu0 0.0
    %2315 = vmatmul.mubr.f32.gmra.mrb[0].mxu0 %v2233
    %v2316 = vpop.f32.mrb[0].mxu0
    %v2317 = vadd.f32 %v2221, %v2316
    %v2318 = vpop.f32.mrb[0].mxu0
    %2319 = vdwg.mxu0
    %v2320 = vadd.f32 %v2079, %v2302
    %v2321 = vadd.f32 %v2080, %v2307
    %v2322 = vadd.f32 %v2081, %v2312
    %v2323 = vadd.f32 %v2082, %v2317
    %v2324 = vld [vmem:[%s1 + $0xa6] sm:$0x1]
    %v2325 = vld [vmem:[%s1 + $0xa7] sm:$0x1]
    %v2326 = vsel %vm23, %v2320, 0.0
    %2327 = vadd.xlane.f32.xlu0 %v2326
    %v2328 = vpop.xlane.xlu0 %2327
    %v2329 = vsel %vm23, %v2321, 0.0
    %2330 = vadd.xlane.f32.xlu0 %v2329
    %v2331 = vpop.xlane.xlu0 %2330
    %v2332 = vsel %vm23, %v2322, 0.0
    %2333 = vadd.xlane.f32.xlu0 %v2332
    %v2334 = vpop.xlane.xlu0 %2333
    %v2335 = vsel %vm23, %v2323, 0.0
    %2336 = vadd.xlane.f32.xlu0 %v2335
    %v2337 = vpop.xlane.xlu0 %2336
    %v2338 = vmul.f32 %v2328, %v2026
    %v2339 = vmul.f32 %v2331, %v2026
    %v2340 = vmul.f32 %v2334, %v2026
    %v2341 = vmul.f32 %v2337, %v2026
    %v2342 = vsub.f32 %v2320, %v2338
    %v2343 = vsub.f32 %v2321, %v2339
    %v2344 = vsub.f32 %v2322, %v2340
    %v2345 = vsub.f32 %v2323, %v2341
    %v2346 = vmul.f32 %v2342, %v2342
    %v2347 = vmul.f32 %v2343, %v2343
    %v2348 = vmul.f32 %v2344, %v2344
    %v2349 = vmul.f32 %v2345, %v2345
    %v2350 = vsel %vm23, %v2346, 0.0
    %2351 = vadd.xlane.f32.xlu0 %v2350
    %v2352 = vpop.xlane.xlu0 %2351
    %v2353 = vsel %vm23, %v2347, 0.0
    %2354 = vadd.xlane.f32.xlu0 %v2353
    %v2355 = vpop.xlane.xlu0 %2354
    %v2356 = vsel %vm23, %v2348, 0.0
    %2357 = vadd.xlane.f32.xlu0 %v2356
    %v2358 = vpop.xlane.xlu0 %2357
    %v2359 = vsel %vm23, %v2349, 0.0
    %2360 = vadd.xlane.f32.xlu0 %v2359
    %v2361 = vpop.xlane.xlu0 %2360
    %v2362 = vmul.f32 %v2352, %v2026
    %v2363 = vmul.f32 %v2355, %v2026
    %v2364 = vmul.f32 %v2358, %v2026
    %v2365 = vmul.f32 %v2361, %v2026
    %v2366 = vadd.f32 %v2362, 1e-05
    %v2367 = vadd.f32 %v2363, 1e-05
    %v2368 = vadd.f32 %v2364, 1e-05
    %v2369 = vadd.f32 %v2365, 1e-05
    %v2370 = vrsqrt.pop %v2366
    %v2371 = vrsqrt.pop %v2367
    %v2372 = vrsqrt.pop %v2368
    %v2373 = vrsqrt.pop %v2369
    %v2374 = vmul.f32 %v2342, %v2370
    %v2375 = vmul.f32 %v2343, %v2371
    %v2376 = vmul.f32 %v2344, %v2372
    %v2377 = vmul.f32 %v2345, %v2373
    %v2378 = vlaneseq
    %v2379 = vshrl.u32 %v2378, 7
    %v2380 = vsub.s32 0, %v2379
    %v2381 = vrot.slane %v2324, %v2380
    %v2382 = vmul.f32 %v2374, %v2381
    %v2383 = vmul.f32 %v2375, %v2381
    %v2384 = vmul.f32 %v2376, %v2381
    %v2385 = vmul.f32 %v2377, %v2381
    %v2386 = vlaneseq
    %v2387 = vshrl.u32 %v2386, 7
    %v2388 = vsub.s32 0, %v2387
    %v2389 = vrot.slane %v2325, %v2388
    %v2390 = vadd.f32 %v2382, %v2389
    %v2391 = vadd.f32 %v2383, %v2389
    %v2392 = vadd.f32 %v2384, %v2389
    %v2393 = vadd.f32 %v2385, %v2389
    %s2394 = scalar_lea.vmem %s1, 168
    %v2395 = vld [vmem:[%s2394] sm:$0xff]
    %v2396 = vld [vmem:[%s2394 + $0x8] sm:$0xff]
    %v2397 = vld [vmem:[%s2394 + $0x10] sm:$0xff]
    %v2398 = vld [vmem:[%s2394 + $0x18] sm:$0xff]
    %v2399 = vld [vmem:[%s2394 + $0xa0] sm:$0x1]
    %v2400 = vlaneseq
    %v2401 = vshrl.u32 %v2400, 7
    %v2402 = vsub.s32 0, %v2401
    %v2403 = vrot.slane %v2399, %v2402
    %v2405 = vsel %vm23, %v2390, 0
    %v2408 = vsel %vm23, %v2391, 0
    %v2411 = vsel %vm23, %v2392, 0
    %v2414 = vsel %vm23, %v2393, 0
    %2416 = vmatprep.subr.mxu0 0.0
    %2417 = vmatpush1.msra.mxu0 %v2395
    %2418 = vmatprep.subr.mxu0 0.0
    %2419 = vmatpush1.msra.mxu0 %v2396
    %2420 = vmatprep.subr.mxu0 0.0
    %2421 = vmatpush1.msra.mxu0 %v2397
    %2422 = vmatprep.subr.mxu0 0.0
    %2423 = vmatpush1.msra.mxu0 %v2398
    %2424 = vmatprep.subr.mxu0 0.0
    %2425 = vmatpush1.msra.mxu0 0.0
    %2426 = vmatprep.subr.mxu0 0.0
    %2427 = vmatpush1.msra.mxu0 0.0
    %2428 = vmatprep.subr.mxu0 0.0
    %2429 = vmatpush1.msra.mxu0 0.0
    %2430 = vmatprep.subr.mxu0 0.0
    %2431 = vmatpush1.msra.mxu0 0.0
    %2432 = vmatprep.subr.mxu0 0.0
    %2433 = vmatpush1.msra.mxu0 0.0
    %2434 = vmatprep.subr.mxu0 0.0
    %2435 = vmatpush1.msra.mxu0 0.0
    %2436 = vmatprep.subr.mxu0 0.0
    %2437 = vmatpush1.msra.mxu0 0.0
    %2438 = vmatprep.subr.mxu0 0.0
    %2439 = vmatpush1.msra.mxu0 0.0
    %2440 = vmatprep.subr.mxu0 0.0
    %2441 = vmatpush1.msra.mxu0 0.0
    %2442 = vmatprep.subr.mxu0 0.0
    %2443 = vmatpush1.msra.mxu0 0.0
    %2444 = vmatprep.subr.mxu0 0.0
    %2445 = vmatpush1.msra.mxu0 0.0
    %2446 = vmatprep.subr.mxu0 0.0
    %2447 = vmatpush1.msra.mxu0 0.0
    %2448 = vmatprep.subr.mxu0 0.0
    %2449 = vmatpush1.msra.mxu0 0.0
    %2450 = vmatprep.subr.mxu0 0.0
    %2451 = vmatpush1.msra.mxu0 0.0
    %2452 = vmatprep.subr.mxu0 0.0
    %2453 = vmatpush1.msra.mxu0 0.0
    %2454 = vmatprep.subr.mxu0 0.0
    %2455 = vmatpush1.msra.mxu0 0.0
    %2456 = vmatprep.subr.mxu0 0.0
    %2457 = vmatpush1.msra.mxu0 0.0
    %2458 = vmatprep.subr.mxu0 0.0
    %2459 = vmatpush1.msra.mxu0 0.0
    %2460 = vmatprep.subr.mxu0 0.0
    %2461 = vmatpush1.msra.mxu0 0.0
    %2462 = vmatprep.subr.mxu0 0.0
    %2463 = vmatpush1.msra.mxu0 0.0
    %2464 = vmatprep.subr.mxu0 0.0
    %2465 = vmatpush1.msra.mxu0 0.0
    %2466 = vmatprep.subr.mxu0 0.0
    %2467 = vmatpush1.msra.mxu0 0.0
    %2468 = vmatprep.subr.mxu0 0.0
    %2469 = vmatpush1.msra.mxu0 0.0
    %2470 = vmatprep.subr.mxu0 0.0
    %2471 = vmatpush1.msra.mxu0 0.0
    %2472 = vmatprep.subr.mxu0 0.0
    %2473 = vmatpush1.msra.mxu0 0.0
    %2474 = vmatprep.subr.mxu0 0.0
    %2475 = vmatpush1.msra.mxu0 0.0
    %2476 = vmatprep.subr.mxu0 0.0
    %2477 = vmatpush1.msra.mxu0 0.0
    %2478 = vmatprep.subr.mxu0 0.0
    %2479 = vmatpush1.msra.mxu0 0.0
    %2480 = vmatprep.mubr.f32.mxu0 0.0
    %2481 = vmatmul.mubr.f32.gmra.mrb[0].mxu0 %v2405
    %v2482 = vpop.f32.mrb[0].mxu0
    %v2483 = vadd.f32 %v2403, %v2482
    %v2484 = vpop.f32.mrb[0].mxu0
    %2485 = vmatprep.mubr.f32.mxu0 0.0
    %2486 = vmatmul.mubr.f32.gmra.mrb[0].mxu0 %v2408
    %v2487 = vpop.f32.mrb[0].mxu0
    %v2488 = vadd.f32 %v2403, %v2487
    %v2489 = vpop.f32.mrb[0].mxu0
    %2490 = vmatprep.mubr.f32.mxu0 0.0
    %2491 = vmatmul.mubr.f32.gmra.mrb[0].mxu0 %v2411
    %v2492 = vpop.f32.mrb[0].mxu0
    %v2493 = vadd.f32 %v2403, %v2492
    %v2494 = vpop.f32.mrb[0].mxu0
    %2495 = vmatprep.mubr.f32.mxu0 0.0
    %2496 = vmatmul.mubr.f32.gmra.mrb[0].mxu0 %v2414
    %v2497 = vpop.f32.mrb[0].mxu0
    %v2498 = vadd.f32 %v2403, %v2497
    %v2499 = vpop.f32.mrb[0].mxu0
    %2500 = vdwg.mxu0
    %2503 = vrot.lane.b32.xlu0 %v2483, 96
    %v2504 = vpop.permute.xlu0 %2503
    %2505 = vrot.lane.b32.xlu0 %v2488, 96
    %v2506 = vpop.permute.xlu0 %2505
    %v2507 = vsel %vm233, %v2483, 0
    %v2509 = vsel %vm233, %v2488, 0
    %v2511 = vsel %vm233, %v2504, 0
    %v2513 = vsel %vm233, %v2506, 0
    %2515 = vmatprep.subr.mxu0 0.0
    %2516 = vmatpush1.xpose.msra.mxu0 %v2511
    %2517 = vmatprep.subr.mxu0 0.0
    %2518 = vmatpush1.xpose.msra.mxu0 %v2513
    %2519 = vmatprep.subr.mxu0 0.0
    %2520 = vmatpush1.xpose.msra.mxu0 0.0
    %2521 = vmatprep.subr.mxu0 0.0
    %2522 = vmatpush1.xpose.msra.mxu0 0.0
    %2523 = vmatprep.subr.mxu0 0.0
    %2524 = vmatpush1.xpose.msra.mxu0 0.0
    %2525 = vmatprep.subr.mxu0 0.0
    %2526 = vmatpush1.xpose.msra.mxu0 0.0
    %2527 = vmatprep.subr.mxu0 0.0
    %2528 = vmatpush1.xpose.msra.mxu0 0.0
    %2529 = vmatprep.subr.mxu0 0.0
    %2530 = vmatpush1.xpose.msra.mxu0 0.0
    %2531 = vmatprep.subr.mxu0 0.0
    %2532 = vmatpush1.xpose.msra.mxu0 0.0
    %2533 = vmatprep.subr.mxu0 0.0
    %2534 = vmatpush1.xpose.msra.mxu0 0.0
    %2535 = vmatprep.subr.mxu0 0.0
    %2536 = vmatpush1.xpose.msra.mxu0 0.0
    %2537 = vmatprep.subr.mxu0 0.0
    %2538 = vmatpush1.xpose.msra.mxu0 0.0
    %2539 = vmatprep.subr.mxu0 0.0
    %2540 = vmatpush1.xpose.msra.mxu0 0.0
    %2541 = vmatprep.subr.mxu0 0.0
    %2542 = vmatpush1.xpose.msra.mxu0 0.0
    %2543 = vmatprep.subr.mxu0 0.0
    %2544 = vmatpush1.xpose.msra.mxu0 0.0
    %2545 = vmatprep.subr.mxu0 0.0
    %2546 = vmatpush1.xpose.msra.mxu0 0.0
    %2547 = vmatprep.subr.mxu0 0.0
    %2548 = vmatpush1.xpose.msra.mxu0 0.0
    %2549 = vmatprep.subr.mxu0 0.0
    %2550 = vmatpush1.xpose.msra.mxu0 0.0
    %2551 = vmatprep.subr.mxu0 0.0
    %2552 = vmatpush1.xpose.msra.mxu0 0.0
    %2553 = vmatprep.subr.mxu0 0.0
    %2554 = vmatpush1.xpose.msra.mxu0 0.0
    %2555 = vmatprep.subr.mxu0 0.0
    %2556 = vmatpush1.xpose.msra.mxu0 0.0
    %2557 = vmatprep.subr.mxu0 0.0
    %2558 = vmatpush1.xpose.msra.mxu0 0.0
    %2559 = vmatprep.subr.mxu0 0.0
    %2560 = vmatpush1.xpose.msra.mxu0 0.0
    %2561 = vmatprep.subr.mxu0 0.0
    %2562 = vmatpush1.xpose.msra.mxu0 0.0
    %2563 = vmatprep.subr.mxu0 0.0
    %2564 = vmatpush1.xpose.msra.mxu0 0.0
    %2565 = vmatprep.subr.mxu0 0.0
    %2566 = vmatpush1.xpose.msra.mxu0 0.0
    %2567 = vmatprep.subr.mxu0 0.0
    %2568 = vmatpush1.xpose.msra.mxu0 0.0
    %2569 = vmatprep.subr.mxu0 0.0
    %2570 = vmatpush1.xpose.msra.mxu0 0.0
    %2571 = vmatprep.subr.mxu0 0.0
    %2572 = vmatpush1.xpose.msra.mxu0 0.0
    %2573 = vmatprep.subr.mxu0 0.0
    %2574 = vmatpush1.xpose.msra.mxu0 0.0
    %2575 = vmatprep.subr.mxu0 0.0
    %2576 = vmatpush1.xpose.msra.mxu0 0.0
    %2577 = vmatprep.subr.mxu0 0.0
    %2578 = vmatpush1.xpose.msra.mxu0 0.0
    %2579 = vmatprep.mubr.f32.mxu0 0.0
    %2580 = vmatmul.mubr.f32.gmra.mrb[0].mxu0 %v2507
    %v2581 = vpop.f32.mrb[0].mxu0
    %v2582 = vadd.f32 0.0, %v2581
    %v2583 = vpop.f32.mrb[0].mxu0
    %2584 = vmatprep.mubr.f32.mxu0 0.0
    %2585 = vmatmul.mubr.f32.gmra.mrb[0].mxu0 %v2509
    %v2586 = vpop.f32.mrb[0].mxu0
    %v2587 = vadd.f32 0.0, %v2586
    %v2588 = vpop.f32.mrb[0].mxu0
    %2589 = vdwg.mxu0
    %2592 = vrot.lane.b32.xlu0 %v2493, 96
    %v2593 = vpop.permute.xlu0 %2592
    %2594 = vrot.lane.b32.xlu0 %v2498, 96
    %v2595 = vpop.permute.xlu0 %2594
    %v2596 = vsel %vm233, %v2493, 0
    %v2598 = vsel %vm233, %v2498, 0
    %v2600 = vsel %vm233, %v2593, 0
    %v2602 = vsel %vm233, %v2595, 0
    %2604 = vmatprep.subr.mxu0 0.0
    %2605 = vmatpush1.xpose.msra.mxu0 %v2600
    %2606 = vmatprep.subr.mxu0 0.0
    %2607 = vmatpush1.xpose.msra.mxu0 %v2602
    %2608 = vmatprep.subr.mxu0 0.0
    %2609 = vmatpush1.xpose.msra.mxu0 0.0
    %2610 = vmatprep.subr.mxu0 0.0
    %2611 = vmatpush1.xpose.msra.mxu0 0.0
    %2612 = vmatprep.subr.mxu0 0.0
    %2613 = vmatpush1.xpose.msra.mxu0 0.0
    %2614 = vmatprep.subr.mxu0 0.0
    %2615 = vmatpush1.xpose.msra.mxu0 0.0
    %2616 = vmatprep.subr.mxu0 0.0
    %2617 = vmatpush1.xpose.msra.mxu0 0.0
    %2618 = vmatprep.subr.mxu0 0.0
    %2619 = vmatpush1.xpose.msra.mxu0 0.0
    %2620 = vmatprep.subr.mxu0 0.0
    %2621 = vmatpush1.xpose.msra.mxu0 0.0
    %2622 = vmatprep.subr.mxu0 0.0
    %2623 = vmatpush1.xpose.msra.mxu0 0.0
    %2624 = vmatprep.subr.mxu0 0.0
    %2625 = vmatpush1.xpose.msra.mxu0 0.0
    %2626 = vmatprep.subr.mxu0 0.0
    %2627 = vmatpush1.xpose.msra.mxu0 0.0
    %2628 = vmatprep.subr.mxu0 0.0
    %2629 = vmatpush1.xpose.msra.mxu0 0.0
    %2630 = vmatprep.subr.mxu0 0.0
    %2631 = vmatpush1.xpose.msra.mxu0 0.0
    %2632 = vmatprep.subr.mxu0 0.0
    %2633 = vmatpush1.xpose.msra.mxu0 0.0
    %2634 = vmatprep.subr.mxu0 0.0
    %2635 = vmatpush1.xpose.msra.mxu0 0.0
    %2636 = vmatprep.subr.mxu0 0.0
    %2637 = vmatpush1.xpose.msra.mxu0 0.0
    %2638 = vmatprep.subr.mxu0 0.0
    %2639 = vmatpush1.xpose.msra.mxu0 0.0
    %2640 = vmatprep.subr.mxu0 0.0
    %2641 = vmatpush1.xpose.msra.mxu0 0.0
    %2642 = vmatprep.subr.mxu0 0.0
    %2643 = vmatpush1.xpose.msra.mxu0 0.0
    %2644 = vmatprep.subr.mxu0 0.0
    %2645 = vmatpush1.xpose.msra.mxu0 0.0
    %2646 = vmatprep.subr.mxu0 0.0
    %2647 = vmatpush1.xpose.msra.mxu0 0.0
    %2648 = vmatprep.subr.mxu0 0.0
    %2649 = vmatpush1.xpose.msra.mxu0 0.0
    %2650 = vmatprep.subr.mxu0 0.0
    %2651 = vmatpush1.xpose.msra.mxu0 0.0
    %2652 = vmatprep.subr.mxu0 0.0
    %2653 = vmatpush1.xpose.msra.mxu0 0.0
    %2654 = vmatprep.subr.mxu0 0.0
    %2655 = vmatpush1.xpose.msra.mxu0 0.0
    %2656 = vmatprep.subr.mxu0 0.0
    %2657 = vmatpush1.xpose.msra.mxu0 0.0
    %2658 = vmatprep.subr.mxu0 0.0
    %2659 = vmatpush1.xpose.msra.mxu0 0.0
    %2660 = vmatprep.subr.mxu0 0.0
    %2661 = vmatpush1.xpose.msra.mxu0 0.0
    %2662 = vmatprep.subr.mxu0 0.0
    %2663 = vmatpush1.xpose.msra.mxu0 0.0
    %2664 = vmatprep.subr.mxu0 0.0
    %2665 = vmatpush1.xpose.msra.mxu0 0.0
    %2666 = vmatprep.subr.mxu0 0.0
    %2667 = vmatpush1.xpose.msra.mxu0 0.0
    %2668 = vmatprep.mubr.f32.mxu0 0.0
    %2669 = vmatmul.mubr.f32.gmra.mrb[0].mxu0 %v2596
    %v2670 = vpop.f32.mrb[0].mxu0
    %v2671 = vadd.f32 0.0, %v2670
    %v2672 = vpop.f32.mrb[0].mxu0
    %2673 = vmatprep.mubr.f32.mxu0 0.0
    %2674 = vmatmul.mubr.f32.gmra.mrb[0].mxu0 %v2598
    %v2675 = vpop.f32.mrb[0].mxu0
    %v2676 = vadd.f32 0.0, %v2675
    %v2677 = vpop.f32.mrb[0].mxu0
    %2678 = vdwg.mxu0
    %v2679 = vmul.f32 %v2582, 0.35355338
    %v2680 = vmul.f32 %v2587, 0.35355338
    %v2681 = vmul.f32 %v2671, 0.35355338
    %v2682 = vmul.f32 %v2676, 0.35355338
    %v2683 = vsel %vm410, %v2679, -inf
    %2684 = vmax.xlane.f32.xlu0 %v2683
    %v2685 = vpop.xlane.xlu0 %2684
    %v2686 = vsel %vm410, %v2680, -inf
    %2687 = vmax.xlane.f32.xlu0 %v2686
    %v2688 = vpop.xlane.xlu0 %2687
    %v2689 = vsel %vm410, %v2681, -inf
    %2690 = vmax.xlane.f32.xlu0 %v2689
    %v2691 = vpop.xlane.xlu0 %2690
    %v2692 = vsel %vm410, %v2682, -inf
    %2693 = vmax.xlane.f32.xlu0 %v2692
    %v2694 = vpop.xlane.xlu0 %2693
    %v2695 = vsub.f32 %v2679, %v2685
    %v2696 = vsub.f32 %v2680, %v2688
    %v2697 = vsub.f32 %v2681, %v2691
    %v2698 = vsub.f32 %v2682, %v2694
    %v2699 = vmul.f32 %v2695, 1.442695
    %v2700 = vpow.pop %v2699
    %v2701 = vmul.f32 %v2696, 1.442695
    %v2702 = vpow.pop %v2701
    %v2703 = vmul.f32 %v2697, 1.442695
    %v2704 = vpow.pop %v2703
    %v2705 = vmul.f32 %v2698, 1.442695
    %v2706 = vpow.pop %v2705
    %v2707 = vsel %vm410, %v2700, 0.0
    %2708 = vadd.xlane.f32.xlu0 %v2707
    %v2709 = vpop.xlane.xlu0 %2708
    %v2710 = vsel %vm410, %v2702, 0.0
    %2711 = vadd.xlane.f32.xlu0 %v2710
    %v2712 = vpop.xlane.xlu0 %2711
    %v2713 = vsel %vm410, %v2704, 0.0
    %2714 = vadd.xlane.f32.xlu0 %v2713
    %v2715 = vpop.xlane.xlu0 %2714
    %v2716 = vsel %vm410, %v2706, 0.0
    %2717 = vadd.xlane.f32.xlu0 %v2716
    %v2718 = vpop.xlane.xlu0 %2717
    %v2719 = vrcp.pop %v2709
    %v2720 = vrcp.pop %v2712
    %v2721 = vrcp.pop %v2715
    %v2722 = vrcp.pop %v2718
    %v2723 = vmul.f32 %v2700, %v2719
    %v2724 = vmul.f32 %v2702, %v2720
    %v2725 = vmul.f32 %v2704, %v2721
    %v2726 = vmul.f32 %v2706, %v2722
    %2727 = vrot.lane.b32.xlu0 %v2483, 64
    %v2728 = vpop.permute.xlu0 %2727
    %2729 = vrot.lane.b32.xlu0 %v2488, 64
    %v2730 = vpop.permute.xlu0 %2729
    %v2734 = vsel %vm410, %v2723, 0
    %v2737 = vsel %vm410, %v2724, 0
    %2739 = vmatprep.subr.mxu0 0.0
    %2740 = vmatpush1.msra.mxu0 %v2728
    %2741 = vmatprep.subr.mxu0 0.0
    %2742 = vmatpush1.msra.mxu0 %v2730
    %2743 = vmatprep.subr.mxu0 0.0
    %2744 = vmatpush1.msra.mxu0 0.0
    %2745 = vmatprep.subr.mxu0 0.0
    %2746 = vmatpush1.msra.mxu0 0.0
    %2747 = vmatprep.subr.mxu0 0.0
    %2748 = vmatpush1.msra.mxu0 0.0
    %2749 = vmatprep.subr.mxu0 0.0
    %2750 = vmatpush1.msra.mxu0 0.0
    %2751 = vmatprep.subr.mxu0 0.0
    %2752 = vmatpush1.msra.mxu0 0.0
    %2753 = vmatprep.subr.mxu0 0.0
    %2754 = vmatpush1.msra.mxu0 0.0
    %2755 = vmatprep.subr.mxu0 0.0
    %2756 = vmatpush1.msra.mxu0 0.0
    %2757 = vmatprep.subr.mxu0 0.0
    %2758 = vmatpush1.msra.mxu0 0.0
    %2759 = vmatprep.subr.mxu0 0.0
    %2760 = vmatpush1.msra.mxu0 0.0
    %2761 = vmatprep.subr.mxu0 0.0
    %2762 = vmatpush1.msra.mxu0 0.0
    %2763 = vmatprep.subr.mxu0 0.0
    %2764 = vmatpush1.msra.mxu0 0.0
    %2765 = vmatprep.subr.mxu0 0.0
    %2766 = vmatpush1.msra.mxu0 0.0
    %2767 = vmatprep.subr.mxu0 0.0
    %2768 = vmatpush1.msra.mxu0 0.0
    %2769 = vmatprep.subr.mxu0 0.0
    %2770 = vmatpush1.msra.mxu0 0.0
    %2771 = vmatprep.subr.mxu0 0.0
    %2772 = vmatpush1.msra.mxu0 0.0
    %2773 = vmatprep.subr.mxu0 0.0
    %2774 = vmatpush1.msra.mxu0 0.0
    %2775 = vmatprep.subr.mxu0 0.0
    %2776 = vmatpush1.msra.mxu0 0.0
    %2777 = vmatprep.subr.mxu0 0.0
    %2778 = vmatpush1.msra.mxu0 0.0
    %2779 = vmatprep.subr.mxu0 0.0
    %2780 = vmatpush1.msra.mxu0 0.0
    %2781 = vmatprep.subr.mxu0 0.0
    %2782 = vmatpush1.msra.mxu0 0.0
    %2783 = vmatprep.subr.mxu0 0.0
    %2784 = vmatpush1.msra.mxu0 0.0
    %2785 = vmatprep.subr.mxu0 0.0
    %2786 = vmatpush1.msra.mxu0 0.0
    %2787 = vmatprep.subr.mxu0 0.0
    %2788 = vmatpush1.msra.mxu0 0.0
    %2789 = vmatprep.subr.mxu0 0.0
    %2790 = vmatpush1.msra.mxu0 0.0
    %2791 = vmatprep.subr.mxu0 0.0
    %2792 = vmatpush1.msra.mxu0 0.0
    %2793 = vmatprep.subr.mxu0 0.0
    %2794 = vmatpush1.msra.mxu0 0.0
    %2795 = vmatprep.subr.mxu0 0.0
    %2796 = vmatpush1.msra.mxu0 0.0
    %2797 = vmatprep.subr.mxu0 0.0
    %2798 = vmatpush1.msra.mxu0 0.0
    %2799 = vmatprep.subr.mxu0 0.0
    %2800 = vmatpush1.msra.mxu0 0.0
    %2801 = vmatprep.subr.mxu0 0.0
    %2802 = vmatpush1.msra.mxu0 0.0
    %2803 = vmatprep.mubr.f32.mxu0 0.0
    %2804 = vmatmul.mubr.f32.gmra.mrb[0].mxu0 %v2734
    %v2805 = vpop.f32.mrb[0].mxu0
    %v2806 = vadd.f32 0.0, %v2805
    %v2807 = vpop.f32.mrb[0].mxu0
    %2808 = vmatprep.mubr.f32.mxu0 0.0
    %2809 = vmatmul.mubr.f32.gmra.mrb[0].mxu0 %v2737
    %v2810 = vpop.f32.mrb[0].mxu0
    %v2811 = vadd.f32 0.0, %v2810
    %v2812 = vpop.f32.mrb[0].mxu0
    %2813 = vdwg.mxu0
    %2814 = vrot.lane.b32.xlu0 %v2493, 64
    %v2815 = vpop.permute.xlu0 %2814
    %2816 = vrot.lane.b32.xlu0 %v2498, 64
    %v2817 = vpop.permute.xlu0 %2816
    %v2821 = vsel %vm410, %v2725, 0
    %v2824 = vsel %vm410, %v2726, 0
    %2826 = vmatprep.subr.mxu0 0.0
    %2827 = vmatpush1.msra.mxu0 %v2815
    %2828 = vmatprep.subr.mxu0 0.0
    %2829 = vmatpush1.msra.mxu0 %v2817
    %2830 = vmatprep.subr.mxu0 0.0
    %2831 = vmatpush1.msra.mxu0 0.0
    %2832 = vmatprep.subr.mxu0 0.0
    %2833 = vmatpush1.msra.mxu0 0.0
    %2834 = vmatprep.subr.mxu0 0.0
    %2835 = vmatpush1.msra.mxu0 0.0
    %2836 = vmatprep.subr.mxu0 0.0
    %2837 = vmatpush1.msra.mxu0 0.0
    %2838 = vmatprep.subr.mxu0 0.0
    %2839 = vmatpush1.msra.mxu0 0.0
    %2840 = vmatprep.subr.mxu0 0.0
    %2841 = vmatpush1.msra.mxu0 0.0
    %2842 = vmatprep.subr.mxu0 0.0
    %2843 = vmatpush1.msra.mxu0 0.0
    %2844 = vmatprep.subr.mxu0 0.0
    %2845 = vmatpush1.msra.mxu0 0.0
    %2846 = vmatprep.subr.mxu0 0.0
    %2847 = vmatpush1.msra.mxu0 0.0
    %2848 = vmatprep.subr.mxu0 0.0
    %2849 = vmatpush1.msra.mxu0 0.0
    %2850 = vmatprep.subr.mxu0 0.0
    %2851 = vmatpush1.msra.mxu0 0.0
    %2852 = vmatprep.subr.mxu0 0.0
    %2853 = vmatpush1.msra.mxu0 0.0
    %2854 = vmatprep.subr.mxu0 0.0
    %2855 = vmatpush1.msra.mxu0 0.0
    %2856 = vmatprep.subr.mxu0 0.0
    %2857 = vmatpush1.msra.mxu0 0.0
    %2858 = vmatprep.subr.mxu0 0.0
    %2859 = vmatpush1.msra.mxu0 0.0
    %2860 = vmatprep.subr.mxu0 0.0
    %2861 = vmatpush1.msra.mxu0 0.0
    %2862 = vmatprep.subr.mxu0 0.0
    %2863 = vmatpush1.msra.mxu0 0.0
    %2864 = vmatprep.subr.mxu0 0.0
    %2865 = vmatpush1.msra.mxu0 0.0
    %2866 = vmatprep.subr.mxu0 0.0
    %2867 = vmatpush1.msra.mxu0 0.0
    %2868 = vmatprep.subr.mxu0 0.0
    %2869 = vmatpush1.msra.mxu0 0.0
    %2870 = vmatprep.subr.mxu0 0.0
    %2871 = vmatpush1.msra.mxu0 0.0
    %2872 = vmatprep.subr.mxu0 0.0
    %2873 = vmatpush1.msra.mxu0 0.0
    %2874 = vmatprep.subr.mxu0 0.0
    %2875 = vmatpush1.msra.mxu0 0.0
    %2876 = vmatprep.subr.mxu0 0.0
    %2877 = vmatpush1.msra.mxu0 0.0
    %2878 = vmatprep.subr.mxu0 0.0
    %2879 = vmatpush1.msra.mxu0 0.0
    %2880 = vmatprep.subr.mxu0 0.0
    %2881 = vmatpush1.msra.mxu0 0.0
    %2882 = vmatprep.subr.mxu0 0.0
    %2883 = vmatpush1.msra.mxu0 0.0
    %2884 = vmatprep.subr.mxu0 0.0
    %2885 = vmatpush1.msra.mxu0 0.0
    %2886 = vmatprep.subr.mxu0 0.0
    %2887 = vmatpush1.msra.mxu0 0.0
    %2888 = vmatprep.subr.mxu0 0.0
    %2889 = vmatpush1.msra.mxu0 0.0
    %2890 = vmatprep.mubr.f32.mxu0 0.0
    %2891 = vmatmul.mubr.f32.gmra.mrb[0].mxu0 %v2821
    %v2892 = vpop.f32.mrb[0].mxu0
    %v2893 = vadd.f32 0.0, %v2892
    %v2894 = vpop.f32.mrb[0].mxu0
    %2895 = vmatprep.mubr.f32.mxu0 0.0
    %2896 = vmatmul.mubr.f32.gmra.mrb[0].mxu0 %v2824
    %v2897 = vpop.f32.mrb[0].mxu0
    %v2898 = vadd.f32 0.0, %v2897
    %v2899 = vpop.f32.mrb[0].mxu0
    %2900 = vdwg.mxu0
    %2901 = vrot.lane.b32.xlu0 %v2483, 120
    %v2902 = vpop.permute.xlu0 %2901
    %2903 = vrot.lane.b32.xlu0 %v2488, 120
    %v2904 = vpop.permute.xlu0 %2903
    %2905 = vrot.lane.b32.xlu0 %v2483, 88
    %v2906 = vpop.permute.xlu0 %2905
    %2907 = vrot.lane.b32.xlu0 %v2488, 88
    %v2908 = vpop.permute.xlu0 %2907
    %v2909 = vsel %vm233, %v2902, 0
    %v2911 = vsel %vm233, %v2904, 0
    %v2913 = vsel %vm233, %v2906, 0
    %v2915 = vsel %vm233, %v2908, 0
    %2917 = vmatprep.subr.mxu0 0.0
    %2918 = vmatpush1.xpose.msra.mxu0 %v2913
    %2919 = vmatprep.subr.mxu0 0.0
    %2920 = vmatpush1.xpose.msra.mxu0 %v2915
    %2921 = vmatprep.subr.mxu0 0.0
    %2922 = vmatpush1.xpose.msra.mxu0 0.0
    %2923 = vmatprep.subr.mxu0 0.0
    %2924 = vmatpush1.xpose.msra.mxu0 0.0
    %2925 = vmatprep.subr.mxu0 0.0
    %2926 = vmatpush1.xpose.msra.mxu0 0.0
    %2927 = vmatprep.subr.mxu0 0.0
    %2928 = vmatpush1.xpose.msra.mxu0 0.0
    %2929 = vmatprep.subr.mxu0 0.0
    %2930 = vmatpush1.xpose.msra.mxu0 0.0
    %2931 = vmatprep.subr.mxu0 0.0
    %2932 = vmatpush1.xpose.msra.mxu0 0.0
    %2933 = vmatprep.subr.mxu0 0.0
    %2934 = vmatpush1.xpose.msra.mxu0 0.0
    %2935 = vmatprep.subr.mxu0 0.0
    %2936 = vmatpush1.xpose.msra.mxu0 0.0
    %2937 = vmatprep.subr.mxu0 0.0
    %2938 = vmatpush1.xpose.msra.mxu0 0.0
    %2939 = vmatprep.subr.mxu0 0.0
    %2940 = vmatpush1.xpose.msra.mxu0 0.0
    %2941 = vmatprep.subr.mxu0 0.0
    %2942 = vmatpush1.xpose.msra.mxu0 0.0
    %2943 = vmatprep.subr.mxu0 0.0
    %2944 = vmatpush1.xpose.msra.mxu0 0.0
    %2945 = vmatprep.subr.mxu0 0.0
    %2946 = vmatpush1.xpose.msra.mxu0 0.0
    %2947 = vmatprep.subr.mxu0 0.0
    %2948 = vmatpush1.xpose.msra.mxu0 0.0
    %2949 = vmatprep.subr.mxu0 0.0
    %2950 = vmatpush1.xpose.msra.mxu0 0.0
    %2951 = vmatprep.subr.mxu0 0.0
    %2952 = vmatpush1.xpose.msra.mxu0 0.0
    %2953 = vmatprep.subr.mxu0 0.0
    %2954 = vmatpush1.xpose.msra.mxu0 0.0
    %2955 = vmatprep.subr.mxu0 0.0
    %2956 = vmatpush1.xpose.msra.mxu0 0.0
    %2957 = vmatprep.subr.mxu0 0.0
    %2958 = vmatpush1.xpose.msra.mxu0 0.0
    %2959 = vmatprep.subr.mxu0 0.0
    %2960 = vmatpush1.xpose.msra.mxu0 0.0
    %2961 = vmatprep.subr.mxu0 0.0
    %2962 = vmatpush1.xpose.msra.mxu0 0.0
    %2963 = vmatprep.subr.mxu0 0.0
    %2964 = vmatpush1.xpose.msra.mxu0 0.0
    %2965 = vmatprep.subr.mxu0 0.0
    %2966 = vmatpush1.xpose.msra.mxu0 0.0
    %2967 = vmatprep.subr.mxu0 0.0
    %2968 = vmatpush1.xpose.msra.mxu0 0.0
    %2969 = vmatprep.subr.mxu0 0.0
    %2970 = vmatpush1.xpose.msra.mxu0 0.0
    %2971 = vmatprep.subr.mxu0 0.0
    %2972 = vmatpush1.xpose.msra.mxu0 0.0
    %2973 = vmatprep.subr.mxu0 0.0
    %2974 = vmatpush1.xpose.msra.mxu0 0.0
    %2975 = vmatprep.subr.mxu0 0.0
    %2976 = vmatpush1.xpose.msra.mxu0 0.0
    %2977 = vmatprep.subr.mxu0 0.0
    %2978 = vmatpush1.xpose.msra.mxu0 0.0
    %2979 = vmatprep.subr.mxu0 0.0
    %2980 = vmatpush1.xpose.msra.mxu0 0.0
    %2981 = vmatprep.mubr.f32.mxu0 0.0
    %2982 = vmatmul.mubr.f32.gmra.mrb[0].mxu0 %v2909
    %v2983 = vpop.f32.mrb[0].mxu0
    %v2984 = vadd.f32 0.0, %v2983
    %v2985 = vpop.f32.mrb[0].mxu0
    %2986 = vmatprep.mubr.f32.mxu0 0.0
    %2987 = vmatmul.mubr.f32.gmra.mrb[0].mxu0 %v2911
    %v2988 = vpop.f32.mrb[0].mxu0
    %v2989 = vadd.f32 0.0, %v2988
    %v2990 = vpop.f32.mrb[0].mxu0
    %2991 = vdwg.mxu0
    %2992 = vrot.lane.b32.xlu0 %v2493, 120
    %v2993 = vpop.permute.xlu0 %2992
    %2994 = vrot.lane.b32.xlu0 %v2498, 120
    %v2995 = vpop.permute.xlu0 %2994
    %2996 = vrot.lane.b32.xlu0 %v2493, 88
    %v2997 = vpop.permute.xlu0 %2996
    %2998 = vrot.lane.b32.xlu0 %v2498, 88
    %v2999 = vpop.permute.xlu0 %2998
    %v3000 = vsel %vm233, %v2993, 0
    %v3002 = vsel %vm233, %v2995, 0
    %v3004 = vsel %vm233, %v2997, 0
    %v3006 = vsel %vm233, %v2999, 0
    %3008 = vmatprep.subr.mxu0 0.0
    %3009 = vmatpush1.xpose.msra.mxu0 %v3004
    %3010 = vmatprep.subr.mxu0 0.0
    %3011 = vmatpush1.xpose.msra.mxu0 %v3006
    %3012 = vmatprep.subr.mxu0 0.0
    %3013 = vmatpush1.xpose.msra.mxu0 0.0
    %3014 = vmatprep.subr.mxu0 0.0
    %3015 = vmatpush1.xpose.msra.mxu0 0.0
    %3016 = vmatprep.subr.mxu0 0.0
    %3017 = vmatpush1.xpose.msra.mxu0 0.0
    %3018 = vmatprep.subr.mxu0 0.0
    %3019 = vmatpush1.xpose.msra.mxu0 0.0
    %3020 = vmatprep.subr.mxu0 0.0
    %3021 = vmatpush1.xpose.msra.mxu0 0.0
    %3022 = vmatprep.subr.mxu0 0.0
    %3023 = vmatpush1.xpose.msra.mxu0 0.0
    %3024 = vmatprep.subr.mxu0 0.0
    %3025 = vmatpush1.xpose.msra.mxu0 0.0
    %3026 = vmatprep.subr.mxu0 0.0
    %3027 = vmatpush1.xpose.msra.mxu0 0.0
    %3028 = vmatprep.subr.mxu0 0.0
    %3029 = vmatpush1.xpose.msra.mxu0 0.0
    %3030 = vmatprep.subr.mxu0 0.0
    %3031 = vmatpush1.xpose.msra.mxu0 0.0
    %3032 = vmatprep.subr.mxu0 0.0
    %3033 = vmatpush1.xpose.msra.mxu0 0.0
    %3034 = vmatprep.subr.mxu0 0.0
    %3035 = vmatpush1.xpose.msra.mxu0 0.0
    %3036 = vmatprep.subr.mxu0 0.0
    %3037 = vmatpush1.xpose.msra.mxu0 0.0
    %3038 = vmatprep.subr.mxu0 0.0
    %3039 = vmatpush1.xpose.msra.mxu0 0.0
    %3040 = vmatprep.subr.mxu0 0.0
    %3041 = vmatpush1.xpose.msra.mxu0 0.0
    %3042 = vmatprep.subr.mxu0 0.0
    %3043 = vmatpush1.xpose.msra.mxu0 0.0
    %3044 = vmatprep.subr.mxu0 0.0
    %3045 = vmatpush1.xpose.msra.mxu0 0.0
    %3046 = vmatprep.subr.mxu0 0.0
    %3047 = vmatpush1.xpose.msra.mxu0 0.0
    %3048 = vmatprep.subr.mxu0 0.0
    %3049 = vmatpush1.xpose.msra.mxu0 0.0
    %3050 = vmatprep.subr.mxu0 0.0
    %3051 = vmatpush1.xpose.msra.mxu0 0.0
    %3052 = vmatprep.subr.mxu0 0.0
    %3053 = vmatpush1.xpose.msra.mxu0 0.0
    %3054 = vmatprep.subr.mxu0 0.0
    %3055 = vmatpush1.xpose.msra.mxu0 0.0
    %3056 = vmatprep.subr.mxu0 0.0
    %3057 = vmatpush1.xpose.msra.mxu0 0.0
    %3058 = vmatprep.subr.mxu0 0.0
    %3059 = vmatpush1.xpose.msra.mxu0 0.0
    %3060 = vmatprep.subr.mxu0 0.0
    %3061 = vmatpush1.xpose.msra.mxu0 0.0
    %3062 = vmatprep.subr.mxu0 0.0
    %3063 = vmatpush1.xpose.msra.mxu0 0.0
    %3064 = vmatprep.subr.mxu0 0.0
    %3065 = vmatpush1.xpose.msra.mxu0 0.0
    %3066 = vmatprep.subr.mxu0 0.0
    %3067 = vmatpush1.xpose.msra.mxu0 0.0
    %3068 = vmatprep.subr.mxu0 0.0
    %3069 = vmatpush1.xpose.msra.mxu0 0.0
    %3070 = vmatprep.subr.mxu0 0.0
    %3071 = vmatpush1.xpose.msra.mxu0 0.0
    %3072 = vmatprep.mubr.f32.mxu0 0.0
    %3073 = vmatmul.mubr.f32.gmra.mrb[0].mxu0 %v3000
    %v3074 = vpop.f32.mrb[0].mxu0
    %v3075 = vadd.f32 0.0, %v3074
    %v3076 = vpop.f32.mrb[0].mxu0
    %3077 = vmatprep.mubr.f32.mxu0 0.0
    %3078 = vmatmul.mubr.f32.gmra.mrb[0].mxu0 %v3002
    %v3079 = vpop.f32.mrb[0].mxu0
    %v3080 = vadd.f32 0.0, %v3079
    %v3081 = vpop.f32.mrb[0].mxu0
    %3082 = vdwg.mxu0
    %v3083 = vmul.f32 %v2984, 0.35355338
    %v3084 = vmul.f32 %v2989, 0.35355338
    %v3085 = vmul.f32 %v3075, 0.35355338
    %v3086 = vmul.f32 %v3080, 0.35355338
    %v3087 = vsel %vm410, %v3083, -inf
    %3088 = vmax.xlane.f32.xlu0 %v3087
    %v3089 = vpop.xlane.xlu0 %3088
    %v3090 = vsel %vm410, %v3084, -inf
    %3091 = vmax.xlane.f32.xlu0 %v3090
    %v3092 = vpop.xlane.xlu0 %3091
    %v3093 = vsel %vm410, %v3085, -inf
    %3094 = vmax.xlane.f32.xlu0 %v3093
    %v3095 = vpop.xlane.xlu0 %3094
    %v3096 = vsel %vm410, %v3086, -inf
    %3097 = vmax.xlane.f32.xlu0 %v3096
    %v3098 = vpop.xlane.xlu0 %3097
    %v3099 = vsub.f32 %v3083, %v3089
    %v3100 = vsub.f32 %v3084, %v3092
    %v3101 = vsub.f32 %v3085, %v3095
    %v3102 = vsub.f32 %v3086, %v3098
    %v3103 = vmul.f32 %v3099, 1.442695
    %v3104 = vpow.pop %v3103
    %v3105 = vmul.f32 %v3100, 1.442695
    %v3106 = vpow.pop %v3105
    %v3107 = vmul.f32 %v3101, 1.442695
    %v3108 = vpow.pop %v3107
    %v3109 = vmul.f32 %v3102, 1.442695
    %v3110 = vpow.pop %v3109
    %v3111 = vsel %vm410, %v3104, 0.0
    %3112 = vadd.xlane.f32.xlu0 %v3111
    %v3113 = vpop.xlane.xlu0 %3112
    %v3114 = vsel %vm410, %v3106, 0.0
    %3115 = vadd.xlane.f32.xlu0 %v3114
    %v3116 = vpop.xlane.xlu0 %3115
    %v3117 = vsel %vm410, %v3108, 0.0
    %3118 = vadd.xlane.f32.xlu0 %v3117
    %v3119 = vpop.xlane.xlu0 %3118
    %v3120 = vsel %vm410, %v3110, 0.0
    %3121 = vadd.xlane.f32.xlu0 %v3120
    %v3122 = vpop.xlane.xlu0 %3121
    %v3123 = vrcp.pop %v3113
    %v3124 = vrcp.pop %v3116
    %v3125 = vrcp.pop %v3119
    %v3126 = vrcp.pop %v3122
    %v3127 = vmul.f32 %v3104, %v3123
    %v3128 = vmul.f32 %v3106, %v3124
    %v3129 = vmul.f32 %v3108, %v3125
    %v3130 = vmul.f32 %v3110, %v3126
    %3131 = vrot.lane.b32.xlu0 %v2483, 56
    %v3132 = vpop.permute.xlu0 %3131
    %3133 = vrot.lane.b32.xlu0 %v2488, 56
    %v3134 = vpop.permute.xlu0 %3133
    %v3138 = vsel %vm410, %v3127, 0
    %v3141 = vsel %vm410, %v3128, 0
    %3143 = vmatprep.subr.mxu0 0.0
    %3144 = vmatpush1.msra.mxu0 %v3132
    %3145 = vmatprep.subr.mxu0 0.0
    %3146 = vmatpush1.msra.mxu0 %v3134
    %3147 = vmatprep.subr.mxu0 0.0
    %3148 = vmatpush1.msra.mxu0 0.0
    %3149 = vmatprep.subr.mxu0 0.0
    %3150 = vmatpush1.msra.mxu0 0.0
    %3151 = vmatprep.subr.mxu0 0.0
    %3152 = vmatpush1.msra.mxu0 0.0
    %3153 = vmatprep.subr.mxu0 0.0
    %3154 = vmatpush1.msra.mxu0 0.0
    %3155 = vmatprep.subr.mxu0 0.0
    %3156 = vmatpush1.msra.mxu0 0.0
    %3157 = vmatprep.subr.mxu0 0.0
    %3158 = vmatpush1.msra.mxu0 0.0
    %3159 = vmatprep.subr.mxu0 0.0
    %3160 = vmatpush1.msra.mxu0 0.0
    %3161 = vmatprep.subr.mxu0 0.0
    %3162 = vmatpush1.msra.mxu0 0.0
    %3163 = vmatprep.subr.mxu0 0.0
    %3164 = vmatpush1.msra.mxu0 0.0
    %3165 = vmatprep.subr.mxu0 0.0
    %3166 = vmatpush1.msra.mxu0 0.0
    %3167 = vmatprep.subr.mxu0 0.0
    %3168 = vmatpush1.msra.mxu0 0.0
    %3169 = vmatprep.subr.mxu0 0.0
    %3170 = vmatpush1.msra.mxu0 0.0
    %3171 = vmatprep.subr.mxu0 0.0
    %3172 = vmatpush1.msra.mxu0 0.0
    %3173 = vmatprep.subr.mxu0 0.0
    %3174 = vmatpush1.msra.mxu0 0.0
    %3175 = vmatprep.subr.mxu0 0.0
    %3176 = vmatpush1.msra.mxu0 0.0
    %3177 = vmatprep.subr.mxu0 0.0
    %3178 = vmatpush1.msra.mxu0 0.0
    %3179 = vmatprep.subr.mxu0 0.0
    %3180 = vmatpush1.msra.mxu0 0.0
    %3181 = vmatprep.subr.mxu0 0.0
    %3182 = vmatpush1.msra.mxu0 0.0
    %3183 = vmatprep.subr.mxu0 0.0
    %3184 = vmatpush1.msra.mxu0 0.0
    %3185 = vmatprep.subr.mxu0 0.0
    %3186 = vmatpush1.msra.mxu0 0.0
    %3187 = vmatprep.subr.mxu0 0.0
    %3188 = vmatpush1.msra.mxu0 0.0
    %3189 = vmatprep.subr.mxu0 0.0
    %3190 = vmatpush1.msra.mxu0 0.0
    %3191 = vmatprep.subr.mxu0 0.0
    %3192 = vmatpush1.msra.mxu0 0.0
    %3193 = vmatprep.subr.mxu0 0.0
    %3194 = vmatpush1.msra.mxu0 0.0
    %3195 = vmatprep.subr.mxu0 0.0
    %3196 = vmatpush1.msra.mxu0 0.0
    %3197 = vmatprep.subr.mxu0 0.0
    %3198 = vmatpush1.msra.mxu0 0.0
    %3199 = vmatprep.subr.mxu0 0.0
    %3200 = vmatpush1.msra.mxu0 0.0
    %3201 = vmatprep.subr.mxu0 0.0
    %3202 = vmatpush1.msra.mxu0 0.0
    %3203 = vmatprep.subr.mxu0 0.0
    %3204 = vmatpush1.msra.mxu0 0.0
    %3205 = vmatprep.subr.mxu0 0.0
    %3206 = vmatpush1.msra.mxu0 0.0
    %3207 = vmatprep.mubr.f32.mxu0 0.0
    %3208 = vmatmul.mubr.f32.gmra.mrb[0].mxu0 %v3138
    %v3209 = vpop.f32.mrb[0].mxu0
    %v3210 = vadd.f32 0.0, %v3209
    %v3211 = vpop.f32.mrb[0].mxu0
    %3212 = vmatprep.mubr.f32.mxu0 0.0
    %3213 = vmatmul.mubr.f32.gmra.mrb[0].mxu0 %v3141
    %v3214 = vpop.f32.mrb[0].mxu0
    %v3215 = vadd.f32 0.0, %v3214
    %v3216 = vpop.f32.mrb[0].mxu0
    %3217 = vdwg.mxu0
    %3218 = vrot.lane.b32.xlu0 %v2493, 56
    %v3219 = vpop.permute.xlu0 %3218
    %3220 = vrot.lane.b32.xlu0 %v2498, 56
    %v3221 = vpop.permute.xlu0 %3220
    %v3225 = vsel %vm410, %v3129, 0
    %v3228 = vsel %vm410, %v3130, 0
    %3230 = vmatprep.subr.mxu0 0.0
    %3231 = vmatpush1.msra.mxu0 %v3219
    %3232 = vmatprep.subr.mxu0 0.0
    %3233 = vmatpush1.msra.mxu0 %v3221
    %3234 = vmatprep.subr.mxu0 0.0
    %3235 = vmatpush1.msra.mxu0 0.0
    %3236 = vmatprep.subr.mxu0 0.0
    %3237 = vmatpush1.msra.mxu0 0.0
    %3238 = vmatprep.subr.mxu0 0.0
    %3239 = vmatpush1.msra.mxu0 0.0
    %3240 = vmatprep.subr.mxu0 0.0
    %3241 = vmatpush1.msra.mxu0 0.0
    %3242 = vmatprep.subr.mxu0 0.0
    %3243 = vmatpush1.msra.mxu0 0.0
    %3244 = vmatprep.subr.mxu0 0.0
    %3245 = vmatpush1.msra.mxu0 0.0
    %3246 = vmatprep.subr.mxu0 0.0
    %3247 = vmatpush1.msra.mxu0 0.0
    %3248 = vmatprep.subr.mxu0 0.0
    %3249 = vmatpush1.msra.mxu0 0.0
    %3250 = vmatprep.subr.mxu0 0.0
    %3251 = vmatpush1.msra.mxu0 0.0
    %3252 = vmatprep.subr.mxu0 0.0
    %3253 = vmatpush1.msra.mxu0 0.0
    %3254 = vmatprep.subr.mxu0 0.0
    %3255 = vmatpush1.msra.mxu0 0.0
    %3256 = vmatprep.subr.mxu0 0.0
    %3257 = vmatpush1.msra.mxu0 0.0
    %3258 = vmatprep.subr.mxu0 0.0
    %3259 = vmatpush1.msra.mxu0 0.0
    %3260 = vmatprep.subr.mxu0 0.0
    %3261 = vmatpush1.msra.mxu0 0.0
    %3262 = vmatprep.subr.mxu0 0.0
    %3263 = vmatpush1.msra.mxu0 0.0
    %3264 = vmatprep.subr.mxu0 0.0
    %3265 = vmatpush1.msra.mxu0 0.0
    %3266 = vmatprep.subr.mxu0 0.0
    %3267 = vmatpush1.msra.mxu0 0.0
    %3268 = vmatprep.subr.mxu0 0.0
    %3269 = vmatpush1.msra.mxu0 0.0
    %3270 = vmatprep.subr.mxu0 0.0
    %3271 = vmatpush1.msra.mxu0 0.0
    %3272 = vmatprep.subr.mxu0 0.0
    %3273 = vmatpush1.msra.mxu0 0.0
    %3274 = vmatprep.subr.mxu0 0.0
    %3275 = vmatpush1.msra.mxu0 0.0
    %3276 = vmatprep.subr.mxu0 0.0
    %3277 = vmatpush1.msra.mxu0 0.0
    %3278 = vmatprep.subr.mxu0 0.0
    %3279 = vmatpush1.msra.mxu0 0.0
    %3280 = vmatprep.subr.mxu0 0.0
    %3281 = vmatpush1.msra.mxu0 0.0
    %3282 = vmatprep.subr.mxu0 0.0
    %3283 = vmatpush1.msra.mxu0 0.0
    %3284 = vmatprep.subr.mxu0 0.0
    %3285 = vmatpush1.msra.mxu0 0.0
    %3286 = vmatprep.subr.mxu0 0.0
    %3287 = vmatpush1.msra.mxu0 0.0
    %3288 = vmatprep.subr.mxu0 0.0
    %3289 = vmatpush1.msra.mxu0 0.0
    %3290 = vmatprep.subr.mxu0 0.0
    %3291 = vmatpush1.msra.mxu0 0.0
    %3292 = vmatprep.subr.mxu0 0.0
    %3293 = vmatpush1.msra.mxu0 0.0
    %3294 = vmatprep.mubr.f32.mxu0 0.0
    %3295 = vmatmul.mubr.f32.gmra.mrb[0].mxu0 %v3225
    %v3296 = vpop.f32.mrb[0].mxu0
    %v3297 = vadd.f32 0.0, %v3296
    %v3298 = vpop.f32.mrb[0].mxu0
    %3299 = vmatprep.mubr.f32.mxu0 0.0
    %3300 = vmatmul.mubr.f32.gmra.mrb[0].mxu0 %v3228
    %v3301 = vpop.f32.mrb[0].mxu0
    %v3302 = vadd.f32 0.0, %v3301
    %v3303 = vpop.f32.mrb[0].mxu0
    %3304 = vdwg.mxu0
    %3305 = vrot.lane.b32.xlu0 %v2483, 112
    %v3306 = vpop.permute.xlu0 %3305
    %3307 = vrot.lane.b32.xlu0 %v2488, 112
    %v3308 = vpop.permute.xlu0 %3307
    %3309 = vrot.lane.b32.xlu0 %v2483, 80
    %v3310 = vpop.permute.xlu0 %3309
    %3311 = vrot.lane.b32.xlu0 %v2488, 80
    %v3312 = vpop.permute.xlu0 %3311
    %v3313 = vsel %vm233, %v3306, 0
    %v3315 = vsel %vm233, %v3308, 0
    %v3317 = vsel %vm233, %v3310, 0
    %v3319 = vsel %vm233, %v3312, 0
    %3321 = vmatprep.subr.mxu0 0.0
    %3322 = vmatpush1.xpose.msra.mxu0 %v3317
    %3323 = vmatprep.subr.mxu0 0.0
    %3324 = vmatpush1.xpose.msra.mxu0 %v3319
    %3325 = vmatprep.subr.mxu0 0.0
    %3326 = vmatpush1.xpose.msra.mxu0 0.0
    %3327 = vmatprep.subr.mxu0 0.0
    %3328 = vmatpush1.xpose.msra.mxu0 0.0
    %3329 = vmatprep.subr.mxu0 0.0
    %3330 = vmatpush1.xpose.msra.mxu0 0.0
    %3331 = vmatprep.subr.mxu0 0.0
    %3332 = vmatpush1.xpose.msra.mxu0 0.0
    %3333 = vmatprep.subr.mxu0 0.0
    %3334 = vmatpush1.xpose.msra.mxu0 0.0
    %3335 = vmatprep.subr.mxu0 0.0
    %3336 = vmatpush1.xpose.msra.mxu0 0.0
    %3337 = vmatprep.subr.mxu0 0.0
    %3338 = vmatpush1.xpose.msra.mxu0 0.0
    %3339 = vmatprep.subr.mxu0 0.0
    %3340 = vmatpush1.xpose.msra.mxu0 0.0
    %3341 = vmatprep.subr.mxu0 0.0
    %3342 = vmatpush1.xpose.msra.mxu0 0.0
    %3343 = vmatprep.subr.mxu0 0.0
    %3344 = vmatpush1.xpose.msra.mxu0 0.0
    %3345 = vmatprep.subr.mxu0 0.0
    %3346 = vmatpush1.xpose.msra.mxu0 0.0
    %3347 = vmatprep.subr.mxu0 0.0
    %3348 = vmatpush1.xpose.msra.mxu0 0.0
    %3349 = vmatprep.subr.mxu0 0.0
    %3350 = vmatpush1.xpose.msra.mxu0 0.0
    %3351 = vmatprep.subr.mxu0 0.0
    %3352 = vmatpush1.xpose.msra.mxu0 0.0
    %3353 = vmatprep.subr.mxu0 0.0
    %3354 = vmatpush1.xpose.msra.mxu0 0.0
    %3355 = vmatprep.subr.mxu0 0.0
    %3356 = vmatpush1.xpose.msra.mxu0 0.0
    %3357 = vmatprep.subr.mxu0 0.0
    %3358 = vmatpush1.xpose.msra.mxu0 0.0
    %3359 = vmatprep.subr.mxu0 0.0
    %3360 = vmatpush1.xpose.msra.mxu0 0.0
    %3361 = vmatprep.subr.mxu0 0.0
    %3362 = vmatpush1.xpose.msra.mxu0 0.0
    %3363 = vmatprep.subr.mxu0 0.0
    %3364 = vmatpush1.xpose.msra.mxu0 0.0
    %3365 = vmatprep.subr.mxu0 0.0
    %3366 = vmatpush1.xpose.msra.mxu0 0.0
    %3367 = vmatprep.subr.mxu0 0.0
    %3368 = vmatpush1.xpose.msra.mxu0 0.0
    %3369 = vmatprep.subr.mxu0 0.0
    %3370 = vmatpush1.xpose.msra.mxu0 0.0
    %3371 = vmatprep.subr.mxu0 0.0
    %3372 = vmatpush1.xpose.msra.mxu0 0.0
    %3373 = vmatprep.subr.mxu0 0.0
    %3374 = vmatpush1.xpose.msra.mxu0 0.0
    %3375 = vmatprep.subr.mxu0 0.0
    %3376 = vmatpush1.xpose.msra.mxu0 0.0
    %3377 = vmatprep.subr.mxu0 0.0
    %3378 = vmatpush1.xpose.msra.mxu0 0.0
    %3379 = vmatprep.subr.mxu0 0.0
    %3380 = vmatpush1.xpose.msra.mxu0 0.0
    %3381 = vmatprep.subr.mxu0 0.0
    %3382 = vmatpush1.xpose.msra.mxu0 0.0
    %3383 = vmatprep.subr.mxu0 0.0
    %3384 = vmatpush1.xpose.msra.mxu0 0.0
    %3385 = vmatprep.mubr.f32.mxu0 0.0
    %3386 = vmatmul.mubr.f32.gmra.mrb[0].mxu0 %v3313
    %v3387 = vpop.f32.mrb[0].mxu0
    %v3388 = vadd.f32 0.0, %v3387
    %v3389 = vpop.f32.mrb[0].mxu0
    %3390 = vmatprep.mubr.f32.mxu0 0.0
    %3391 = vmatmul.mubr.f32.gmra.mrb[0].mxu0 %v3315
    %v3392 = vpop.f32.mrb[0].mxu0
    %v3393 = vadd.f32 0.0, %v3392
    %v3394 = vpop.f32.mrb[0].mxu0
    %3395 = vdwg.mxu0
    %3396 = vrot.lane.b32.xlu0 %v2493, 112
    %v3397 = vpop.permute.xlu0 %3396
    %3398 = vrot.lane.b32.xlu0 %v2498, 112
    %v3399 = vpop.permute.xlu0 %3398
    %3400 = vrot.lane.b32.xlu0 %v2493, 80
    %v3401 = vpop.permute.xlu0 %3400
    %3402 = vrot.lane.b32.xlu0 %v2498, 80
    %v3403 = vpop.permute.xlu0 %3402
    %v3404 = vsel %vm233, %v3397, 0
    %v3406 = vsel %vm233, %v3399, 0
    %v3408 = vsel %vm233, %v3401, 0
    %v3410 = vsel %vm233, %v3403, 0
    %3412 = vmatprep.subr.mxu0 0.0
    %3413 = vmatpush1.xpose.msra.mxu0 %v3408
    %3414 = vmatprep.subr.mxu0 0.0
    %3415 = vmatpush1.xpose.msra.mxu0 %v3410
    %3416 = vmatprep.subr.mxu0 0.0
    %3417 = vmatpush1.xpose.msra.mxu0 0.0
    %3418 = vmatprep.subr.mxu0 0.0
    %3419 = vmatpush1.xpose.msra.mxu0 0.0
    %3420 = vmatprep.subr.mxu0 0.0
    %3421 = vmatpush1.xpose.msra.mxu0 0.0
    %3422 = vmatprep.subr.mxu0 0.0
    %3423 = vmatpush1.xpose.msra.mxu0 0.0
    %3424 = vmatprep.subr.mxu0 0.0
    %3425 = vmatpush1.xpose.msra.mxu0 0.0
    %3426 = vmatprep.subr.mxu0 0.0
    %3427 = vmatpush1.xpose.msra.mxu0 0.0
    %3428 = vmatprep.subr.mxu0 0.0
    %3429 = vmatpush1.xpose.msra.mxu0 0.0
    %3430 = vmatprep.subr.mxu0 0.0
    %3431 = vmatpush1.xpose.msra.mxu0 0.0
    %3432 = vmatprep.subr.mxu0 0.0
    %3433 = vmatpush1.xpose.msra.mxu0 0.0
    %3434 = vmatprep.subr.mxu0 0.0
    %3435 = vmatpush1.xpose.msra.mxu0 0.0
    %3436 = vmatprep.subr.mxu0 0.0
    %3437 = vmatpush1.xpose.msra.mxu0 0.0
    %3438 = vmatprep.subr.mxu0 0.0
    %3439 = vmatpush1.xpose.msra.mxu0 0.0
    %3440 = vmatprep.subr.mxu0 0.0
    %3441 = vmatpush1.xpose.msra.mxu0 0.0
    %3442 = vmatprep.subr.mxu0 0.0
    %3443 = vmatpush1.xpose.msra.mxu0 0.0
    %3444 = vmatprep.subr.mxu0 0.0
    %3445 = vmatpush1.xpose.msra.mxu0 0.0
    %3446 = vmatprep.subr.mxu0 0.0
    %3447 = vmatpush1.xpose.msra.mxu0 0.0
    %3448 = vmatprep.subr.mxu0 0.0
    %3449 = vmatpush1.xpose.msra.mxu0 0.0
    %3450 = vmatprep.subr.mxu0 0.0
    %3451 = vmatpush1.xpose.msra.mxu0 0.0
    %3452 = vmatprep.subr.mxu0 0.0
    %3453 = vmatpush1.xpose.msra.mxu0 0.0
    %3454 = vmatprep.subr.mxu0 0.0
    %3455 = vmatpush1.xpose.msra.mxu0 0.0
    %3456 = vmatprep.subr.mxu0 0.0
    %3457 = vmatpush1.xpose.msra.mxu0 0.0
    %3458 = vmatprep.subr.mxu0 0.0
    %3459 = vmatpush1.xpose.msra.mxu0 0.0
    %3460 = vmatprep.subr.mxu0 0.0
    %3461 = vmatpush1.xpose.msra.mxu0 0.0
    %3462 = vmatprep.subr.mxu0 0.0
    %3463 = vmatpush1.xpose.msra.mxu0 0.0
    %3464 = vmatprep.subr.mxu0 0.0
    %3465 = vmatpush1.xpose.msra.mxu0 0.0
    %3466 = vmatprep.subr.mxu0 0.0
    %3467 = vmatpush1.xpose.msra.mxu0 0.0
    %3468 = vmatprep.subr.mxu0 0.0
    %3469 = vmatpush1.xpose.msra.mxu0 0.0
    %3470 = vmatprep.subr.mxu0 0.0
    %3471 = vmatpush1.xpose.msra.mxu0 0.0
    %3472 = vmatprep.subr.mxu0 0.0
    %3473 = vmatpush1.xpose.msra.mxu0 0.0
    %3474 = vmatprep.subr.mxu0 0.0
    %3475 = vmatpush1.xpose.msra.mxu0 0.0
    %3476 = vmatprep.mubr.f32.mxu0 0.0
    %3477 = vmatmul.mubr.f32.gmra.mrb[0].mxu0 %v3404
    %v3478 = vpop.f32.mrb[0].mxu0
    %v3479 = vadd.f32 0.0, %v3478
    %v3480 = vpop.f32.mrb[0].mxu0
    %3481 = vmatprep.mubr.f32.mxu0 0.0
    %3482 = vmatmul.mubr.f32.gmra.mrb[0].mxu0 %v3406
    %v3483 = vpop.f32.mrb[0].mxu0
    %v3484 = vadd.f32 0.0, %v3483
    %v3485 = vpop.f32.mrb[0].mxu0
    %3486 = vdwg.mxu0
    %v3487 = vmul.f32 %v3388, 0.35355338
    %v3488 = vmul.f32 %v3393, 0.35355338
    %v3489 = vmul.f32 %v3479, 0.35355338
    %v3490 = vmul.f32 %v3484, 0.35355338
    %v3491 = vsel %vm410, %v3487, -inf
    %3492 = vmax.xlane.f32.xlu0 %v3491
    %v3493 = vpop.xlane.xlu0 %3492
    %v3494 = vsel %vm410, %v3488, -inf
    %3495 = vmax.xlane.f32.xlu0 %v3494
    %v3496 = vpop.xlane.xlu0 %3495
    %v3497 = vsel %vm410, %v3489, -inf
    %3498 = vmax.xlane.f32.xlu0 %v3497
    %v3499 = vpop.xlane.xlu0 %3498
    %v3500 = vsel %vm410, %v3490, -inf
    %3501 = vmax.xlane.f32.xlu0 %v3500
    %v3502 = vpop.xlane.xlu0 %3501
    %v3503 = vsub.f32 %v3487, %v3493
    %v3504 = vsub.f32 %v3488, %v3496
    %v3505 = vsub.f32 %v3489, %v3499
    %v3506 = vsub.f32 %v3490, %v3502
    %v3507 = vmul.f32 %v3503, 1.442695
    %v3508 = vpow.pop %v3507
    %v3509 = vmul.f32 %v3504, 1.442695
    %v3510 = vpow.pop %v3509
    %v3511 = vmul.f32 %v3505, 1.442695
    %v3512 = vpow.pop %v3511
    %v3513 = vmul.f32 %v3506, 1.442695
    %v3514 = vpow.pop %v3513
    %v3515 = vsel %vm410, %v3508, 0.0
    %3516 = vadd.xlane.f32.xlu0 %v3515
    %v3517 = vpop.xlane.xlu0 %3516
    %v3518 = vsel %vm410, %v3510, 0.0
    %3519 = vadd.xlane.f32.xlu0 %v3518
    %v3520 = vpop.xlane.xlu0 %3519
    %v3521 = vsel %vm410, %v3512, 0.0
    %3522 = vadd.xlane.f32.xlu0 %v3521
    %v3523 = vpop.xlane.xlu0 %3522
    %v3524 = vsel %vm410, %v3514, 0.0
    %3525 = vadd.xlane.f32.xlu0 %v3524
    %v3526 = vpop.xlane.xlu0 %3525
    %v3527 = vrcp.pop %v3517
    %v3528 = vrcp.pop %v3520
    %v3529 = vrcp.pop %v3523
    %v3530 = vrcp.pop %v3526
    %v3531 = vmul.f32 %v3508, %v3527
    %v3532 = vmul.f32 %v3510, %v3528
    %v3533 = vmul.f32 %v3512, %v3529
    %v3534 = vmul.f32 %v3514, %v3530
    %3535 = vrot.lane.b32.xlu0 %v2483, 48
    %v3536 = vpop.permute.xlu0 %3535
    %3537 = vrot.lane.b32.xlu0 %v2488, 48
    %v3538 = vpop.permute.xlu0 %3537
    %v3542 = vsel %vm410, %v3531, 0
    %v3545 = vsel %vm410, %v3532, 0
    %3547 = vmatprep.subr.mxu0 0.0
    %3548 = vmatpush1.msra.mxu0 %v3536
    %3549 = vmatprep.subr.mxu0 0.0
    %3550 = vmatpush1.msra.mxu0 %v3538
    %3551 = vmatprep.subr.mxu0 0.0
    %3552 = vmatpush1.msra.mxu0 0.0
    %3553 = vmatprep.subr.mxu0 0.0
    %3554 = vmatpush1.msra.mxu0 0.0
    %3555 = vmatprep.subr.mxu0 0.0
    %3556 = vmatpush1.msra.mxu0 0.0
    %3557 = vmatprep.subr.mxu0 0.0
    %3558 = vmatpush1.msra.mxu0 0.0
    %3559 = vmatprep.subr.mxu0 0.0
    %3560 = vmatpush1.msra.mxu0 0.0
    %3561 = vmatprep.subr.mxu0 0.0
    %3562 = vmatpush1.msra.mxu0 0.0
    %3563 = vmatprep.subr.mxu0 0.0
    %3564 = vmatpush1.msra.mxu0 0.0
    %3565 = vmatprep.subr.mxu0 0.0
    %3566 = vmatpush1.msra.mxu0 0.0
    %3567 = vmatprep.subr.mxu0 0.0
    %3568 = vmatpush1.msra.mxu0 0.0
    %3569 = vmatprep.subr.mxu0 0.0
    %3570 = vmatpush1.msra.mxu0 0.0
    %3571 = vmatprep.subr.mxu0 0.0
    %3572 = vmatpush1.msra.mxu0 0.0
    %3573 = vmatprep.subr.mxu0 0.0
    %3574 = vmatpush1.msra.mxu0 0.0
    %3575 = vmatprep.subr.mxu0 0.0
    %3576 = vmatpush1.msra.mxu0 0.0
    %3577 = vmatprep.subr.mxu0 0.0
    %3578 = vmatpush1.msra.mxu0 0.0
    %3579 = vmatprep.subr.mxu0 0.0
    %3580 = vmatpush1.msra.mxu0 0.0
    %3581 = vmatprep.subr.mxu0 0.0
    %3582 = vmatpush1.msra.mxu0 0.0
    %3583 = vmatprep.subr.mxu0 0.0
    %3584 = vmatpush1.msra.mxu0 0.0
    %3585 = vmatprep.subr.mxu0 0.0
    %3586 = vmatpush1.msra.mxu0 0.0
    %3587 = vmatprep.subr.mxu0 0.0
    %3588 = vmatpush1.msra.mxu0 0.0
    %3589 = vmatprep.subr.mxu0 0.0
    %3590 = vmatpush1.msra.mxu0 0.0
    %3591 = vmatprep.subr.mxu0 0.0
    %3592 = vmatpush1.msra.mxu0 0.0
    %3593 = vmatprep.subr.mxu0 0.0
    %3594 = vmatpush1.msra.mxu0 0.0
    %3595 = vmatprep.subr.mxu0 0.0
    %3596 = vmatpush1.msra.mxu0 0.0
    %3597 = vmatprep.subr.mxu0 0.0
    %3598 = vmatpush1.msra.mxu0 0.0
    %3599 = vmatprep.subr.mxu0 0.0
    %3600 = vmatpush1.msra.mxu0 0.0
    %3601 = vmatprep.subr.mxu0 0.0
    %3602 = vmatpush1.msra.mxu0 0.0
    %3603 = vmatprep.subr.mxu0 0.0
    %3604 = vmatpush1.msra.mxu0 0.0
    %3605 = vmatprep.subr.mxu0 0.0
    %3606 = vmatpush1.msra.mxu0 0.0
    %3607 = vmatprep.subr.mxu0 0.0
    %3608 = vmatpush1.msra.mxu0 0.0
    %3609 = vmatprep.subr.mxu0 0.0
    %3610 = vmatpush1.msra.mxu0 0.0
    %3611 = vmatprep.mubr.f32.mxu0 0.0
    %3612 = vmatmul.mubr.f32.gmra.mrb[0].mxu0 %v3542
    %v3613 = vpop.f32.mrb[0].mxu0
    %v3614 = vadd.f32 0.0, %v3613
    %v3615 = vpop.f32.mrb[0].mxu0
    %3616 = vmatprep.mubr.f32.mxu0 0.0
    %3617 = vmatmul.mubr.f32.gmra.mrb[0].mxu0 %v3545
    %v3618 = vpop.f32.mrb[0].mxu0
    %v3619 = vadd.f32 0.0, %v3618
    %v3620 = vpop.f32.mrb[0].mxu0
    %3621 = vdwg.mxu0
    %3622 = vrot.lane.b32.xlu0 %v2493, 48
    %v3623 = vpop.permute.xlu0 %3622
    %3624 = vrot.lane.b32.xlu0 %v2498, 48
    %v3625 = vpop.permute.xlu0 %3624
    %v3629 = vsel %vm410, %v3533, 0
    %v3632 = vsel %vm410, %v3534, 0
    %3634 = vmatprep.subr.mxu0 0.0
    %3635 = vmatpush1.msra.mxu0 %v3623
    %3636 = vmatprep.subr.mxu0 0.0
    %3637 = vmatpush1.msra.mxu0 %v3625
    %3638 = vmatprep.subr.mxu0 0.0
    %3639 = vmatpush1.msra.mxu0 0.0
    %3640 = vmatprep.subr.mxu0 0.0
    %3641 = vmatpush1.msra.mxu0 0.0
    %3642 = vmatprep.subr.mxu0 0.0
    %3643 = vmatpush1.msra.mxu0 0.0
    %3644 = vmatprep.subr.mxu0 0.0
    %3645 = vmatpush1.msra.mxu0 0.0
    %3646 = vmatprep.subr.mxu0 0.0
    %3647 = vmatpush1.msra.mxu0 0.0
    %3648 = vmatprep.subr.mxu0 0.0
    %3649 = vmatpush1.msra.mxu0 0.0
    %3650 = vmatprep.subr.mxu0 0.0
    %3651 = vmatpush1.msra.mxu0 0.0
    %3652 = vmatprep.subr.mxu0 0.0
    %3653 = vmatpush1.msra.mxu0 0.0
    %3654 = vmatprep.subr.mxu0 0.0
    %3655 = vmatpush1.msra.mxu0 0.0
    %3656 = vmatprep.subr.mxu0 0.0
    %3657 = vmatpush1.msra.mxu0 0.0
    %3658 = vmatprep.subr.mxu0 0.0
    %3659 = vmatpush1.msra.mxu0 0.0
    %3660 = vmatprep.subr.mxu0 0.0
    %3661 = vmatpush1.msra.mxu0 0.0
    %3662 = vmatprep.subr.mxu0 0.0
    %3663 = vmatpush1.msra.mxu0 0.0
    %3664 = vmatprep.subr.mxu0 0.0
    %3665 = vmatpush1.msra.mxu0 0.0
    %3666 = vmatprep.subr.mxu0 0.0
    %3667 = vmatpush1.msra.mxu0 0.0
    %3668 = vmatprep.subr.mxu0 0.0
    %3669 = vmatpush1.msra.mxu0 0.0
    %3670 = vmatprep.subr.mxu0 0.0
    %3671 = vmatpush1.msra.mxu0 0.0
    %3672 = vmatprep.subr.mxu0 0.0
    %3673 = vmatpush1.msra.mxu0 0.0
    %3674 = vmatprep.subr.mxu0 0.0
    %3675 = vmatpush1.msra.mxu0 0.0
    %3676 = vmatprep.subr.mxu0 0.0
    %3677 = vmatpush1.msra.mxu0 0.0
    %3678 = vmatprep.subr.mxu0 0.0
    %3679 = vmatpush1.msra.mxu0 0.0
    %3680 = vmatprep.subr.mxu0 0.0
    %3681 = vmatpush1.msra.mxu0 0.0
    %3682 = vmatprep.subr.mxu0 0.0
    %3683 = vmatpush1.msra.mxu0 0.0
    %3684 = vmatprep.subr.mxu0 0.0
    %3685 = vmatpush1.msra.mxu0 0.0
    %3686 = vmatprep.subr.mxu0 0.0
    %3687 = vmatpush1.msra.mxu0 0.0
    %3688 = vmatprep.subr.mxu0 0.0
    %3689 = vmatpush1.msra.mxu0 0.0
    %3690 = vmatprep.subr.mxu0 0.0
    %3691 = vmatpush1.msra.mxu0 0.0
    %3692 = vmatprep.subr.mxu0 0.0
    %3693 = vmatpush1.msra.mxu0 0.0
    %3694 = vmatprep.subr.mxu0 0.0
    %3695 = vmatpush1.msra.mxu0 0.0
    %3696 = vmatprep.subr.mxu0 0.0
    %3697 = vmatpush1.msra.mxu0 0.0
    %3698 = vmatprep.mubr.f32.mxu0 0.0
    %3699 = vmatmul.mubr.f32.gmra.mrb[0].mxu0 %v3629
    %v3700 = vpop.f32.mrb[0].mxu0
    %v3701 = vadd.f32 0.0, %v3700
    %v3702 = vpop.f32.mrb[0].mxu0
    %3703 = vmatprep.mubr.f32.mxu0 0.0
    %3704 = vmatmul.mubr.f32.gmra.mrb[0].mxu0 %v3632
    %v3705 = vpop.f32.mrb[0].mxu0
    %v3706 = vadd.f32 0.0, %v3705
    %v3707 = vpop.f32.mrb[0].mxu0
    %3708 = vdwg.mxu0
    %3709 = vrot.lane.b32.xlu0 %v2483, 104
    %v3710 = vpop.permute.xlu0 %3709
    %3711 = vrot.lane.b32.xlu0 %v2488, 104
    %v3712 = vpop.permute.xlu0 %3711
    %3713 = vrot.lane.b32.xlu0 %v2483, 72
    %v3714 = vpop.permute.xlu0 %3713
    %3715 = vrot.lane.b32.xlu0 %v2488, 72
    %v3716 = vpop.permute.xlu0 %3715
    %v3717 = vsel %vm233, %v3710, 0
    %v3719 = vsel %vm233, %v3712, 0
    %v3721 = vsel %vm233, %v3714, 0
    %v3723 = vsel %vm233, %v3716, 0
    %3725 = vmatprep.subr.mxu0 0.0
    %3726 = vmatpush1.xpose.msra.mxu0 %v3721
    %3727 = vmatprep.subr.mxu0 0.0
    %3728 = vmatpush1.xpose.msra.mxu0 %v3723
    %3729 = vmatprep.subr.mxu0 0.0
    %3730 = vmatpush1.xpose.msra.mxu0 0.0
    %3731 = vmatprep.subr.mxu0 0.0
    %3732 = vmatpush1.xpose.msra.mxu0 0.0
    %3733 = vmatprep.subr.mxu0 0.0
    %3734 = vmatpush1.xpose.msra.mxu0 0.0
    %3735 = vmatprep.subr.mxu0 0.0
    %3736 = vmatpush1.xpose.msra.mxu0 0.0
    %3737 = vmatprep.subr.mxu0 0.0
    %3738 = vmatpush1.xpose.msra.mxu0 0.0
    %3739 = vmatprep.subr.mxu0 0.0
    %3740 = vmatpush1.xpose.msra.mxu0 0.0
    %3741 = vmatprep.subr.mxu0 0.0
    %3742 = vmatpush1.xpose.msra.mxu0 0.0
    %3743 = vmatprep.subr.mxu0 0.0
    %3744 = vmatpush1.xpose.msra.mxu0 0.0
    %3745 = vmatprep.subr.mxu0 0.0
    %3746 = vmatpush1.xpose.msra.mxu0 0.0
    %3747 = vmatprep.subr.mxu0 0.0
    %3748 = vmatpush1.xpose.msra.mxu0 0.0
    %3749 = vmatprep.subr.mxu0 0.0
    %3750 = vmatpush1.xpose.msra.mxu0 0.0
    %3751 = vmatprep.subr.mxu0 0.0
    %3752 = vmatpush1.xpose.msra.mxu0 0.0
    %3753 = vmatprep.subr.mxu0 0.0
    %3754 = vmatpush1.xpose.msra.mxu0 0.0
    %3755 = vmatprep.subr.mxu0 0.0
    %3756 = vmatpush1.xpose.msra.mxu0 0.0
    %3757 = vmatprep.subr.mxu0 0.0
    %3758 = vmatpush1.xpose.msra.mxu0 0.0
    %3759 = vmatprep.subr.mxu0 0.0
    %3760 = vmatpush1.xpose.msra.mxu0 0.0
    %3761 = vmatprep.subr.mxu0 0.0
    %3762 = vmatpush1.xpose.msra.mxu0 0.0
    %3763 = vmatprep.subr.mxu0 0.0
    %3764 = vmatpush1.xpose.msra.mxu0 0.0
    %3765 = vmatprep.subr.mxu0 0.0
    %3766 = vmatpush1.xpose.msra.mxu0 0.0
    %3767 = vmatprep.subr.mxu0 0.0
    %3768 = vmatpush1.xpose.msra.mxu0 0.0
    %3769 = vmatprep.subr.mxu0 0.0
    %3770 = vmatpush1.xpose.msra.mxu0 0.0
    %3771 = vmatprep.subr.mxu0 0.0
    %3772 = vmatpush1.xpose.msra.mxu0 0.0
    %3773 = vmatprep.subr.mxu0 0.0
    %3774 = vmatpush1.xpose.msra.mxu0 0.0
    %3775 = vmatprep.subr.mxu0 0.0
    %3776 = vmatpush1.xpose.msra.mxu0 0.0
    %3777 = vmatprep.subr.mxu0 0.0
    %3778 = vmatpush1.xpose.msra.mxu0 0.0
    %3779 = vmatprep.subr.mxu0 0.0
    %3780 = vmatpush1.xpose.msra.mxu0 0.0
    %3781 = vmatprep.subr.mxu0 0.0
    %3782 = vmatpush1.xpose.msra.mxu0 0.0
    %3783 = vmatprep.subr.mxu0 0.0
    %3784 = vmatpush1.xpose.msra.mxu0 0.0
    %3785 = vmatprep.subr.mxu0 0.0
    %3786 = vmatpush1.xpose.msra.mxu0 0.0
    %3787 = vmatprep.subr.mxu0 0.0
    %3788 = vmatpush1.xpose.msra.mxu0 0.0
    %3789 = vmatprep.mubr.f32.mxu0 0.0
    %3790 = vmatmul.mubr.f32.gmra.mrb[0].mxu0 %v3717
    %v3791 = vpop.f32.mrb[0].mxu0
    %v3792 = vadd.f32 0.0, %v3791
    %v3793 = vpop.f32.mrb[0].mxu0
    %3794 = vmatprep.mubr.f32.mxu0 0.0
    %3795 = vmatmul.mubr.f32.gmra.mrb[0].mxu0 %v3719
    %v3796 = vpop.f32.mrb[0].mxu0
    %v3797 = vadd.f32 0.0, %v3796
    %v3798 = vpop.f32.mrb[0].mxu0
    %3799 = vdwg.mxu0
    %3800 = vrot.lane.b32.xlu0 %v2493, 104
    %v3801 = vpop.permute.xlu0 %3800
    %3802 = vrot.lane.b32.xlu0 %v2498, 104
    %v3803 = vpop.permute.xlu0 %3802
    %3804 = vrot.lane.b32.xlu0 %v2493, 72
    %v3805 = vpop.permute.xlu0 %3804
    %3806 = vrot.lane.b32.xlu0 %v2498, 72
    %v3807 = vpop.permute.xlu0 %3806
    %v3808 = vsel %vm233, %v3801, 0
    %v3810 = vsel %vm233, %v3803, 0
    %v3812 = vsel %vm233, %v3805, 0
    %v3814 = vsel %vm233, %v3807, 0
    %3816 = vmatprep.subr.mxu0 0.0
    %3817 = vmatpush1.xpose.msra.mxu0 %v3812
    %3818 = vmatprep.subr.mxu0 0.0
    %3819 = vmatpush1.xpose.msra.mxu0 %v3814
    %3820 = vmatprep.subr.mxu0 0.0
    %3821 = vmatpush1.xpose.msra.mxu0 0.0
    %3822 = vmatprep.subr.mxu0 0.0
    %3823 = vmatpush1.xpose.msra.mxu0 0.0
    %3824 = vmatprep.subr.mxu0 0.0
    %3825 = vmatpush1.xpose.msra.mxu0 0.0
    %3826 = vmatprep.subr.mxu0 0.0
    %3827 = vmatpush1.xpose.msra.mxu0 0.0
    %3828 = vmatprep.subr.mxu0 0.0
    %3829 = vmatpush1.xpose.msra.mxu0 0.0
    %3830 = vmatprep.subr.mxu0 0.0
    %3831 = vmatpush1.xpose.msra.mxu0 0.0
    %3832 = vmatprep.subr.mxu0 0.0
    %3833 = vmatpush1.xpose.msra.mxu0 0.0
    %3834 = vmatprep.subr.mxu0 0.0
    %3835 = vmatpush1.xpose.msra.mxu0 0.0
    %3836 = vmatprep.subr.mxu0 0.0
    %3837 = vmatpush1.xpose.msra.mxu0 0.0
    %3838 = vmatprep.subr.mxu0 0.0
    %3839 = vmatpush1.xpose.msra.mxu0 0.0
    %3840 = vmatprep.subr.mxu0 0.0
    %3841 = vmatpush1.xpose.msra.mxu0 0.0
    %3842 = vmatprep.subr.mxu0 0.0
    %3843 = vmatpush1.xpose.msra.mxu0 0.0
    %3844 = vmatprep.subr.mxu0 0.0
    %3845 = vmatpush1.xpose.msra.mxu0 0.0
    %3846 = vmatprep.subr.mxu0 0.0
    %3847 = vmatpush1.xpose.msra.mxu0 0.0
    %3848 = vmatprep.subr.mxu0 0.0
    %3849 = vmatpush1.xpose.msra.mxu0 0.0
    %3850 = vmatprep.subr.mxu0 0.0
    %3851 = vmatpush1.xpose.msra.mxu0 0.0
    %3852 = vmatprep.subr.mxu0 0.0
    %3853 = vmatpush1.xpose.msra.mxu0 0.0
    %3854 = vmatprep.subr.mxu0 0.0
    %3855 = vmatpush1.xpose.msra.mxu0 0.0
    %3856 = vmatprep.subr.mxu0 0.0
    %3857 = vmatpush1.xpose.msra.mxu0 0.0
    %3858 = vmatprep.subr.mxu0 0.0
    %3859 = vmatpush1.xpose.msra.mxu0 0.0
    %3860 = vmatprep.subr.mxu0 0.0
    %3861 = vmatpush1.xpose.msra.mxu0 0.0
    %3862 = vmatprep.subr.mxu0 0.0
    %3863 = vmatpush1.xpose.msra.mxu0 0.0
    %3864 = vmatprep.subr.mxu0 0.0
    %3865 = vmatpush1.xpose.msra.mxu0 0.0
    %3866 = vmatprep.subr.mxu0 0.0
    %3867 = vmatpush1.xpose.msra.mxu0 0.0
    %3868 = vmatprep.subr.mxu0 0.0
    %3869 = vmatpush1.xpose.msra.mxu0 0.0
    %3870 = vmatprep.subr.mxu0 0.0
    %3871 = vmatpush1.xpose.msra.mxu0 0.0
    %3872 = vmatprep.subr.mxu0 0.0
    %3873 = vmatpush1.xpose.msra.mxu0 0.0
    %3874 = vmatprep.subr.mxu0 0.0
    %3875 = vmatpush1.xpose.msra.mxu0 0.0
    %3876 = vmatprep.subr.mxu0 0.0
    %3877 = vmatpush1.xpose.msra.mxu0 0.0
    %3878 = vmatprep.subr.mxu0 0.0
    %3879 = vmatpush1.xpose.msra.mxu0 0.0
    %3880 = vmatprep.mubr.f32.mxu0 0.0
    %3881 = vmatmul.mubr.f32.gmra.mrb[0].mxu0 %v3808
    %v3882 = vpop.f32.mrb[0].mxu0
    %v3883 = vadd.f32 0.0, %v3882
    %v3884 = vpop.f32.mrb[0].mxu0
    %3885 = vmatprep.mubr.f32.mxu0 0.0
    %3886 = vmatmul.mubr.f32.gmra.mrb[0].mxu0 %v3810
    %v3887 = vpop.f32.mrb[0].mxu0
    %v3888 = vadd.f32 0.0, %v3887
    %v3889 = vpop.f32.mrb[0].mxu0
    %3890 = vdwg.mxu0
    %v3891 = vmul.f32 %v3792, 0.35355338
    %v3892 = vmul.f32 %v3797, 0.35355338
    %v3893 = vmul.f32 %v3883, 0.35355338
    %v3894 = vmul.f32 %v3888, 0.35355338
    %v3895 = vsel %vm410, %v3891, -inf
    %3896 = vmax.xlane.f32.xlu0 %v3895
    %v3897 = vpop.xlane.xlu0 %3896
    %v3898 = vsel %vm410, %v3892, -inf
    %3899 = vmax.xlane.f32.xlu0 %v3898
    %v3900 = vpop.xlane.xlu0 %3899
    %v3901 = vsel %vm410, %v3893, -inf
    %3902 = vmax.xlane.f32.xlu0 %v3901
    %v3903 = vpop.xlane.xlu0 %3902
    %v3904 = vsel %vm410, %v3894, -inf
    %3905 = vmax.xlane.f32.xlu0 %v3904
    %v3906 = vpop.xlane.xlu0 %3905
    %v3907 = vsub.f32 %v3891, %v3897
    %v3908 = vsub.f32 %v3892, %v3900
    %v3909 = vsub.f32 %v3893, %v3903
    %v3910 = vsub.f32 %v3894, %v3906
    %v3911 = vmul.f32 %v3907, 1.442695
    %v3912 = vpow.pop %v3911
    %v3913 = vmul.f32 %v3908, 1.442695
    %v3914 = vpow.pop %v3913
    %v3915 = vmul.f32 %v3909, 1.442695
    %v3916 = vpow.pop %v3915
    %v3917 = vmul.f32 %v3910, 1.442695
    %v3918 = vpow.pop %v3917
    %v3919 = vsel %vm410, %v3912, 0.0
    %3920 = vadd.xlane.f32.xlu0 %v3919
    %v3921 = vpop.xlane.xlu0 %3920
    %v3922 = vsel %vm410, %v3914, 0.0
    %3923 = vadd.xlane.f32.xlu0 %v3922
    %v3924 = vpop.xlane.xlu0 %3923
    %v3925 = vsel %vm410, %v3916, 0.0
    %3926 = vadd.xlane.f32.xlu0 %v3925
    %v3927 = vpop.xlane.xlu0 %3926
    %v3928 = vsel %vm410, %v3918, 0.0
    %3929 = vadd.xlane.f32.xlu0 %v3928
    %v3930 = vpop.xlane.xlu0 %3929
    %v3931 = vrcp.pop %v3921
    %v3932 = vrcp.pop %v3924
    %v3933 = vrcp.pop %v3927
    %v3934 = vrcp.pop %v3930
    %v3935 = vmul.f32 %v3912, %v3931
    %v3936 = vmul.f32 %v3914, %v3932
    %v3937 = vmul.f32 %v3916, %v3933
    %v3938 = vmul.f32 %v3918, %v3934
    %3939 = vrot.lane.b32.xlu0 %v2483, 40
    %v3940 = vpop.permute.xlu0 %3939
    %3941 = vrot.lane.b32.xlu0 %v2488, 40
    %v3942 = vpop.permute.xlu0 %3941
    %v3946 = vsel %vm410, %v3935, 0
    %v3949 = vsel %vm410, %v3936, 0
    %3951 = vmatprep.subr.mxu0 0.0
    %3952 = vmatpush1.msra.mxu0 %v3940
    %3953 = vmatprep.subr.mxu0 0.0
    %3954 = vmatpush1.msra.mxu0 %v3942
    %3955 = vmatprep.subr.mxu0 0.0
    %3956 = vmatpush1.msra.mxu0 0.0
    %3957 = vmatprep.subr.mxu0 0.0
    %3958 = vmatpush1.msra.mxu0 0.0
    %3959 = vmatprep.subr.mxu0 0.0
    %3960 = vmatpush1.msra.mxu0 0.0
    %3961 = vmatprep.subr.mxu0 0.0
    %3962 = vmatpush1.msra.mxu0 0.0
    %3963 = vmatprep.subr.mxu0 0.0
    %3964 = vmatpush1.msra.mxu0 0.0
    %3965 = vmatprep.subr.mxu0 0.0
    %3966 = vmatpush1.msra.mxu0 0.0
    %3967 = vmatprep.subr.mxu0 0.0
    %3968 = vmatpush1.msra.mxu0 0.0
    %3969 = vmatprep.subr.mxu0 0.0
    %3970 = vmatpush1.msra.mxu0 0.0
    %3971 = vmatprep.subr.mxu0 0.0
    %3972 = vmatpush1.msra.mxu0 0.0
    %3973 = vmatprep.subr.mxu0 0.0
    %3974 = vmatpush1.msra.mxu0 0.0
    %3975 = vmatprep.subr.mxu0 0.0
    %3976 = vmatpush1.msra.mxu0 0.0
    %3977 = vmatprep.subr.mxu0 0.0
    %3978 = vmatpush1.msra.mxu0 0.0
    %3979 = vmatprep.subr.mxu0 0.0
    %3980 = vmatpush1.msra.mxu0 0.0
    %3981 = vmatprep.subr.mxu0 0.0
    %3982 = vmatpush1.msra.mxu0 0.0
    %3983 = vmatprep.subr.mxu0 0.0
    %3984 = vmatpush1.msra.mxu0 0.0
    %3985 = vmatprep.subr.mxu0 0.0
    %3986 = vmatpush1.msra.mxu0 0.0
    %3987 = vmatprep.subr.mxu0 0.0
    %3988 = vmatpush1.msra.mxu0 0.0
    %3989 = vmatprep.subr.mxu0 0.0
    %3990 = vmatpush1.msra.mxu0 0.0
    %3991 = vmatprep.subr.mxu0 0.0
    %3992 = vmatpush1.msra.mxu0 0.0
    %3993 = vmatprep.subr.mxu0 0.0
    %3994 = vmatpush1.msra.mxu0 0.0
    %3995 = vmatprep.subr.mxu0 0.0
    %3996 = vmatpush1.msra.mxu0 0.0
    %3997 = vmatprep.subr.mxu0 0.0
    %3998 = vmatpush1.msra.mxu0 0.0
    %3999 = vmatprep.subr.mxu0 0.0
    %4000 = vmatpush1.msra.mxu0 0.0
    %4001 = vmatprep.subr.mxu0 0.0
    %4002 = vmatpush1.msra.mxu0 0.0
    %4003 = vmatprep.subr.mxu0 0.0
    %4004 = vmatpush1.msra.mxu0 0.0
    %4005 = vmatprep.subr.mxu0 0.0
    %4006 = vmatpush1.msra.mxu0 0.0
    %4007 = vmatprep.subr.mxu0 0.0
    %4008 = vmatpush1.msra.mxu0 0.0
    %4009 = vmatprep.subr.mxu0 0.0
    %4010 = vmatpush1.msra.mxu0 0.0
    %4011 = vmatprep.subr.mxu0 0.0
    %4012 = vmatpush1.msra.mxu0 0.0
    %4013 = vmatprep.subr.mxu0 0.0
    %4014 = vmatpush1.msra.mxu0 0.0
    %4015 = vmatprep.mubr.f32.mxu0 0.0
    %4016 = vmatmul.mubr.f32.gmra.mrb[0].mxu0 %v3946
    %v4017 = vpop.f32.mrb[0].mxu0
    %v4018 = vadd.f32 0.0, %v4017
    %v4019 = vpop.f32.mrb[0].mxu0
    %4020 = vmatprep.mubr.f32.mxu0 0.0
    %4021 = vmatmul.mubr.f32.gmra.mrb[0].mxu0 %v3949
    %v4022 = vpop.f32.mrb[0].mxu0
    %v4023 = vadd.f32 0.0, %v4022
    %v4024 = vpop.f32.mrb[0].mxu0
    %4025 = vdwg.mxu0
    %4026 = vrot.lane.b32.xlu0 %v2493, 40
    %v4027 = vpop.permute.xlu0 %4026
    %4028 = vrot.lane.b32.xlu0 %v2498, 40
    %v4029 = vpop.permute.xlu0 %4028
    %v4033 = vsel %vm410, %v3937, 0
    %v4036 = vsel %vm410, %v3938, 0
    %4038 = vmatprep.subr.mxu0 0.0
    %4039 = vmatpush1.msra.mxu0 %v4027
    %4040 = vmatprep.subr.mxu0 0.0
    %4041 = vmatpush1.msra.mxu0 %v4029
    %4042 = vmatprep.subr.mxu0 0.0
    %4043 = vmatpush1.msra.mxu0 0.0
    %4044 = vmatprep.subr.mxu0 0.0
    %4045 = vmatpush1.msra.mxu0 0.0
    %4046 = vmatprep.subr.mxu0 0.0
    %4047 = vmatpush1.msra.mxu0 0.0
    %4048 = vmatprep.subr.mxu0 0.0
    %4049 = vmatpush1.msra.mxu0 0.0
    %4050 = vmatprep.subr.mxu0 0.0
    %4051 = vmatpush1.msra.mxu0 0.0
    %4052 = vmatprep.subr.mxu0 0.0
    %4053 = vmatpush1.msra.mxu0 0.0
    %4054 = vmatprep.subr.mxu0 0.0
    %4055 = vmatpush1.msra.mxu0 0.0
    %4056 = vmatprep.subr.mxu0 0.0
    %4057 = vmatpush1.msra.mxu0 0.0
    %4058 = vmatprep.subr.mxu0 0.0
    %4059 = vmatpush1.msra.mxu0 0.0
    %4060 = vmatprep.subr.mxu0 0.0
    %4061 = vmatpush1.msra.mxu0 0.0
    %4062 = vmatprep.subr.mxu0 0.0
    %4063 = vmatpush1.msra.mxu0 0.0
    %4064 = vmatprep.subr.mxu0 0.0
    %4065 = vmatpush1.msra.mxu0 0.0
    %4066 = vmatprep.subr.mxu0 0.0
    %4067 = vmatpush1.msra.mxu0 0.0
    %4068 = vmatprep.subr.mxu0 0.0
    %4069 = vmatpush1.msra.mxu0 0.0
    %4070 = vmatprep.subr.mxu0 0.0
    %4071 = vmatpush1.msra.mxu0 0.0
    %4072 = vmatprep.subr.mxu0 0.0
    %4073 = vmatpush1.msra.mxu0 0.0
    %4074 = vmatprep.subr.mxu0 0.0
    %4075 = vmatpush1.msra.mxu0 0.0
    %4076 = vmatprep.subr.mxu0 0.0
    %4077 = vmatpush1.msra.mxu0 0.0
    %4078 = vmatprep.subr.mxu0 0.0
    %4079 = vmatpush1.msra.mxu0 0.0
    %4080 = vmatprep.subr.mxu0 0.0
    %4081 = vmatpush1.msra.mxu0 0.0
    %4082 = vmatprep.subr.mxu0 0.0
    %4083 = vmatpush1.msra.mxu0 0.0
    %4084 = vmatprep.subr.mxu0 0.0
    %4085 = vmatpush1.msra.mxu0 0.0
    %4086 = vmatprep.subr.mxu0 0.0
    %4087 = vmatpush1.msra.mxu0 0.0
    %4088 = vmatprep.subr.mxu0 0.0
    %4089 = vmatpush1.msra.mxu0 0.0
    %4090 = vmatprep.subr.mxu0 0.0
    %4091 = vmatpush1.msra.mxu0 0.0
    %4092 = vmatprep.subr.mxu0 0.0
    %4093 = vmatpush1.msra.mxu0 0.0
    %4094 = vmatprep.subr.mxu0 0.0
    %4095 = vmatpush1.msra.mxu0 0.0
    %4096 = vmatprep.subr.mxu0 0.0
    %4097 = vmatpush1.msra.mxu0 0.0
    %4098 = vmatprep.subr.mxu0 0.0
    %4099 = vmatpush1.msra.mxu0 0.0
    %4100 = vmatprep.subr.mxu0 0.0
    %4101 = vmatpush1.msra.mxu0 0.0
    %4102 = vmatprep.mubr.f32.mxu0 0.0
    %4103 = vmatmul.mubr.f32.gmra.mrb[0].mxu0 %v4033
    %v4104 = vpop.f32.mrb[0].mxu0
    %v4105 = vadd.f32 0.0, %v4104
    %v4106 = vpop.f32.mrb[0].mxu0
    %4107 = vmatprep.mubr.f32.mxu0 0.0
    %4108 = vmatmul.mubr.f32.gmra.mrb[0].mxu0 %v4036
    %v4109 = vpop.f32.mrb[0].mxu0
    %v4110 = vadd.f32 0.0, %v4109
    %v4111 = vpop.f32.mrb[0].mxu0
    %4112 = vdwg.mxu0
    %4117 = vrot.lane.b32.xlu0 %v3210, 8
    %v4118 = vpop.permute.xlu0 %4117
    %4119 = vrot.lane.b32.xlu0 %v3215, 8
    %v4120 = vpop.permute.xlu0 %4119
    %4121 = vrot.lane.b32.xlu0 %v3297, 8
    %v4122 = vpop.permute.xlu0 %4121
    %4123 = vrot.lane.b32.xlu0 %v3302, 8
    %v4124 = vpop.permute.xlu0 %4123
    %4133 = vrot.lane.b32.xlu0 %v3614, 16
    %v4134 = vpop.permute.xlu0 %4133
    %4135 = vrot.lane.b32.xlu0 %v3619, 16
    %v4136 = vpop.permute.xlu0 %4135
    %4137 = vrot.lane.b32.xlu0 %v3701, 16
    %v4138 = vpop.permute.xlu0 %4137
    %4139 = vrot.lane.b32.xlu0 %v3706, 16
    %v4140 = vpop.permute.xlu0 %4139
    %4149 = vrot.lane.b32.xlu0 %v4018, 24
    %v4150 = vpop.permute.xlu0 %4149
    %4151 = vrot.lane.b32.xlu0 %v4023, 24
    %v4152 = vpop.permute.xlu0 %4151
    %4153 = vrot.lane.b32.xlu0 %v4105, 24
    %v4154 = vpop.permute.xlu0 %4153
    %4155 = vrot.lane.b32.xlu0 %v4110, 24
    %v4156 = vpop.permute.xlu0 %4155
    %v4161 = vsel %vm233, %v2806, %v4118
    %v4162 = vsel %vm233, %v2811, %v4120
    %v4163 = vsel %vm233, %v2893, %v4122
    %v4164 = vsel %vm233, %v2898, %v4124
    %v4165 = vsel %vm410, %v4161, %v4134
    %v4166 = vsel %vm410, %v4162, %v4136
    %v4167 = vsel %vm410, %v4163, %v4138
    %v4168 = vsel %vm410, %v4164, %v4140
    %v4169 = vsel %vm1897, %v4165, %v4150
    %v4170 = vsel %vm1897, %v4166, %v4152
    %v4171 = vsel %vm1897, %v4167, %v4154
    %v4172 = vsel %vm1897, %v4168, %v4156
    %v4173 = vld [vmem:[%s2394 + $0x80] sm:$0xff]
    %v4174 = vld [vmem:[%s2394 + $0x88] sm:$0xff]
    %v4175 = vld [vmem:[%s2394 + $0x90] sm:$0xff]
    %v4176 = vld [vmem:[%s2394 + $0x98] sm:$0xff]
    %v4177 = vld [vmem:[%s2394 + $0xa1] sm:$0x1]
    %v4178 = vlaneseq
    %v4179 = vshrl.u32 %v4178, 7
    %v4180 = vsub.s32 0, %v4179
    %v4181 = vrot.slane %v4177, %v4180
    %v4183 = vsel %vm23, %v4169, 0
    %v4186 = vsel %vm23, %v4170, 0
    %v4189 = vsel %vm23, %v4171, 0
    %v4192 = vsel %vm23, %v4172, 0
    %4194 = vmatprep.subr.mxu0 0.0
    %4195 = vmatpush1.msra.mxu0 %v4173
    %4196 = vmatprep.subr.mxu0 0.0
    %4197 = vmatpush1.msra.mxu0 %v4174
    %4198 = vmatprep.subr.mxu0 0.0
    %4199 = vmatpush1.msra.mxu0 %v4175
    %4200 = vmatprep.subr.mxu0 0.0
    %4201 = vmatpush1.msra.mxu0 %v4176
    %4202 = vmatprep.subr.mxu0 0.0
    %4203 = vmatpush1.msra.mxu0 0.0
    %4204 = vmatprep.subr.mxu0 0.0
    %4205 = vmatpush1.msra.mxu0 0.0
    %4206 = vmatprep.subr.mxu0 0.0
    %4207 = vmatpush1.msra.mxu0 0.0
    %4208 = vmatprep.subr.mxu0 0.0
    %4209 = vmatpush1.msra.mxu0 0.0
    %4210 = vmatprep.subr.mxu0 0.0
    %4211 = vmatpush1.msra.mxu0 0.0
    %4212 = vmatprep.subr.mxu0 0.0
    %4213 = vmatpush1.msra.mxu0 0.0
    %4214 = vmatprep.subr.mxu0 0.0
    %4215 = vmatpush1.msra.mxu0 0.0
    %4216 = vmatprep.subr.mxu0 0.0
    %4217 = vmatpush1.msra.mxu0 0.0
    %4218 = vmatprep.subr.mxu0 0.0
    %4219 = vmatpush1.msra.mxu0 0.0
    %4220 = vmatprep.subr.mxu0 0.0
    %4221 = vmatpush1.msra.mxu0 0.0
    %4222 = vmatprep.subr.mxu0 0.0
    %4223 = vmatpush1.msra.mxu0 0.0
    %4224 = vmatprep.subr.mxu0 0.0
    %4225 = vmatpush1.msra.mxu0 0.0
    %4226 = vmatprep.subr.mxu0 0.0
    %4227 = vmatpush1.msra.mxu0 0.0
    %4228 = vmatprep.subr.mxu0 0.0
    %4229 = vmatpush1.msra.mxu0 0.0
    %4230 = vmatprep.subr.mxu0 0.0
    %4231 = vmatpush1.msra.mxu0 0.0
    %4232 = vmatprep.subr.mxu0 0.0
    %4233 = vmatpush1.msra.mxu0 0.0
    %4234 = vmatprep.subr.mxu0 0.0
    %4235 = vmatpush1.msra.mxu0 0.0
    %4236 = vmatprep.subr.mxu0 0.0
    %4237 = vmatpush1.msra.mxu0 0.0
    %4238 = vmatprep.subr.mxu0 0.0
    %4239 = vmatpush1.msra.mxu0 0.0
    %4240 = vmatprep.subr.mxu0 0.0
    %4241 = vmatpush1.msra.mxu0 0.0
    %4242 = vmatprep.subr.mxu0 0.0
    %4243 = vmatpush1.msra.mxu0 0.0
    %4244 = vmatprep.subr.mxu0 0.0
    %4245 = vmatpush1.msra.mxu0 0.0
    %4246 = vmatprep.subr.mxu0 0.0
    %4247 = vmatpush1.msra.mxu0 0.0
    %4248 = vmatprep.subr.mxu0 0.0
    %4249 = vmatpush1.msra.mxu0 0.0
    %4250 = vmatprep.subr.mxu0 0.0
    %4251 = vmatpush1.msra.mxu0 0.0
    %4252 = vmatprep.subr.mxu0 0.0
    %4253 = vmatpush1.msra.mxu0 0.0
    %4254 = vmatprep.subr.mxu0 0.0
    %4255 = vmatpush1.msra.mxu0 0.0
    %4256 = vmatprep.subr.mxu0 0.0
    %4257 = vmatpush1.msra.mxu0 0.0
    %4258 = vmatprep.mubr.f32.mxu0 0.0
    %4259 = vmatmul.mubr.f32.gmra.mrb[0].mxu0 %v4183
    %v4260 = vpop.f32.mrb[0].mxu0
    %v4261 = vadd.f32 %v4181, %v4260
    %v4262 = vpop.f32.mrb[0].mxu0
    %4263 = vmatprep.mubr.f32.mxu0 0.0
    %4264 = vmatmul.mubr.f32.gmra.mrb[0].mxu0 %v4186
    %v4265 = vpop.f32.mrb[0].mxu0
    %v4266 = vadd.f32 %v4181, %v4265
    %v4267 = vpop.f32.mrb[0].mxu0
    %4268 = vmatprep.mubr.f32.mxu0 0.0
    %4269 = vmatmul.mubr.f32.gmra.mrb[0].mxu0 %v4189
    %v4270 = vpop.f32.mrb[0].mxu0
    %v4271 = vadd.f32 %v4181, %v4270
    %v4272 = vpop.f32.mrb[0].mxu0
    %4273 = vmatprep.mubr.f32.mxu0 0.0
    %4274 = vmatmul.mubr.f32.gmra.mrb[0].mxu0 %v4192
    %v4275 = vpop.f32.mrb[0].mxu0
    %v4276 = vadd.f32 %v4181, %v4275
    %v4277 = vpop.f32.mrb[0].mxu0
    %4278 = vdwg.mxu0
    %v4279 = vadd.f32 %v2390, %v4261
    %v4280 = vadd.f32 %v2391, %v4266
    %v4281 = vadd.f32 %v2392, %v4271
    %v4282 = vadd.f32 %v2393, %v4276
    %v4283 = vld [vmem:[%s2394 + $0xa4] sm:$0x1]
    %v4284 = vld [vmem:[%s2394 + $0xa5] sm:$0x1]
    %v4285 = vsel %vm23, %v4279, 0.0
    %4286 = vadd.xlane.f32.xlu0 %v4285
    %v4287 = vpop.xlane.xlu0 %4286
    %v4288 = vsel %vm23, %v4280, 0.0
    %4289 = vadd.xlane.f32.xlu0 %v4288
    %v4290 = vpop.xlane.xlu0 %4289
    %v4291 = vsel %vm23, %v4281, 0.0
    %4292 = vadd.xlane.f32.xlu0 %v4291
    %v4293 = vpop.xlane.xlu0 %4292
    %v4294 = vsel %vm23, %v4282, 0.0
    %4295 = vadd.xlane.f32.xlu0 %v4294
    %v4296 = vpop.xlane.xlu0 %4295
    %v4297 = vmul.f32 %v4287, %v2026
    %v4298 = vmul.f32 %v4290, %v2026
    %v4299 = vmul.f32 %v4293, %v2026
    %v4300 = vmul.f32 %v4296, %v2026
    %v4301 = vsub.f32 %v4279, %v4297
    %v4302 = vsub.f32 %v4280, %v4298
    %v4303 = vsub.f32 %v4281, %v4299
    %v4304 = vsub.f32 %v4282, %v4300
    %v4305 = vmul.f32 %v4301, %v4301
    %v4306 = vmul.f32 %v4302, %v4302
    %v4307 = vmul.f32 %v4303, %v4303
    %v4308 = vmul.f32 %v4304, %v4304
    %v4309 = vsel %vm23, %v4305, 0.0
    %4310 = vadd.xlane.f32.xlu0 %v4309
    %v4311 = vpop.xlane.xlu0 %4310
    %v4312 = vsel %vm23, %v4306, 0.0
    %4313 = vadd.xlane.f32.xlu0 %v4312
    %v4314 = vpop.xlane.xlu0 %4313
    %v4315 = vsel %vm23, %v4307, 0.0
    %4316 = vadd.xlane.f32.xlu0 %v4315
    %v4317 = vpop.xlane.xlu0 %4316
    %v4318 = vsel %vm23, %v4308, 0.0
    %4319 = vadd.xlane.f32.xlu0 %v4318
    %v4320 = vpop.xlane.xlu0 %4319
    %v4321 = vmul.f32 %v4311, %v2026
    %v4322 = vmul.f32 %v4314, %v2026
    %v4323 = vmul.f32 %v4317, %v2026
    %v4324 = vmul.f32 %v4320, %v2026
    %v4325 = vadd.f32 %v4321, 1e-05
    %v4326 = vadd.f32 %v4322, 1e-05
    %v4327 = vadd.f32 %v4323, 1e-05
    %v4328 = vadd.f32 %v4324, 1e-05
    %v4329 = vrsqrt.pop %v4325
    %v4330 = vrsqrt.pop %v4326
    %v4331 = vrsqrt.pop %v4327
    %v4332 = vrsqrt.pop %v4328
    %v4333 = vmul.f32 %v4301, %v4329
    %v4334 = vmul.f32 %v4302, %v4330
    %v4335 = vmul.f32 %v4303, %v4331
    %v4336 = vmul.f32 %v4304, %v4332
    %v4337 = vlaneseq
    %v4338 = vshrl.u32 %v4337, 7
    %v4339 = vsub.s32 0, %v4338
    %v4340 = vrot.slane %v4283, %v4339
    %v4341 = vmul.f32 %v4333, %v4340
    %v4342 = vmul.f32 %v4334, %v4340
    %v4343 = vmul.f32 %v4335, %v4340
    %v4344 = vmul.f32 %v4336, %v4340
    %v4345 = vlaneseq
    %v4346 = vshrl.u32 %v4345, 7
    %v4347 = vsub.s32 0, %v4346
    %v4348 = vrot.slane %v4284, %v4347
    %v4349 = vadd.f32 %v4341, %v4348
    %v4350 = vadd.f32 %v4342, %v4348
    %v4351 = vadd.f32 %v4343, %v4348
    %v4352 = vadd.f32 %v4344, %v4348
    %v4353 = vld [vmem:[%s2394 + $0x20] sm:$0xff]
    %v4354 = vld [vmem:[%s2394 + $0x28] sm:$0xff]
    %v4355 = vld [vmem:[%s2394 + $0x30] sm:$0xff]
    %v4356 = vld [vmem:[%s2394 + $0x38] sm:$0xff]
    %v4357 = vld [vmem:[%s2394 + $0xa2] sm:$0x1]
    %v4358 = vlaneseq
    %v4359 = vshrl.u32 %v4358, 7
    %v4360 = vsub.s32 0, %v4359
    %v4361 = vrot.slane %v4357, %v4360
    %v4363 = vsel %vm23, %v4349, 0
    %v4366 = vsel %vm23, %v4350, 0
    %v4369 = vsel %vm23, %v4351, 0
    %v4372 = vsel %vm23, %v4352, 0
    %4374 = vmatprep.subr.mxu0 0.0
    %4375 = vmatpush1.msra.mxu0 %v4353
    %4376 = vmatprep.subr.mxu0 0.0
    %4377 = vmatpush1.msra.mxu0 %v4354
    %4378 = vmatprep.subr.mxu0 0.0
    %4379 = vmatpush1.msra.mxu0 %v4355
    %4380 = vmatprep.subr.mxu0 0.0
    %4381 = vmatpush1.msra.mxu0 %v4356
    %4382 = vmatprep.subr.mxu0 0.0
    %4383 = vmatpush1.msra.mxu0 0.0
    %4384 = vmatprep.subr.mxu0 0.0
    %4385 = vmatpush1.msra.mxu0 0.0
    %4386 = vmatprep.subr.mxu0 0.0
    %4387 = vmatpush1.msra.mxu0 0.0
    %4388 = vmatprep.subr.mxu0 0.0
    %4389 = vmatpush1.msra.mxu0 0.0
    %4390 = vmatprep.subr.mxu0 0.0
    %4391 = vmatpush1.msra.mxu0 0.0
    %4392 = vmatprep.subr.mxu0 0.0
    %4393 = vmatpush1.msra.mxu0 0.0
    %4394 = vmatprep.subr.mxu0 0.0
    %4395 = vmatpush1.msra.mxu0 0.0
    %4396 = vmatprep.subr.mxu0 0.0
    %4397 = vmatpush1.msra.mxu0 0.0
    %4398 = vmatprep.subr.mxu0 0.0
    %4399 = vmatpush1.msra.mxu0 0.0
    %4400 = vmatprep.subr.mxu0 0.0
    %4401 = vmatpush1.msra.mxu0 0.0
    %4402 = vmatprep.subr.mxu0 0.0
    %4403 = vmatpush1.msra.mxu0 0.0
    %4404 = vmatprep.subr.mxu0 0.0
    %4405 = vmatpush1.msra.mxu0 0.0
    %4406 = vmatprep.subr.mxu0 0.0
    %4407 = vmatpush1.msra.mxu0 0.0
    %4408 = vmatprep.subr.mxu0 0.0
    %4409 = vmatpush1.msra.mxu0 0.0
    %4410 = vmatprep.subr.mxu0 0.0
    %4411 = vmatpush1.msra.mxu0 0.0
    %4412 = vmatprep.subr.mxu0 0.0
    %4413 = vmatpush1.msra.mxu0 0.0
    %4414 = vmatprep.subr.mxu0 0.0
    %4415 = vmatpush1.msra.mxu0 0.0
    %4416 = vmatprep.subr.mxu0 0.0
    %4417 = vmatpush1.msra.mxu0 0.0
    %4418 = vmatprep.subr.mxu0 0.0
    %4419 = vmatpush1.msra.mxu0 0.0
    %4420 = vmatprep.subr.mxu0 0.0
    %4421 = vmatpush1.msra.mxu0 0.0
    %4422 = vmatprep.subr.mxu0 0.0
    %4423 = vmatpush1.msra.mxu0 0.0
    %4424 = vmatprep.subr.mxu0 0.0
    %4425 = vmatpush1.msra.mxu0 0.0
    %4426 = vmatprep.subr.mxu0 0.0
    %4427 = vmatpush1.msra.mxu0 0.0
    %4428 = vmatprep.subr.mxu0 0.0
    %4429 = vmatpush1.msra.mxu0 0.0
    %4430 = vmatprep.subr.mxu0 0.0
    %4431 = vmatpush1.msra.mxu0 0.0
    %4432 = vmatprep.subr.mxu0 0.0
    %4433 = vmatpush1.msra.mxu0 0.0
    %4434 = vmatprep.subr.mxu0 0.0
    %4435 = vmatpush1.msra.mxu0 0.0
    %4436 = vmatprep.subr.mxu0 0.0
    %4437 = vmatpush1.msra.mxu0 0.0
    %4438 = vmatprep.mubr.f32.mxu0 0.0
    %4439 = vmatmul.mubr.f32.gmra.mrb[0].mxu0 %v4363
    %v4440 = vpop.f32.mrb[0].mxu0
    %v4441 = vadd.f32 %v4361, %v4440
    %v4442 = vpop.f32.mrb[0].mxu0
    %4443 = vmatprep.mubr.f32.mxu0 0.0
    %4444 = vmatmul.mubr.f32.gmra.mrb[0].mxu0 %v4366
    %v4445 = vpop.f32.mrb[0].mxu0
    %v4446 = vadd.f32 %v4361, %v4445
    %v4447 = vpop.f32.mrb[0].mxu0
    %4448 = vmatprep.mubr.f32.mxu0 0.0
    %4449 = vmatmul.mubr.f32.gmra.mrb[0].mxu0 %v4369
    %v4450 = vpop.f32.mrb[0].mxu0
    %v4451 = vadd.f32 %v4361, %v4450
    %v4452 = vpop.f32.mrb[0].mxu0
    %4453 = vmatprep.mubr.f32.mxu0 0.0
    %4454 = vmatmul.mubr.f32.gmra.mrb[0].mxu0 %v4372
    %v4455 = vpop.f32.mrb[0].mxu0
    %v4456 = vadd.f32 %v4361, %v4455
    %v4457 = vpop.f32.mrb[0].mxu0
    %4458 = vdwg.mxu0
    %v4459 = vmul.f32 %v4441, 0.5
    %v4460 = vmul.f32 %v4446, 0.5
    %v4461 = vmul.f32 %v4451, 0.5
    %v4462 = vmul.f32 %v4456, 0.5
    %v4463 = vmul.f32 %v4441, 0.70710677
    %v4464 = vmul.f32 %v4446, 0.70710677
    %v4465 = vmul.f32 %v4451, 0.70710677
    %v4466 = vmul.f32 %v4456, 0.70710677
    %v4467 = verf.f32.pop %v4463
    %v4468 = verf.f32.pop %v4464
    %v4469 = verf.f32.pop %v4465
    %v4470 = verf.f32.pop %v4466
    %v4471 = vadd.f32 %v4467, 1.0
    %v4472 = vadd.f32 %v4468, 1.0
    %v4473 = vadd.f32 %v4469, 1.0
    %v4474 = vadd.f32 %v4470, 1.0
    %v4475 = vmul.f32 %v4459, %v4471
    %v4476 = vmul.f32 %v4460, %v4472
    %v4477 = vmul.f32 %v4461, %v4473
    %v4478 = vmul.f32 %v4462, %v4474
    %v4479 = vld [vmem:[%s2394 + $0x40] sm:$0xff]
    %v4480 = vld [vmem:[%s2394 + $0x48] sm:$0xff]
    %v4481 = vld [vmem:[%s2394 + $0x50] sm:$0xff]
    %v4482 = vld [vmem:[%s2394 + $0x58] sm:$0xff]
    %v4483 = vld [vmem:[%s2394 + $0x60] sm:$0xff]
    %v4484 = vld [vmem:[%s2394 + $0x68] sm:$0xff]
    %v4485 = vld [vmem:[%s2394 + $0x70] sm:$0xff]
    %v4486 = vld [vmem:[%s2394 + $0x78] sm:$0xff]
    %v4487 = vld [vmem:[%s2394 + $0xa3] sm:$0x1]
    %v4488 = vlaneseq
    %v4489 = vshrl.u32 %v4488, 7
    %v4490 = vsub.s32 0, %v4489
    %v4491 = vrot.slane %v4487, %v4490
    %v4493 = vsel %vm2222, %v4475, 0
    %v4496 = vsel %vm2222, %v4476, 0
    %v4499 = vsel %vm2222, %v4477, 0
    %v4502 = vsel %vm2222, %v4478, 0
    %4504 = vmatprep.subr.mxu0 0.0
    %4505 = vmatpush1.msra.mxu0 %v4479
    %4506 = vmatprep.subr.mxu0 0.0
    %4507 = vmatpush1.msra.mxu0 %v4480
    %4508 = vmatprep.subr.mxu0 0.0
    %4509 = vmatpush1.msra.mxu0 %v4481
    %4510 = vmatprep.subr.mxu0 0.0
    %4511 = vmatpush1.msra.mxu0 %v4482
    %4512 = vmatprep.subr.mxu0 0.0
    %4513 = vmatpush1.msra.mxu0 %v4483
    %4514 = vmatprep.subr.mxu0 0.0
    %4515 = vmatpush1.msra.mxu0 %v4484
    %4516 = vmatprep.subr.mxu0 0.0
    %4517 = vmatpush1.msra.mxu0 %v4485
    %4518 = vmatprep.subr.mxu0 0.0
    %4519 = vmatpush1.msra.mxu0 %v4486
    %4520 = vmatprep.subr.mxu0 0.0
    %4521 = vmatpush1.msra.mxu0 0.0
    %4522 = vmatprep.subr.mxu0 0.0
    %4523 = vmatpush1.msra.mxu0 0.0
    %4524 = vmatprep.subr.mxu0 0.0
    %4525 = vmatpush1.msra.mxu0 0.0
    %4526 = vmatprep.subr.mxu0 0.0
    %4527 = vmatpush1.msra.mxu0 0.0
    %4528 = vmatprep.subr.mxu0 0.0
    %4529 = vmatpush1.msra.mxu0 0.0
    %4530 = vmatprep.subr.mxu0 0.0
    %4531 = vmatpush1.msra.mxu0 0.0
    %4532 = vmatprep.subr.mxu0 0.0
    %4533 = vmatpush1.msra.mxu0 0.0
    %4534 = vmatprep.subr.mxu0 0.0
    %4535 = vmatpush1.msra.mxu0 0.0
    %4536 = vmatprep.subr.mxu0 0.0
    %4537 = vmatpush1.msra.mxu0 0.0
    %4538 = vmatprep.subr.mxu0 0.0
    %4539 = vmatpush1.msra.mxu0 0.0
    %4540 = vmatprep.subr.mxu0 0.0
    %4541 = vmatpush1.msra.mxu0 0.0
    %4542 = vmatprep.subr.mxu0 0.0
    %4543 = vmatpush1.msra.mxu0 0.0
    %4544 = vmatprep.subr.mxu0 0.0
    %4545 = vmatpush1.msra.mxu0 0.0
    %4546 = vmatprep.subr.mxu0 0.0
    %4547 = vmatpush1.msra.mxu0 0.0
    %4548 = vmatprep.subr.mxu0 0.0
    %4549 = vmatpush1.msra.mxu0 0.0
    %4550 = vmatprep.subr.mxu0 0.0
    %4551 = vmatpush1.msra.mxu0 0.0
    %4552 = vmatprep.subr.mxu0 0.0
    %4553 = vmatpush1.msra.mxu0 0.0
    %4554 = vmatprep.subr.mxu0 0.0
    %4555 = vmatpush1.msra.mxu0 0.0
    %4556 = vmatprep.subr.mxu0 0.0
    %4557 = vmatpush1.msra.mxu0 0.0
    %4558 = vmatprep.subr.mxu0 0.0
    %4559 = vmatpush1.msra.mxu0 0.0
    %4560 = vmatprep.subr.mxu0 0.0
    %4561 = vmatpush1.msra.mxu0 0.0
    %4562 = vmatprep.subr.mxu0 0.0
    %4563 = vmatpush1.msra.mxu0 0.0
    %4564 = vmatprep.subr.mxu0 0.0
    %4565 = vmatpush1.msra.mxu0 0.0
    %4566 = vmatprep.subr.mxu0 0.0
    %4567 = vmatpush1.msra.mxu0 0.0
    %4568 = vmatprep.mubr.f32.mxu0 0.0
    %4569 = vmatmul.mubr.f32.gmra.mrb[0].mxu0 %v4493
    %v4570 = vpop.f32.mrb[0].mxu0
    %v4571 = vadd.f32 %v4491, %v4570
    %v4572 = vpop.f32.mrb[0].mxu0
    %4573 = vmatprep.mubr.f32.mxu0 0.0
    %4574 = vmatmul.mubr.f32.gmra.mrb[0].mxu0 %v4496
    %v4575 = vpop.f32.mrb[0].mxu0
    %v4576 = vadd.f32 %v4491, %v4575
    %v4577 = vpop.f32.mrb[0].mxu0
    %4578 = vmatprep.mubr.f32.mxu0 0.0
    %4579 = vmatmul.mubr.f32.gmra.mrb[0].mxu0 %v4499
    %v4580 = vpop.f32.mrb[0].mxu0
    %v4581 = vadd.f32 %v4491, %v4580
    %v4582 = vpop.f32.mrb[0].mxu0
    %4583 = vmatprep.mubr.f32.mxu0 0.0
    %4584 = vmatmul.mubr.f32.gmra.mrb[0].mxu0 %v4502
    %v4585 = vpop.f32.mrb[0].mxu0
    %v4586 = vadd.f32 %v4491, %v4585
    %v4587 = vpop.f32.mrb[0].mxu0
    %4588 = vdwg.mxu0
    %v4589 = vadd.f32 %v4349, %v4571
    %v4590 = vadd.f32 %v4350, %v4576
    %v4591 = vadd.f32 %v4351, %v4581
    %v4592 = vadd.f32 %v4352, %v4586
    %v4593 = vld [vmem:[%s2394 + $0xa6] sm:$0x1]
    %v4594 = vld [vmem:[%s2394 + $0xa7] sm:$0x1]
    %v4595 = vsel %vm23, %v4589, 0.0
    %4596 = vadd.xlane.f32.xlu0 %v4595
    %v4597 = vpop.xlane.xlu0 %4596
    %v4598 = vsel %vm23, %v4590, 0.0
    %4599 = vadd.xlane.f32.xlu0 %v4598
    %v4600 = vpop.xlane.xlu0 %4599
    %v4601 = vsel %vm23, %v4591, 0.0
    %4602 = vadd.xlane.f32.xlu0 %v4601
    %v4603 = vpop.xlane.xlu0 %4602
    %v4604 = vsel %vm23, %v4592, 0.0
    %4605 = vadd.xlane.f32.xlu0 %v4604
    %v4606 = vpop.xlane.xlu0 %4605
    %v4607 = vmul.f32 %v4597, %v2026
    %v4608 = vmul.f32 %v4600, %v2026
    %v4609 = vmul.f32 %v4603, %v2026
    %v4610 = vmul.f32 %v4606, %v2026
    %v4611 = vsub.f32 %v4589, %v4607
    %v4612 = vsub.f32 %v4590, %v4608
    %v4613 = vsub.f32 %v4591, %v4609
    %v4614 = vsub.f32 %v4592, %v4610
    %v4615 = vmul.f32 %v4611, %v4611
    %v4616 = vmul.f32 %v4612, %v4612
    %v4617 = vmul.f32 %v4613, %v4613
    %v4618 = vmul.f32 %v4614, %v4614
    %v4619 = vsel %vm23, %v4615, 0.0
    %4620 = vadd.xlane.f32.xlu0 %v4619
    %v4621 = vpop.xlane.xlu0 %4620
    %v4622 = vsel %vm23, %v4616, 0.0
    %4623 = vadd.xlane.f32.xlu0 %v4622
    %v4624 = vpop.xlane.xlu0 %4623
    %v4625 = vsel %vm23, %v4617, 0.0
    %4626 = vadd.xlane.f32.xlu0 %v4625
    %v4627 = vpop.xlane.xlu0 %4626
    %v4628 = vsel %vm23, %v4618, 0.0
    %4629 = vadd.xlane.f32.xlu0 %v4628
    %v4630 = vpop.xlane.xlu0 %4629
    %v4631 = vmul.f32 %v4621, %v2026
    %v4632 = vmul.f32 %v4624, %v2026
    %v4633 = vmul.f32 %v4627, %v2026
    %v4634 = vmul.f32 %v4630, %v2026
    %v4635 = vadd.f32 %v4631, 1e-05
    %v4636 = vadd.f32 %v4632, 1e-05
    %v4637 = vadd.f32 %v4633, 1e-05
    %v4638 = vadd.f32 %v4634, 1e-05
    %v4639 = vrsqrt.pop %v4635
    %v4640 = vrsqrt.pop %v4636
    %v4641 = vrsqrt.pop %v4637
    %v4642 = vrsqrt.pop %v4638
    %v4643 = vmul.f32 %v4611, %v4639
    %v4644 = vmul.f32 %v4612, %v4640
    %v4645 = vmul.f32 %v4613, %v4641
    %v4646 = vmul.f32 %v4614, %v4642
    %v4647 = vlaneseq
    %v4648 = vshrl.u32 %v4647, 7
    %v4649 = vsub.s32 0, %v4648
    %v4650 = vrot.slane %v4593, %v4649
    %v4651 = vmul.f32 %v4643, %v4650
    %v4652 = vmul.f32 %v4644, %v4650
    %v4653 = vmul.f32 %v4645, %v4650
    %v4654 = vmul.f32 %v4646, %v4650
    %v4655 = vlaneseq
    %v4656 = vshrl.u32 %v4655, 7
    %v4657 = vsub.s32 0, %v4656
    %v4658 = vrot.slane %v4594, %v4657
    %v4659 = vadd.f32 %v4651, %v4658
    %v4660 = vadd.f32 %v4652, %v4658
    %v4661 = vadd.f32 %v4653, %v4658
    %v4662 = vadd.f32 %v4654, %v4658
    %v4663 = vld [vmem:[%s2 + $0xa2] sm:$0x1]
    %v4664 = vld [vmem:[%s2 + $0xa3] sm:$0x1]
    %v4665 = vsel %vm23, %v4659, 0.0
    %4666 = vadd.xlane.f32.xlu0 %v4665
    %v4667 = vpop.xlane.xlu0 %4666
    %v4668 = vsel %vm23, %v4660, 0.0
    %4669 = vadd.xlane.f32.xlu0 %v4668
    %v4670 = vpop.xlane.xlu0 %4669
    %v4671 = vsel %vm23, %v4661, 0.0
    %4672 = vadd.xlane.f32.xlu0 %v4671
    %v4673 = vpop.xlane.xlu0 %4672
    %v4674 = vsel %vm23, %v4662, 0.0
    %4675 = vadd.xlane.f32.xlu0 %v4674
    %v4676 = vpop.xlane.xlu0 %4675
    %v4677 = vmul.f32 %v4667, %v2026
    %v4678 = vmul.f32 %v4670, %v2026
    %v4679 = vmul.f32 %v4673, %v2026
    %v4680 = vmul.f32 %v4676, %v2026
    %v4681 = vsub.f32 %v4659, %v4677
    %v4682 = vsub.f32 %v4660, %v4678
    %v4683 = vsub.f32 %v4661, %v4679
    %v4684 = vsub.f32 %v4662, %v4680
    %v4685 = vmul.f32 %v4681, %v4681
    %v4686 = vmul.f32 %v4682, %v4682
    %v4687 = vmul.f32 %v4683, %v4683
    %v4688 = vmul.f32 %v4684, %v4684
    %v4689 = vsel %vm23, %v4685, 0.0
    %4690 = vadd.xlane.f32.xlu0 %v4689
    %v4691 = vpop.xlane.xlu0 %4690
    %v4692 = vsel %vm23, %v4686, 0.0
    %4693 = vadd.xlane.f32.xlu0 %v4692
    %v4694 = vpop.xlane.xlu0 %4693
    %v4695 = vsel %vm23, %v4687, 0.0
    %4696 = vadd.xlane.f32.xlu0 %v4695
    %v4697 = vpop.xlane.xlu0 %4696
    %v4698 = vsel %vm23, %v4688, 0.0
    %4699 = vadd.xlane.f32.xlu0 %v4698
    %v4700 = vpop.xlane.xlu0 %4699
    %v4701 = vmul.f32 %v4691, %v2026
    %v4702 = vmul.f32 %v4694, %v2026
    %v4703 = vmul.f32 %v4697, %v2026
    %v4704 = vmul.f32 %v4700, %v2026
    %v4705 = vadd.f32 %v4701, 1e-05
    %v4706 = vadd.f32 %v4702, 1e-05
    %v4707 = vadd.f32 %v4703, 1e-05
    %v4708 = vadd.f32 %v4704, 1e-05
    %v4709 = vrsqrt.pop %v4705
    %v4710 = vrsqrt.pop %v4706
    %v4711 = vrsqrt.pop %v4707
    %v4712 = vrsqrt.pop %v4708
    %v4713 = vmul.f32 %v4681, %v4709
    %v4714 = vmul.f32 %v4682, %v4710
    %v4715 = vmul.f32 %v4683, %v4711
    %v4716 = vmul.f32 %v4684, %v4712
    %v4717 = vlaneseq
    %v4718 = vshrl.u32 %v4717, 7
    %v4719 = vsub.s32 0, %v4718
    %v4720 = vrot.slane %v4663, %v4719
    %v4721 = vmul.f32 %v4713, %v4720
    %v4722 = vmul.f32 %v4714, %v4720
    %v4723 = vmul.f32 %v4715, %v4720
    %v4724 = vmul.f32 %v4716, %v4720
    %v4725 = vlaneseq
    %v4726 = vshrl.u32 %v4725, 7
    %v4727 = vsub.s32 0, %v4726
    %v4728 = vrot.slane %v4664, %v4727
    %v4729 = vadd.f32 %v4721, %v4728
    %v4730 = vadd.f32 %v4722, %v4728
    %v4731 = vadd.f32 %v4723, %v4728
    %v4732 = vadd.f32 %v4724, %v4728
    %v4733 = vmul.f32 %v4729, 0.5
    %v4734 = vmul.f32 %v4730, 0.5
    %v4735 = vmul.f32 %v4731, 0.5
    %v4736 = vmul.f32 %v4732, 0.5
    %v4737 = vmul.f32 %v4729, 0.70710677
    %v4738 = vmul.f32 %v4730, 0.70710677
    %v4739 = vmul.f32 %v4731, 0.70710677
    %v4740 = vmul.f32 %v4732, 0.70710677
    %v4741 = verf.f32.pop %v4737
    %v4742 = verf.f32.pop %v4738
    %v4743 = verf.f32.pop %v4739
    %v4744 = verf.f32.pop %v4740
    %v4745 = vadd.f32 %v4741, 1.0
    %v4746 = vadd.f32 %v4742, 1.0
    %v4747 = vadd.f32 %v4743, 1.0
    %v4748 = vadd.f32 %v4744, 1.0
    %v4749 = vmul.f32 %v4733, %v4745
    %v4750 = vmul.f32 %v4734, %v4746
    %v4751 = vmul.f32 %v4735, %v4747
    %v4752 = vmul.f32 %v4736, %v4748
    %v4753 = vld [vmem:[%s2 + $0x20] sm:$0xff]
    %v4754 = vld [vmem:[%s2 + $0x28] sm:$0xff]
    %v4755 = vld [vmem:[%s2 + $0x30] sm:$0xff]
    %v4756 = vld [vmem:[%s2 + $0x38] sm:$0xff]
    %v4758 = vsel %vm23, %v4749, 0
    %v4761 = vsel %vm23, %v4750, 0
    %v4764 = vsel %vm23, %v4751, 0
    %v4767 = vsel %vm23, %v4752, 0
    %4769 = vmatprep.subr.mxu0 0.0
    %4770 = vmatpush1.msra.mxu0 %v4753
    %4771 = vmatprep.subr.mxu0 0.0
    %4772 = vmatpush1.msra.mxu0 %v4754
    %4773 = vmatprep.subr.mxu0 0.0
    %4774 = vmatpush1.msra.mxu0 %v4755
    %4775 = vmatprep.subr.mxu0 0.0
    %4776 = vmatpush1.msra.mxu0 %v4756
    %4777 = vmatprep.subr.mxu0 0.0
    %4778 = vmatpush1.msra.mxu0 0.0
    %4779 = vmatprep.subr.mxu0 0.0
    %4780 = vmatpush1.msra.mxu0 0.0
    %4781 = vmatprep.subr.mxu0 0.0
    %4782 = vmatpush1.msra.mxu0 0.0
    %4783 = vmatprep.subr.mxu0 0.0
    %4784 = vmatpush1.msra.mxu0 0.0
    %4785 = vmatprep.subr.mxu0 0.0
    %4786 = vmatpush1.msra.mxu0 0.0
    %4787 = vmatprep.subr.mxu0 0.0
    %4788 = vmatpush1.msra.mxu0 0.0
    %4789 = vmatprep.subr.mxu0 0.0
    %4790 = vmatpush1.msra.mxu0 0.0
    %4791 = vmatprep.subr.mxu0 0.0
    %4792 = vmatpush1.msra.mxu0 0.0
    %4793 = vmatprep.subr.mxu0 0.0
    %4794 = vmatpush1.msra.mxu0 0.0
    %4795 = vmatprep.subr.mxu0 0.0
    %4796 = vmatpush1.msra.mxu0 0.0
    %4797 = vmatprep.subr.mxu0 0.0
    %4798 = vmatpush1.msra.mxu0 0.0
    %4799 = vmatprep.subr.mxu0 0.0
    %4800 = vmatpush1.msra.mxu0 0.0
    %4801 = vmatprep.subr.mxu0 0.0
    %4802 = vmatpush1.msra.mxu0 0.0
    %4803 = vmatprep.subr.mxu0 0.0
    %4804 = vmatpush1.msra.mxu0 0.0
    %4805 = vmatprep.subr.mxu0 0.0
    %4806 = vmatpush1.msra.mxu0 0.0
    %4807 = vmatprep.subr.mxu0 0.0
    %4808 = vmatpush1.msra.mxu0 0.0
    %4809 = vmatprep.subr.mxu0 0.0
    %4810 = vmatpush1.msra.mxu0 0.0
    %4811 = vmatprep.subr.mxu0 0.0
    %4812 = vmatpush1.msra.mxu0 0.0
    %4813 = vmatprep.subr.mxu0 0.0
    %4814 = vmatpush1.msra.mxu0 0.0
    %4815 = vmatprep.subr.mxu0 0.0
    %4816 = vmatpush1.msra.mxu0 0.0
    %4817 = vmatprep.subr.mxu0 0.0
    %4818 = vmatpush1.msra.mxu0 0.0
    %4819 = vmatprep.subr.mxu0 0.0
    %4820 = vmatpush1.msra.mxu0 0.0
    %4821 = vmatprep.subr.mxu0 0.0
    %4822 = vmatpush1.msra.mxu0 0.0
    %4823 = vmatprep.subr.mxu0 0.0
    %4824 = vmatpush1.msra.mxu0 0.0
    %4825 = vmatprep.subr.mxu0 0.0
    %4826 = vmatpush1.msra.mxu0 0.0
    %4827 = vmatprep.subr.mxu0 0.0
    %4828 = vmatpush1.msra.mxu0 0.0
    %4829 = vmatprep.subr.mxu0 0.0
    %4830 = vmatpush1.msra.mxu0 0.0
    %4831 = vmatprep.subr.mxu0 0.0
    %4832 = vmatpush1.msra.mxu0 0.0
    %4833 = vmatprep.mubr.f32.mxu0 0.0
    %4834 = vmatmul.mubr.f32.gmra.mrb[0].mxu0 %v4758
    %v4835 = vpop.f32.mrb[0].mxu0
    %v4836 = vadd.f32 0.0, %v4835
    %v4837 = vpop.f32.mrb[0].mxu0
    %4838 = vmatprep.mubr.f32.mxu0 0.0
    %4839 = vmatmul.mubr.f32.gmra.mrb[0].mxu0 %v4761
    %v4840 = vpop.f32.mrb[0].mxu0
    %v4841 = vadd.f32 0.0, %v4840
    %v4842 = vpop.f32.mrb[0].mxu0
    %4843 = vmatprep.mubr.f32.mxu0 0.0
    %4844 = vmatmul.mubr.f32.gmra.mrb[0].mxu0 %v4764
    %v4845 = vpop.f32.mrb[0].mxu0
    %v4846 = vadd.f32 0.0, %v4845
    %v4847 = vpop.f32.mrb[0].mxu0
    %4848 = vmatprep.mubr.f32.mxu0 0.0
    %4849 = vmatmul.mubr.f32.gmra.mrb[0].mxu0 %v4767
    %v4850 = vpop.f32.mrb[0].mxu0
    %v4851 = vadd.f32 0.0, %v4850
    %v4852 = vpop.f32.mrb[0].mxu0
    %4853 = vdwg.mxu0
    %v4854 = vld [vmem:[%s2 + $0x40] sm:$0xff]
    %v4855 = vld [vmem:[%s2 + $0x48] sm:$0xff]
    %v4856 = vld [vmem:[%s2 + $0x50] sm:$0xff]
    %v4857 = vld [vmem:[%s2 + $0x58] sm:$0xff]
    %v4858 = vmul.f32 %v4836, %v4854
    %v4859 = vmul.f32 %v4841, %v4855
    %v4860 = vmul.f32 %v4846, %v4856
    %v4861 = vmul.f32 %v4851, %v4857
    %v4862 = vld [vmem:[%s2 + $0x60] sm:$0xff]
    %v4863 = vld [vmem:[%s2 + $0x68] sm:$0xff]
    %v4864 = vld [vmem:[%s2 + $0x70] sm:$0xff]
    %v4865 = vld [vmem:[%s2 + $0x78] sm:$0xff]
    %v4866 = vld [vmem:[%s2 + $0x80] sm:$0xff]
    %v4867 = vld [vmem:[%s2 + $0x88] sm:$0xff]
    %v4868 = vld [vmem:[%s2 + $0x90] sm:$0xff]
    %v4869 = vld [vmem:[%s2 + $0x98] sm:$0xff]
    %v4871 = vsel %vm2222, %v4858, 0
    %v4874 = vsel %vm2222, %v4859, 0
    %v4877 = vsel %vm2222, %v4860, 0
    %v4880 = vsel %vm2222, %v4861, 0
    %4882 = vmatprep.subr.mxu0 0.0
    %4883 = vmatpush1.msra.mxu0 %v4862
    %4884 = vmatprep.subr.mxu0 0.0
    %4885 = vmatpush1.msra.mxu0 %v4863
    %4886 = vmatprep.subr.mxu0 0.0
    %4887 = vmatpush1.msra.mxu0 %v4864
    %4888 = vmatprep.subr.mxu0 0.0
    %4889 = vmatpush1.msra.mxu0 %v4865
    %4890 = vmatprep.subr.mxu0 0.0
    %4891 = vmatpush1.msra.mxu0 %v4866
    %4892 = vmatprep.subr.mxu0 0.0
    %4893 = vmatpush1.msra.mxu0 %v4867
    %4894 = vmatprep.subr.mxu0 0.0
    %4895 = vmatpush1.msra.mxu0 %v4868
    %4896 = vmatprep.subr.mxu0 0.0
    %4897 = vmatpush1.msra.mxu0 %v4869
    %4898 = vmatprep.subr.mxu0 0.0
    %4899 = vmatpush1.msra.mxu0 0.0
    %4900 = vmatprep.subr.mxu0 0.0
    %4901 = vmatpush1.msra.mxu0 0.0
    %4902 = vmatprep.subr.mxu0 0.0
    %4903 = vmatpush1.msra.mxu0 0.0
    %4904 = vmatprep.subr.mxu0 0.0
    %4905 = vmatpush1.msra.mxu0 0.0
    %4906 = vmatprep.subr.mxu0 0.0
    %4907 = vmatpush1.msra.mxu0 0.0
    %4908 = vmatprep.subr.mxu0 0.0
    %4909 = vmatpush1.msra.mxu0 0.0
    %4910 = vmatprep.subr.mxu0 0.0
    %4911 = vmatpush1.msra.mxu0 0.0
    %4912 = vmatprep.subr.mxu0 0.0
    %4913 = vmatpush1.msra.mxu0 0.0
    %4914 = vmatprep.subr.mxu0 0.0
    %4915 = vmatpush1.msra.mxu0 0.0
    %4916 = vmatprep.subr.mxu0 0.0
    %4917 = vmatpush1.msra.mxu0 0.0
    %4918 = vmatprep.subr.mxu0 0.0
    %4919 = vmatpush1.msra.mxu0 0.0
    %4920 = vmatprep.subr.mxu0 0.0
    %4921 = vmatpush1.msra.mxu0 0.0
    %4922 = vmatprep.subr.mxu0 0.0
    %4923 = vmatpush1.msra.mxu0 0.0
    %4924 = vmatprep.subr.mxu0 0.0
    %4925 = vmatpush1.msra.mxu0 0.0
    %4926 = vmatprep.subr.mxu0 0.0
    %4927 = vmatpush1.msra.mxu0 0.0
    %4928 = vmatprep.subr.mxu0 0.0
    %4929 = vmatpush1.msra.mxu0 0.0
    %4930 = vmatprep.subr.mxu0 0.0
    %4931 = vmatpush1.msra.mxu0 0.0
    %4932 = vmatprep.subr.mxu0 0.0
    %4933 = vmatpush1.msra.mxu0 0.0
    %4934 = vmatprep.subr.mxu0 0.0
    %4935 = vmatpush1.msra.mxu0 0.0
    %4936 = vmatprep.subr.mxu0 0.0
    %4937 = vmatpush1.msra.mxu0 0.0
    %4938 = vmatprep.subr.mxu0 0.0
    %4939 = vmatpush1.msra.mxu0 0.0
    %4940 = vmatprep.subr.mxu0 0.0
    %4941 = vmatpush1.msra.mxu0 0.0
    %4942 = vmatprep.subr.mxu0 0.0
    %4943 = vmatpush1.msra.mxu0 0.0
    %4944 = vmatprep.subr.mxu0 0.0
    %4945 = vmatpush1.msra.mxu0 0.0
    %4946 = vmatprep.mubr.f32.mxu0 0.0
    %4947 = vmatmul.mubr.f32.gmra.mrb[0].mxu0 %v4871
    %v4948 = vpop.f32.mrb[0].mxu0
    %v4949 = vadd.f32 0.0, %v4948
    %v4950 = vpop.f32.mrb[0].mxu0
    %4951 = vmatprep.mubr.f32.mxu0 0.0
    %4952 = vmatmul.mubr.f32.gmra.mrb[0].mxu0 %v4874
    %v4953 = vpop.f32.mrb[0].mxu0
    %v4954 = vadd.f32 0.0, %v4953
    %v4955 = vpop.f32.mrb[0].mxu0
    %4956 = vmatprep.mubr.f32.mxu0 0.0
    %4957 = vmatmul.mubr.f32.gmra.mrb[0].mxu0 %v4877
    %v4958 = vpop.f32.mrb[0].mxu0
    %v4959 = vadd.f32 0.0, %v4958
    %v4960 = vpop.f32.mrb[0].mxu0
    %4961 = vmatprep.mubr.f32.mxu0 0.0
    %4962 = vmatmul.mubr.f32.gmra.mrb[0].mxu0 %v4880
    %v4963 = vpop.f32.mrb[0].mxu0
    %v4964 = vadd.f32 0.0, %v4963
    %v4965 = vpop.f32.mrb[0].mxu0
    %4966 = vdwg.mxu0
    %v4967 = vld [vmem:[%s2 + $0xa0] sm:$0x3]
    %v4968 = vld [vmem:[%s2 + $0xa4] sm:$0x1]
    %v4969 = vlaneseq
    %v4970 = vshrl.u32 %v4969, 7
    %v4971 = vsub.s32 0, %v4970
    %v4972 = vrot.slane %v4968, %v4971
    %v4974 = vsel %vm23, %v4967, 0
    %4976 = vmatprep.subr.mxu0 0.0
    %4977 = vmatpush1.msra.mxu0 %v4949
    %4978 = vmatprep.subr.mxu0 0.0
    %4979 = vmatpush1.msra.mxu0 %v4954
    %4980 = vmatprep.subr.mxu0 0.0
    %4981 = vmatpush1.msra.mxu0 %v4959
    %4982 = vmatprep.subr.mxu0 0.0
    %4983 = vmatpush1.msra.mxu0 %v4964
    %4984 = vmatprep.subr.mxu0 0.0
    %4985 = vmatpush1.msra.mxu0 0.0
    %4986 = vmatprep.subr.mxu0 0.0
    %4987 = vmatpush1.msra.mxu0 0.0
    %4988 = vmatprep.subr.mxu0 0.0
    %4989 = vmatpush1.msra.mxu0 0.0
    %4990 = vmatprep.subr.mxu0 0.0
    %4991 = vmatpush1.msra.mxu0 0.0
    %4992 = vmatprep.subr.mxu0 0.0
    %4993 = vmatpush1.msra.mxu0 0.0
    %4994 = vmatprep.subr.mxu0 0.0
    %4995 = vmatpush1.msra.mxu0 0.0
    %4996 = vmatprep.subr.mxu0 0.0
    %4997 = vmatpush1.msra.mxu0 0.0
    %4998 = vmatprep.subr.mxu0 0.0
    %4999 = vmatpush1.msra.mxu0 0.0
    %5000 = vmatprep.subr.mxu0 0.0
    %5001 = vmatpush1.msra.mxu0 0.0
    %5002 = vmatprep.subr.mxu0 0.0
    %5003 = vmatpush1.msra.mxu0 0.0
    %5004 = vmatprep.subr.mxu0 0.0
    %5005 = vmatpush1.msra.mxu0 0.0
    %5006 = vmatprep.subr.mxu0 0.0
    %5007 = vmatpush1.msra.mxu0 0.0
    %5008 = vmatprep.subr.mxu0 0.0
    %5009 = vmatpush1.msra.mxu0 0.0
    %5010 = vmatprep.subr.mxu0 0.0
    %5011 = vmatpush1.msra.mxu0 0.0
    %5012 = vmatprep.subr.mxu0 0.0
    %5013 = vmatpush1.msra.mxu0 0.0
    %5014 = vmatprep.subr.mxu0 0.0
    %5015 = vmatpush1.msra.mxu0 0.0
    %5016 = vmatprep.subr.mxu0 0.0
    %5017 = vmatpush1.msra.mxu0 0.0
    %5018 = vmatprep.subr.mxu0 0.0
    %5019 = vmatpush1.msra.mxu0 0.0
    %5020 = vmatprep.subr.mxu0 0.0
    %5021 = vmatpush1.msra.mxu0 0.0
    %5022 = vmatprep.subr.mxu0 0.0
    %5023 = vmatpush1.msra.mxu0 0.0
    %5024 = vmatprep.subr.mxu0 0.0
    %5025 = vmatpush1.msra.mxu0 0.0
    %5026 = vmatprep.subr.mxu0 0.0
    %5027 = vmatpush1.msra.mxu0 0.0
    %5028 = vmatprep.subr.mxu0 0.0
    %5029 = vmatpush1.msra.mxu0 0.0
    %5030 = vmatprep.subr.mxu0 0.0
    %5031 = vmatpush1.msra.mxu0 0.0
    %5032 = vmatprep.subr.mxu0 0.0
    %5033 = vmatpush1.msra.mxu0 0.0
    %5034 = vmatprep.subr.mxu0 0.0
    %5035 = vmatpush1.msra.mxu0 0.0
    %5036 = vmatprep.subr.mxu0 0.0
    %5037 = vmatpush1.msra.mxu0 0.0
    %5038 = vmatprep.subr.mxu0 0.0
    %5039 = vmatpush1.msra.mxu0 0.0
    %5040 = vmatprep.mubr.f32.mxu0 0.0
    %5041 = vmatmul.mubr.f32.gmra.mrb[0].mxu0 %v4974
    %v5042 = vpop.f32.mrb[0].mxu0
    %v5043 = vadd.f32 %v4972, %v5042
    %v5044 = vpop.f32.mrb[0].mxu0
    %5045 = vdwg.mxu0
    %vm5046 = vcmask 25600
    %5047 = vst.msk [vmem:[#allocation2] sm:$0x3] %vm5046, %v5043
    // Predicated region
    $region14: #{forward.1} parent=1 // pred_check
      _
    $region15: #{forward.1} parent=1 // pred_check_branch
      %5049 = sbr.rel (0) target = $region17
    $region16: #{forward.1} parent=1 // pred_region
      %s5051 = ssub.s32 32, 32
      %5052 = vsyncadd [#allocation3], %s5051
      %s5054 = sshll.u32 [#allocation2], 4
      %s5055 = int_to_ptr.vmem [resolvable:$true] %s5054
      %5057 = dma.vmem_to_hbm [thread:$0]  %s5055, 32, %s3, [#allocation3]
    $region17: #{forward.1} parent=1 // pred_fallthru
      _
    // Predicated region
    $region18: #{forward.1} parent=1 // pred_check
      _
    $region19: #{forward.1} parent=1 // pred_check_branch
      %5059 = sbr.rel (0) target = $region21
    $region20: #{forward.1} parent=1 // pred_region
      %5060 = dma.done [#allocation3], 32
    $region21: #{forward.1} parent=1 // pred_fallthru
      _
    %5061 = vsyncpa [#allocation3], 1

</llo_original>
